<compile_context>
chip_gen: v6e
topology: v6e:2x2x1
jax: 0.10.0
libtpu: 0.0.40
codegen_flags: <defaults>
</compile_context>

<pallas_src>
import functools

import numpy as np
import jax
import jax.numpy as jnp
from jax.experimental import pallas as pl
from jax.experimental.pallas import tpu as pltpu

EPS = 1e-5          # InstanceNorm3d default eps
NEG_SLOPE = 0.2     # F.leaky_relu negative slope
REF_PREC = jax.lax.Precision.HIGHEST   # reference (pure-JAX) path only


# ----------------------------------------------------------------------------
# Pallas kernels
# ----------------------------------------------------------------------------
def down_block_kernel(patches_ref, w_ref, b_ref, gamma_ref, beta_ref, wpool_ref,
                      out_ref, sum_ref, ssq_ref, *, norm, k, Ho, Wo, Hp, Wp,
                      depth):
    """One DownBlock3D step for one (batch, depth-slice) tile.

    patches_ref: (1, 1, H*Wo, k*Cin) bf16  width-only im2col patches
    w_ref:       (k, k*Cin, Cout)    bf16  conv weight, one (k*Cin, Cout) slab per kh
    b_ref/gamma_ref/beta_ref: (1, Cout) f32
    wpool_ref:   (Wp, Wo)            f32   two-tap 0.25 width-pool matrix
    out_ref:     (1, 1, Hp*Wp, Cout) f32
    sum_ref/ssq_ref: (1, Cout)       f32   streamed InstanceNorm stats (scratch)
    """
    R = Ho * Wo

    # Conv3d((1,k,k), VALID) = k height-shifted matmuls over width patches.
    # bf16 inputs, f32 accumulation (native MXU rate).
    acc = jnp.dot(patches_ref[0, 0, 0:R, :], w_ref[0],
                  preferred_element_type=jnp.float32)
    for kh in range(1, k):
        acc = acc + jnp.dot(patches_ref[0, 0, kh * Wo:kh * Wo + R, :],
                            w_ref[kh], preferred_element_type=jnp.float32)
    conv = acc + b_ref[...]                                   # (R, Cout) f32

    def act_pool_store(y):
        # LeakyReLU(0.2) on the VPU.
        y = jnp.where(y >= 0, y, NEG_SLOPE * y)
        # (1,2,2) avg pool: height taps = two contiguous Wo-row slices (VPU add),
        # width taps = tiny (Wp, Wo) matmul with 0.25 weights.  Its FLOPs are
        # negligible, so keep it exact to avoid extra rounding after the norm.
        for hp in range(Hp):
            top = y[(2 * hp) * Wo:(2 * hp) * Wo + Wo, :]
            bot = y[(2 * hp + 1) * Wo:(2 * hp + 1) * Wo + Wo, :]
            pooled = jnp.dot(wpool_ref[...], top + bot,
                             preferred_element_type=jnp.float32,
                             precision=jax.lax.Precision.HIGHEST)
            out_ref[0, 0, hp * Wp:(hp + 1) * Wp, :] = pooled.astype(out_ref.dtype)

    if not norm:
        act_pool_store(conv)
        return

    # InstanceNorm3d with streamed statistics over the depth axis:
    # pass 0 accumulates per-channel sum / sum-of-squares, pass 1 recomputes the
    # conv and applies the fused affine + activation + pool (bounded VMEM; the
    # extra conv recompute trades FLOPs for never holding the full volume).
    p_idx = pl.program_id(1)
    d_idx = pl.program_id(2)
    inv_cnt = 1.0 / float(depth * R)

    @pl.when(jnp.logical_and(p_idx == 0, d_idx == 0))
    def _():
        sum_ref[...] = jnp.zeros_like(sum_ref)
        ssq_ref[...] = jnp.zeros_like(ssq_ref)

    @pl.when(p_idx == 0)
    def _():
        sum_ref[...] += jnp.sum(conv, axis=0, keepdims=True)
        ssq_ref[...] += jnp.sum(conv * conv, axis=0, keepdims=True)

    @pl.when(p_idx == 1)
    def _():
        mean = sum_ref[...] * inv_cnt
        # Single-pass biased variance in f32, guarded against cancellation.
        var = jnp.maximum(ssq_ref[...] * inv_cnt - mean * mean, 0.0)
        scale = gamma_ref[...] * jax.lax.rsqrt(var + EPS)   # fused affine
        shift = beta_ref[...] - mean * scale
        act_pool_store(conv * scale + shift)


def final_conv_kernel(x_ref, w_ref, b_ref, out_ref):
    """Final 1x1x1 Conv3d (Cin -> 1) for one batch element."""
    y = jnp.dot(x_ref[0].astype(jnp.bfloat16), w_ref[...],
                preferred_element_type=jnp.float32) + b_ref[...]
    out_ref[0] = y.astype(out_ref.dtype)


# ----------------------------------------------------------------------------
# Wrappers
# ----------------------------------------------------------------------------
def _width_pool_matrix(Wo, Wp):
    m = np.zeros((Wp, Wo), np.float32)
    for j in range(Wp):
        m[j, 2 * j] = 0.25
        m[j, 2 * j + 1] = 0.25
    return jnp.asarray(m)


def down_block_pallas(x_nl, w4, b, gamma, beta, norm, k):
    """x_nl: (N, D, H, W, Cin) f32 channel-last -> (N, D, Hp*Wp, Cout) f32."""
    N, D, H, W, Cin = x_nl.shape
    Ho, Wo = H - k + 1, W - k + 1
    Hp, Wp = Ho // 2, Wo // 2
    R_out = Hp * Wp
    Cout = w4.shape[-1]

    # Width-only im2col (k-fold, stored bf16).  Height taps are shifted
    # row-slices inside the kernel, so the k^2 HBM blow-up is avoided.
    cols = [x_nl[:, :, :, kw:kw + Wo, :] for kw in range(k)]
    patches = jnp.stack(cols, axis=4).astype(jnp.bfloat16)
    patches = patches.reshape(N, D, H * Wo, k * Cin)
    w_kh = w4.astype(jnp.bfloat16).reshape(k, k * Cin, Cout)
    wpool = _width_pool_matrix(Wo, Wp)

    n_pass = 2 if norm else 1        # pass 0: stats, pass 1: normalize + write
    grid = (N, n_pass, D)
    sem = (("parallel", "arbitrary", "arbitrary") if norm
           else ("parallel", "parallel", "arbitrary"))

    # Explicit VMEM budget: double-buffered patch/out tiles + weights + scratch.
    step_bytes = (2 * H * Wo * k * Cin * 2 + 2 * R_out * Cout * 4
                  + k * k * Cin * Cout * 2 + Wp * Wo * 4 + 5 * Cout * 4)
    vmem_limit = int(min(64 * 2 ** 20, max(8 * 2 ** 20, 4 * step_bytes)))

    kern = functools.partial(down_block_kernel, norm=norm, k=k, Ho=Ho, Wo=Wo,
                             Hp=Hp, Wp=Wp, depth=D)
    return pl.pallas_call(
        kern,
        out_shape=jax.ShapeDtypeStruct((N, D, R_out, Cout), jnp.float32),
        grid=grid,
        in_specs=[
            pl.BlockSpec((1, 1, H * Wo, k * Cin), lambda n, p, d: (n, d, 0, 0)),
            pl.BlockSpec((k, k * Cin, Cout), lambda n, p, d: (0, 0, 0)),
            pl.BlockSpec((1, Cout), lambda n, p, d: (0, 0)),
            pl.BlockSpec((1, Cout), lambda n, p, d: (0, 0)),
            pl.BlockSpec((1, Cout), lambda n, p, d: (0, 0)),
            pl.BlockSpec((Wp, Wo), lambda n, p, d: (0, 0)),
        ],
        out_specs=pl.BlockSpec((1, 1, R_out, Cout), lambda n, p, d: (n, d, 0, 0)),
        scratch_shapes=[pltpu.VMEM((1, Cout), jnp.float32),
                        pltpu.VMEM((1, Cout), jnp.float32)],
        compiler_params=pltpu.CompilerParams(
            dimension_semantics=sem, vmem_limit_bytes=vmem_limit),
    )(patches, w_kh, b.reshape(1, -1), gamma.reshape(1, -1),
      beta.reshape(1, -1), wpool)


def final_conv_pallas(x_nl, w, b):
    """x_nl: (N, D, Hc, Wc, C) f32 -> (N, D*Hc*Wc, 1) f32 (1x1x1 Conv3d)."""
    N, D, Hc, Wc, C = x_nl.shape
    R = D * Hc * Wc
    xf = x_nl.reshape(N, R, C)
    return pl.pallas_call(
        final_conv_kernel,
        out_shape=jax.ShapeDtypeStruct((N, R, 1), jnp.float32),
        grid=(N,),
        in_specs=[
            pl.BlockSpec((1, R, C), lambda n: (n, 0, 0)),
            pl.BlockSpec((C, 1), lambda n: (0, 0)),
            pl.BlockSpec((1, 1), lambda n: (0, 0)),
        ],
        out_specs=pl.BlockSpec((1, R, 1), lambda n: (n, 0, 0)),
        compiler_params=pltpu.CompilerParams(
            dimension_semantics=("parallel",)),
    )(xf, w.astype(jnp.bfloat16), b.reshape(1, 1))


def discriminator_forward(x_ncdhw, kp_driving, kp_source, params):
    """Mirrors Discriminator.forward; returns out_maps (all NCDHW)."""
    del kp_driving, kp_source   # kp_embedding is None with default config
    out_maps = [x_ncdhw]
    out = jnp.transpose(x_ncdhw, (0, 2, 3, 4, 1))      # -> (N, D, H, W, C)
    for blk in params["blocks"]:
        N, D, H, W, _ = out.shape
        k = blk["k"]
        Hp, Wp = (H - k + 1) // 2, (W - k + 1) // 2
        flat = down_block_pallas(out, blk["w4"], blk["b"], blk["gamma"],
                                 blk["beta"], blk["norm"], k)
        out = flat.reshape(N, D, Hp, Wp, -1)
        out_maps.append(jnp.transpose(out, (0, 4, 1, 2, 3)))
    N, D, Hc, Wc, _ = out.shape
    y = final_conv_pallas(out, params["final_w"], params["final_b"])
    out_maps.append(jnp.transpose(y.reshape(N, D, Hc, Wc, 1), (0, 4, 1, 2, 3)))
    return out_maps


# ----------------------------------------------------------------------------
# Deterministic parameter init + pure-JAX f32 reference for validation
# ----------------------------------------------------------------------------
def init_params(key, num_channels, block_expansion, num_blocks, max_features,
                kernel_size):
    blocks = []
    in_c = num_channels
    for i in range(num_blocks):
        out_c = min(max_features, block_expansion * 2 ** (i + 1))
        key, kw, kb, kg, kbt = jax.random.split(key, 5)
        fan_in = kernel_size * kernel_size * in_c
        w4 = jax.random.normal(kw, (kernel_size, kernel_size, in_c, out_c),
                               jnp.float32) / np.sqrt(fan_in)
        b = 0.1 * jax.random.normal(kb, (out_c,), jnp.float32)
        norm = (i != 0)
        if norm:
            gamma = 1.0 + 0.1 * jax.random.normal(kg, (out_c,), jnp.float32)
            beta = 0.1 * jax.random.normal(kbt, (out_c,), jnp.float32)
        else:
            gamma = jnp.ones((out_c,), jnp.float32)
            beta = jnp.zeros((out_c,), jnp.float32)
        blocks.append(dict(k=kernel_size, norm=norm, w4=w4, b=b,
                           gamma=gamma, beta=beta))
        in_c = out_c
    key, kw, kb = jax.random.split(key, 3)
    final_w = jax.random.normal(kw, (in_c, 1), jnp.float32) / np.sqrt(in_c)
    final_b = 0.1 * jax.random.normal(kb, (1,), jnp.float32)
    return dict(blocks=blocks, final_w=final_w, final_b=final_b)


def reference_forward(x_ncdhw, params):
    out_maps = [x_ncdhw]
    out = jnp.transpose(x_ncdhw, (0, 2, 3, 4, 1))
    for blk in params["blocks"]:
        N, D, H, W, Cin = out.shape
        y = jax.lax.conv_general_dilated(
            out.reshape(N * D, H, W, Cin), blk["w4"], (1, 1), "VALID",
            dimension_numbers=("NHWC", "HWIO", "NHWC"), precision=REF_PREC)
        y = y + blk["b"]
        Ho, Wo, Cout = y.shape[1], y.shape[2], y.shape[3]
        y = y.reshape(N, D, Ho, Wo, Cout)
        if blk["norm"]:
            mean = y.mean(axis=(1, 2, 3), keepdims=True)
            var = jnp.square(y - mean).mean(axis=(1, 2, 3), keepdims=True)
            y = (y - mean) * jax.lax.rsqrt(var + EPS)
            y = y * blk["gamma"] + blk["beta"]
        y = jnp.where(y >= 0, y, NEG_SLOPE * y)
        Hp, Wp = Ho // 2, Wo // 2
        y = y[:, :, :Hp * 2, :Wp * 2, :].reshape(N, D, Hp, 2, Wp, 2, Cout)
        y = y.mean(axis=(3, 5))
        out_maps.append(jnp.transpose(y, (0, 4, 1, 2, 3)))
        out = y
    N, D, Hc, Wc, Cl = out.shape
    y = jnp.einsum("nrc,co->nro", out.reshape(N, D * Hc * Wc, Cl),
                   params["final_w"], precision=REF_PREC) + params["final_b"]
    out_maps.append(jnp.transpose(y.reshape(N, D, Hc, Wc, 1), (0, 4, 1, 2, 3)))
    return out_maps


# ----------------------------------------------------------------------------
if __name__ == "__main__":
    # Small config consistent with the module: num_blocks=2, block_expansion=8,
    # max_features=32 -> channels 3 -> 16 -> 32 -> 1 ; spatial 16 -> 6 -> 1.
    N, C, D, H, W = 2, 3, 2, 16, 16
    key = jax.random.PRNGKey(0)
    key, kx = jax.random.split(key)
    x = jax.random.normal(kx, (N, C, D, H, W), jnp.float32)   # NCDHW

    params = init_params(key, num_channels=C, block_expansion=8, num_blocks=2,
                         max_features=32, kernel_size=4)

    out_maps = jax.block_until_ready(discriminator_forward(x, None, None, params))

    ref_maps = reference_forward(x, params)
    assert len(out_maps) == len(ref_maps)
    for o, r in zip(out_maps, ref_maps):
        assert o.shape == r.shape, (o.shape, r.shape)
        # Kernel feeds the MXU bf16 (per the perf review) while the reference is
        # f32/HIGHEST; InstanceNorm amplifies the bf16 input rounding, hence the
        # wider-than-5e-3 tolerance.
        np.testing.assert_allclose(np.asarray(o), np.asarray(r),
                                   rtol=3e-2, atol=4e-2)

    print("KERNEL_OK")
</pallas_src>

<mosaic_0001>
module attributes {stable_mosaic.version = 11 : i64} {
  func.func @down_block_kernel(%arg0: i32, %arg1: i32, %arg2: i32, %arg3: memref<1x1x208x12xbf16, #tpu.memory_space<vmem>>, %arg4: memref<4x12x16xbf16, #tpu.memory_space<vmem>>, %arg5: memref<1x16xf32, #tpu.memory_space<vmem>>, %arg6: memref<1x16xf32, #tpu.memory_space<vmem>>, %arg7: memref<1x16xf32, #tpu.memory_space<vmem>>, %arg8: memref<6x13xf32, #tpu.memory_space<vmem>>, %arg9: memref<1x1x36x16xf32, #tpu.memory_space<vmem>>, %arg10: memref<1x16xf32, #tpu.memory_space<vmem>>, %arg11: memref<1x16xf32, #tpu.memory_space<vmem>>) attributes {dimension_semantics = [#tpu.dimension_semantics<parallel>, #tpu.dimension_semantics<parallel>, #tpu.dimension_semantics<arbitrary>], iteration_bounds = array<i64: 2, 1, 2>, scalar_prefetch = 0 : i64, scratch_operands = 2 : i64, tpu.core_type = #tpu.core_type<tc>, window_params = [{transform_indices = @transform_0, window_bounds = array<i64: 1, 1, 208, 12>}, {pipeline_mode = #tpu.pipeline_mode<synchronous>, transform_indices = @transform_1, window_bounds = array<i64: 4, 12, 16>}, {pipeline_mode = #tpu.pipeline_mode<synchronous>, transform_indices = @transform_2, window_bounds = array<i64: 1, 16>}, {pipeline_mode = #tpu.pipeline_mode<synchronous>, transform_indices = @transform_3, window_bounds = array<i64: 1, 16>}, {pipeline_mode = #tpu.pipeline_mode<synchronous>, transform_indices = @transform_4, window_bounds = array<i64: 1, 16>}, {pipeline_mode = #tpu.pipeline_mode<synchronous>, transform_indices = @transform_5, window_bounds = array<i64: 6, 13>}, {transform_indices = @transform_6, window_bounds = array<i64: 1, 1, 36, 16>}]} {
    %c0 = arith.constant 0 : index
    %c0_0 = arith.constant 0 : index
    %c0_1 = arith.constant 0 : index
    %c0_2 = arith.constant 0 : index
    %0 = vector.load %arg3[%c0, %c0_0, %c0_1, %c0_2] : memref<1x1x208x12xbf16, #tpu.memory_space<vmem>>, vector<1x1x169x12xbf16>
    %1 = vector.shape_cast %0 : vector<1x1x169x12xbf16> to vector<169x12xbf16>
    %c0_3 = arith.constant 0 : index
    %c0_4 = arith.constant 0 : index
    %c0_5 = arith.constant 0 : index
    %2 = vector.load %arg4[%c0_3, %c0_4, %c0_5] : memref<4x12x16xbf16, #tpu.memory_space<vmem>>, vector<1x12x16xbf16>
    %3 = vector.shape_cast %2 : vector<1x12x16xbf16> to vector<12x16xbf16>
    %cst = arith.constant dense<0.000000e+00> : vector<169x16xf32>
    %4 = tpu.matmul %1, %3, %cst {dimension_numbers = #tpu.dot_dimension_numbers<[1], [0], [0], [1], [0, 0, 1, 1], [], []>} : vector<169x12xbf16>, vector<12x16xbf16>, vector<169x16xf32> -> vector<169x16xf32>
    %c0_6 = arith.constant 0 : index
    %c0_7 = arith.constant 0 : index
    %c13 = arith.constant 13 : index
    %c0_8 = arith.constant 0 : index
    %5 = vector.load %arg3[%c0_6, %c0_7, %c13, %c0_8] : memref<1x1x208x12xbf16, #tpu.memory_space<vmem>>, vector<1x1x169x12xbf16>
    %6 = vector.shape_cast %5 : vector<1x1x169x12xbf16> to vector<169x12xbf16>
    %c1 = arith.constant 1 : index
    %c0_9 = arith.constant 0 : index
    %c0_10 = arith.constant 0 : index
    %7 = vector.load %arg4[%c1, %c0_9, %c0_10] : memref<4x12x16xbf16, #tpu.memory_space<vmem>>, vector<1x12x16xbf16>
    %8 = vector.shape_cast %7 : vector<1x12x16xbf16> to vector<12x16xbf16>
    %cst_11 = arith.constant dense<0.000000e+00> : vector<169x16xf32>
    %9 = tpu.matmul %6, %8, %cst_11 {dimension_numbers = #tpu.dot_dimension_numbers<[1], [0], [0], [1], [0, 0, 1, 1], [], []>} : vector<169x12xbf16>, vector<12x16xbf16>, vector<169x16xf32> -> vector<169x16xf32>
    %10 = arith.addf %4, %9 : vector<169x16xf32>
    %c0_12 = arith.constant 0 : index
    %c0_13 = arith.constant 0 : index
    %c26 = arith.constant 26 : index
    %c0_14 = arith.constant 0 : index
    %11 = vector.load %arg3[%c0_12, %c0_13, %c26, %c0_14] : memref<1x1x208x12xbf16, #tpu.memory_space<vmem>>, vector<1x1x169x12xbf16>
    %12 = vector.shape_cast %11 : vector<1x1x169x12xbf16> to vector<169x12xbf16>
    %c2 = arith.constant 2 : index
    %c0_15 = arith.constant 0 : index
    %c0_16 = arith.constant 0 : index
    %13 = vector.load %arg4[%c2, %c0_15, %c0_16] : memref<4x12x16xbf16, #tpu.memory_space<vmem>>, vector<1x12x16xbf16>
    %14 = vector.shape_cast %13 : vector<1x12x16xbf16> to vector<12x16xbf16>
    %cst_17 = arith.constant dense<0.000000e+00> : vector<169x16xf32>
    %15 = tpu.matmul %12, %14, %cst_17 {dimension_numbers = #tpu.dot_dimension_numbers<[1], [0], [0], [1], [0, 0, 1, 1], [], []>} : vector<169x12xbf16>, vector<12x16xbf16>, vector<169x16xf32> -> vector<169x16xf32>
    %16 = arith.addf %10, %15 : vector<169x16xf32>
    %c0_18 = arith.constant 0 : index
    %c0_19 = arith.constant 0 : index
    %c39 = arith.constant 39 : index
    %c0_20 = arith.constant 0 : index
    %17 = vector.load %arg3[%c0_18, %c0_19, %c39, %c0_20] : memref<1x1x208x12xbf16, #tpu.memory_space<vmem>>, vector<1x1x169x12xbf16>
    %18 = vector.shape_cast %17 : vector<1x1x169x12xbf16> to vector<169x12xbf16>
    %c3 = arith.constant 3 : index
    %c0_21 = arith.constant 0 : index
    %c0_22 = arith.constant 0 : index
    %19 = vector.load %arg4[%c3, %c0_21, %c0_22] : memref<4x12x16xbf16, #tpu.memory_space<vmem>>, vector<1x12x16xbf16>
    %20 = vector.shape_cast %19 : vector<1x12x16xbf16> to vector<12x16xbf16>
    %cst_23 = arith.constant dense<0.000000e+00> : vector<169x16xf32>
    %21 = tpu.matmul %18, %20, %cst_23 {dimension_numbers = #tpu.dot_dimension_numbers<[1], [0], [0], [1], [0, 0, 1, 1], [], []>} : vector<169x12xbf16>, vector<12x16xbf16>, vector<169x16xf32> -> vector<169x16xf32>
    %22 = arith.addf %16, %21 : vector<169x16xf32>
    %c0_24 = arith.constant 0 : index
    %c0_25 = arith.constant 0 : index
    %23 = vector.load %arg5[%c0_24, %c0_25] : memref<1x16xf32, #tpu.memory_space<vmem>>, vector<1x16xf32>
    %24 = vector.broadcast %23 : vector<1x16xf32> to vector<169x16xf32>
    %25 = arith.addf %22, %24 : vector<169x16xf32>
    %cst_26 = arith.constant 0.000000e+00 : f32
    %26 = vector.broadcast %cst_26 : f32 to vector<169x16xf32>
    %27 = arith.cmpf oge, %25, %26 : vector<169x16xf32>
    %cst_27 = arith.constant 2.000000e-01 : f32
    %28 = vector.broadcast %cst_27 : f32 to vector<169x16xf32>
    %29 = arith.mulf %28, %25 : vector<169x16xf32>
    %30 = arith.select %27, %25, %29 : vector<169x16xi1>, vector<169x16xf32>
    %31 = vector.extract_strided_slice %30 {offsets = [0, 0], sizes = [13, 16], strides = [1, 1]} : vector<169x16xf32> to vector<13x16xf32>
    %32 = vector.extract_strided_slice %30 {offsets = [13, 0], sizes = [13, 16], strides = [1, 1]} : vector<169x16xf32> to vector<13x16xf32>
    %c0_28 = arith.constant 0 : index
    %c0_29 = arith.constant 0 : index
    %33 = vector.load %arg8[%c0_28, %c0_29] : memref<6x13xf32, #tpu.memory_space<vmem>>, vector<6x13xf32>
    %34 = arith.addf %31, %32 : vector<13x16xf32>
    %cst_30 = arith.constant dense<0.000000e+00> : vector<6x16xf32>
    %35 = tpu.matmul %33, %34, %cst_30 {dimension_numbers = #tpu.dot_dimension_numbers<[1], [0], [0], [1], [0, 0, 1, 1], [], []>, precision = #tpu.contract_precision<fp32>} : vector<6x13xf32>, vector<13x16xf32>, vector<6x16xf32> -> vector<6x16xf32>
    %c0_31 = arith.constant 0 : index
    %c0_32 = arith.constant 0 : index
    %c0_33 = arith.constant 0 : index
    %c0_34 = arith.constant 0 : index
    %36 = vector.load %arg9[%c0_31, %c0_32, %c0_33, %c0_34] : memref<1x1x36x16xf32, #tpu.memory_space<vmem>>, vector<1x1x6x16xf32>
    %37 = vector.shape_cast %36 : vector<1x1x6x16xf32> to vector<6x16xf32>
    %38 = vector.shape_cast %35 : vector<6x16xf32> to vector<1x1x6x16xf32>
    tpu.vector_store %arg9[%c0_31, %c0_32, %c0_33, %c0_34], %38 {strides = array<i32>} : memref<1x1x36x16xf32, #tpu.memory_space<vmem>>, vector<1x1x6x16xf32>,
    %39 = vector.extract_strided_slice %30 {offsets = [26, 0], sizes = [13, 16], strides = [1, 1]} : vector<169x16xf32> to vector<13x16xf32>
    %40 = vector.extract_strided_slice %30 {offsets = [39, 0], sizes = [13, 16], strides = [1, 1]} : vector<169x16xf32> to vector<13x16xf32>
    %c0_35 = arith.constant 0 : index
    %c0_36 = arith.constant 0 : index
    %41 = vector.load %arg8[%c0_35, %c0_36] : memref<6x13xf32, #tpu.memory_space<vmem>>, vector<6x13xf32>
    %42 = arith.addf %39, %40 : vector<13x16xf32>
    %cst_37 = arith.constant dense<0.000000e+00> : vector<6x16xf32>
    %43 = tpu.matmul %41, %42, %cst_37 {dimension_numbers = #tpu.dot_dimension_numbers<[1], [0], [0], [1], [0, 0, 1, 1], [], []>, precision = #tpu.contract_precision<fp32>} : vector<6x13xf32>, vector<13x16xf32>, vector<6x16xf32> -> vector<6x16xf32>
    %c0_38 = arith.constant 0 : index
    %c0_39 = arith.constant 0 : index
    %c6 = arith.constant 6 : index
    %c0_40 = arith.constant 0 : index
    %44 = vector.load %arg9[%c0_38, %c0_39, %c6, %c0_40] : memref<1x1x36x16xf32, #tpu.memory_space<vmem>>, vector<1x1x6x16xf32>
    %45 = vector.shape_cast %44 : vector<1x1x6x16xf32> to vector<6x16xf32>
    %46 = vector.shape_cast %43 : vector<6x16xf32> to vector<1x1x6x16xf32>
    tpu.vector_store %arg9[%c0_38, %c0_39, %c6, %c0_40], %46 {strides = array<i32>} : memref<1x1x36x16xf32, #tpu.memory_space<vmem>>, vector<1x1x6x16xf32>,
    %47 = vector.extract_strided_slice %30 {offsets = [52, 0], sizes = [13, 16], strides = [1, 1]} : vector<169x16xf32> to vector<13x16xf32>
    %48 = vector.extract_strided_slice %30 {offsets = [65, 0], sizes = [13, 16], strides = [1, 1]} : vector<169x16xf32> to vector<13x16xf32>
    %c0_41 = arith.constant 0 : index
    %c0_42 = arith.constant 0 : index
    %49 = vector.load %arg8[%c0_41, %c0_42] : memref<6x13xf32, #tpu.memory_space<vmem>>, vector<6x13xf32>
    %50 = arith.addf %47, %48 : vector<13x16xf32>
    %cst_43 = arith.constant dense<0.000000e+00> : vector<6x16xf32>
    %51 = tpu.matmul %49, %50, %cst_43 {dimension_numbers = #tpu.dot_dimension_numbers<[1], [0], [0], [1], [0, 0, 1, 1], [], []>, precision = #tpu.contract_precision<fp32>} : vector<6x13xf32>, vector<13x16xf32>, vector<6x16xf32> -> vector<6x16xf32>
    %c0_44 = arith.constant 0 : index
    %c0_45 = arith.constant 0 : index
    %c12 = arith.constant 12 : index
    %c0_46 = arith.constant 0 : index
    %52 = vector.load %arg9[%c0_44, %c0_45, %c12, %c0_46] : memref<1x1x36x16xf32, #tpu.memory_space<vmem>>, vector<1x1x6x16xf32>
    %53 = vector.shape_cast %52 : vector<1x1x6x16xf32> to vector<6x16xf32>
    %54 = vector.shape_cast %51 : vector<6x16xf32> to vector<1x1x6x16xf32>
    tpu.vector_store %arg9[%c0_44, %c0_45, %c12, %c0_46], %54 {strides = array<i32>} : memref<1x1x36x16xf32, #tpu.memory_space<vmem>>, vector<1x1x6x16xf32>,
    %55 = vector.extract_strided_slice %30 {offsets = [78, 0], sizes = [13, 16], strides = [1, 1]} : vector<169x16xf32> to vector<13x16xf32>
    %56 = vector.extract_strided_slice %30 {offsets = [91, 0], sizes = [13, 16], strides = [1, 1]} : vector<169x16xf32> to vector<13x16xf32>
    %c0_47 = arith.constant 0 : index
    %c0_48 = arith.constant 0 : index
    %57 = vector.load %arg8[%c0_47, %c0_48] : memref<6x13xf32, #tpu.memory_space<vmem>>, vector<6x13xf32>
    %58 = arith.addf %55, %56 : vector<13x16xf32>
    %cst_49 = arith.constant dense<0.000000e+00> : vector<6x16xf32>
    %59 = tpu.matmul %57, %58, %cst_49 {dimension_numbers = #tpu.dot_dimension_numbers<[1], [0], [0], [1], [0, 0, 1, 1], [], []>, precision = #tpu.contract_precision<fp32>} : vector<6x13xf32>, vector<13x16xf32>, vector<6x16xf32> -> vector<6x16xf32>
    %c0_50 = arith.constant 0 : index
    %c0_51 = arith.constant 0 : index
    %c18 = arith.constant 18 : index
    %c0_52 = arith.constant 0 : index
    %60 = vector.load %arg9[%c0_50, %c0_51, %c18, %c0_52] : memref<1x1x36x16xf32, #tpu.memory_space<vmem>>, vector<1x1x6x16xf32>
    %61 = vector.shape_cast %60 : vector<1x1x6x16xf32> to vector<6x16xf32>
    %62 = vector.shape_cast %59 : vector<6x16xf32> to vector<1x1x6x16xf32>
    tpu.vector_store %arg9[%c0_50, %c0_51, %c18, %c0_52], %62 {strides = array<i32>} : memref<1x1x36x16xf32, #tpu.memory_space<vmem>>, vector<1x1x6x16xf32>,
    %63 = vector.extract_strided_slice %30 {offsets = [104, 0], sizes = [13, 16], strides = [1, 1]} : vector<169x16xf32> to vector<13x16xf32>
    %64 = vector.extract_strided_slice %30 {offsets = [117, 0], sizes = [13, 16], strides = [1, 1]} : vector<169x16xf32> to vector<13x16xf32>
    %c0_53 = arith.constant 0 : index
    %c0_54 = arith.constant 0 : index
    %65 = vector.load %arg8[%c0_53, %c0_54] : memref<6x13xf32, #tpu.memory_space<vmem>>, vector<6x13xf32>
    %66 = arith.addf %63, %64 : vector<13x16xf32>
    %cst_55 = arith.constant dense<0.000000e+00> : vector<6x16xf32>
    %67 = tpu.matmul %65, %66, %cst_55 {dimension_numbers = #tpu.dot_dimension_numbers<[1], [0], [0], [1], [0, 0, 1, 1], [], []>, precision = #tpu.contract_precision<fp32>} : vector<6x13xf32>, vector<13x16xf32>, vector<6x16xf32> -> vector<6x16xf32>
    %c0_56 = arith.constant 0 : index
    %c0_57 = arith.constant 0 : index
    %c24 = arith.constant 24 : index
    %c0_58 = arith.constant 0 : index
    %68 = vector.load %arg9[%c0_56, %c0_57, %c24, %c0_58] : memref<1x1x36x16xf32, #tpu.memory_space<vmem>>, vector<1x1x6x16xf32>
    %69 = vector.shape_cast %68 : vector<1x1x6x16xf32> to vector<6x16xf32>
    %70 = vector.shape_cast %67 : vector<6x16xf32> to vector<1x1x6x16xf32>
    tpu.vector_store %arg9[%c0_56, %c0_57, %c24, %c0_58], %70 {strides = array<i32>} : memref<1x1x36x16xf32, #tpu.memory_space<vmem>>, vector<1x1x6x16xf32>,
    %71 = vector.extract_strided_slice %30 {offsets = [130, 0], sizes = [13, 16], strides = [1, 1]} : vector<169x16xf32> to vector<13x16xf32>
    %72 = vector.extract_strided_slice %30 {offsets = [143, 0], sizes = [13, 16], strides = [1, 1]} : vector<169x16xf32> to vector<13x16xf32>
    %c0_59 = arith.constant 0 : index
    %c0_60 = arith.constant 0 : index
    %73 = vector.load %arg8[%c0_59, %c0_60] : memref<6x13xf32, #tpu.memory_space<vmem>>, vector<6x13xf32>
    %74 = arith.addf %71, %72 : vector<13x16xf32>
    %cst_61 = arith.constant dense<0.000000e+00> : vector<6x16xf32>
    %75 = tpu.matmul %73, %74, %cst_61 {dimension_numbers = #tpu.dot_dimension_numbers<[1], [0], [0], [1], [0, 0, 1, 1], [], []>, precision = #tpu.contract_precision<fp32>} : vector<6x13xf32>, vector<13x16xf32>, vector<6x16xf32> -> vector<6x16xf32>
    %c0_62 = arith.constant 0 : index
    %c0_63 = arith.constant 0 : index
    %c30 = arith.constant 30 : index
    %c0_64 = arith.constant 0 : index
    %76 = vector.load %arg9[%c0_62, %c0_63, %c30, %c0_64] : memref<1x1x36x16xf32, #tpu.memory_space<vmem>>, vector<1x1x6x16xf32>
    %77 = vector.shape_cast %76 : vector<1x1x6x16xf32> to vector<6x16xf32>
    %78 = vector.shape_cast %75 : vector<6x16xf32> to vector<1x1x6x16xf32>
    tpu.vector_store %arg9[%c0_62, %c0_63, %c30, %c0_64], %78 {strides = array<i32>} : memref<1x1x36x16xf32, #tpu.memory_space<vmem>>, vector<1x1x6x16xf32>,
    return
  }
  func.func @transform_0(%arg0: i32, %arg1: i32, %arg2: i32) -> (i32, i32, i32, i32) {
    %c0_i32 = arith.constant 0 : i32
    %c0_i32_0 = arith.constant 0 : i32
    %c0_i32_1 = arith.constant 0 : i32
    return %arg0, %arg2, %c0_i32, %c0_i32_0 : i32, i32, i32, i32
  }
  func.func @transform_1(%arg0: i32, %arg1: i32, %arg2: i32) -> (i32, i32, i32) {
    %c0_i32 = arith.constant 0 : i32
    %c0_i32_0 = arith.constant 0 : i32
    %c0_i32_1 = arith.constant 0 : i32
    %c0_i32_2 = arith.constant 0 : i32
    return %c0_i32, %c0_i32_0, %c0_i32_1 : i32, i32, i32
  }
  func.func @transform_2(%arg0: i32, %arg1: i32, %arg2: i32) -> (i32, i32) {
    %c0_i32 = arith.constant 0 : i32
    %c0_i32_0 = arith.constant 0 : i32
    %c0_i32_1 = arith.constant 0 : i32
    return %c0_i32, %c0_i32_0 : i32, i32
  }
  func.func @transform_3(%arg0: i32, %arg1: i32, %arg2: i32) -> (i32, i32) {
    %c0_i32 = arith.constant 0 : i32
    %c0_i32_0 = arith.constant 0 : i32
    %c0_i32_1 = arith.constant 0 : i32
    return %c0_i32, %c0_i32_0 : i32, i32
  }
  func.func @transform_4(%arg0: i32, %arg1: i32, %arg2: i32) -> (i32, i32) {
    %c0_i32 = arith.constant 0 : i32
    %c0_i32_0 = arith.constant 0 : i32
    %c0_i32_1 = arith.constant 0 : i32
    return %c0_i32, %c0_i32_0 : i32, i32
  }
  func.func @transform_5(%arg0: i32, %arg1: i32, %arg2: i32) -> (i32, i32) {
    %c0_i32 = arith.constant 0 : i32
    %c0_i32_0 = arith.constant 0 : i32
    %c0_i32_1 = arith.constant 0 : i32
    return %c0_i32, %c0_i32_0 : i32, i32
  }
  func.func @transform_6(%arg0: i32, %arg1: i32, %arg2: i32) -> (i32, i32, i32, i32) {
    %c0_i32 = arith.constant 0 : i32
    %c0_i32_0 = arith.constant 0 : i32
    %c0_i32_1 = arith.constant 0 : i32
    return %arg0, %arg2, %c0_i32, %c0_i32_0 : i32, i32, i32, i32
  }
}

</mosaic_0001>

<llo_original>
// kernel: tpu_custom_call.1
$region0: #{tpu_custom_call.1}
  #allocation0 [shape = 'u32[]', space=smem, size = 0x4, offset = 0x4, fixed_abs, tag = 'smem constant byte address 0x4 - core index']
  #allocation1 [shape = 'u32[144,128]{1,0:T(1,128)}', space=vmem, size = 0x12000, scoped, tag = 'internal scratch']
  #allocation2 [shape = 'f32[1,16]{1,0:T(1,128)}', space=vmem, size = 0x200, scoped, tag = 'scratch operand']
  #allocation3 [shape = 'f32[1,16]{1,0:T(1,128)}', space=vmem, size = 0x200, scoped, tag = 'scratch operand']
  %s0 = inlined_call_operand.vmem [shape: bf16[2,2,208,12], index: 0, kind: input, shape index: {}]
  %s1 = inlined_call_operand.vmem [shape: bf16[4,12,16], index: 1, kind: input, shape index: {}]
  %s2 = inlined_call_operand.vmem [shape: f32[1,16], index: 2, kind: input, shape index: {}]
  %s3 = inlined_call_operand.vmem [shape: f32[1,16], index: 3, kind: input, shape index: {}]
  %s4 = inlined_call_operand.vmem [shape: f32[1,16], index: 4, kind: input, shape index: {}]
  %s5 = inlined_call_operand.vmem [shape: f32[6,13], index: 5, kind: input, shape index: {}]
  %s6 = inlined_call_operand.vmem [shape: f32[2,2,36,16], index: 6, kind: output, shape index: {}]
  %s7 = sld [smem:[#allocation0]]
  $region57: #{tpu_custom_call.1} parent=0
    _
  %s9 = ssub.s32 1, %s7
  %s10 = scalar_select 0, %s9, %s7
  loop: start=0, step=1, limit=6
  $region2: #{tpu_custom_call.1} parent=0 // loop_pre_header
    _
  $region3: #{tpu_custom_call.1} parent=0 // loop_header
    %s12 = sphi 0, %s16
    %p13 = scmp.ge.s32.totalorder %s12, 6
    %s19 = sphi 0, %s38
    %s20 = sphi 0, %s34
    %s21 = sphi 0, %s30
    %s22 = sphi 0, %s19
    %s23 = sphi 0, %s20
    %s24 = sphi 0, %s21
    %s25 = sphi 0, %s22
    %s26 = sphi 0, %s23
    %s27 = sphi 0, %s24
    %s43 = sphi 0, %s45
    %s46 = sphi 0, %s43
    %s47 = sphi 0, %s46
    %s63 = sphi 0, %s47
    %s67 = sphi 0, %s67
    %s69 = sphi 0, %s67
    %s70 = sphi 0, %s69
    %s84 = sphi 0, %s70
    %s88 = sphi 0, %s88
    %s90 = sphi 0, %s88
    %s91 = sphi 0, %s90
    %s105 = sphi 0, %s91
    %s109 = sphi 0, %s109
    %s111 = sphi 0, %s109
    %s112 = sphi 0, %s111
    %s126 = sphi 0, %s112
    %s130 = sphi 0, %s130
    %s132 = sphi 0, %s130
    %s133 = sphi 0, %s132
    %s147 = sphi 0, %s133
    %s151 = sphi 0, %s151
    %s153 = sphi 0, %s151
    %s154 = sphi 0, %s153
    %s168 = sphi 0, %s154
    %s176 = sphi 0, %s178
    %s179 = sphi 0, %s176
    %s180 = sphi 0, %s179
    %s196 = sphi 0, %s180
  $region4: #{tpu_custom_call.1} parent=0 // loop_header_branch
    %15 = sbr.rel (%p13) target = $region8
  $region5: #{tpu_custom_call.1} parent=0 // loop_body
    %s17 = ssub.s32 %s12, 1
    %s18 = ssub.s32 %s12, 2
    %s28 = sadd.s32 1, %s21
    %p29 = scmp.ge.s32.totalorder %s28, 2
    %s30 = scalar_select %p29, 0, %s28
    %s31 = sadd.s32 1, %s20
    %s32 = scalar_select %p29, %s31, %s20
    %p33 = scmp.ge.s32.totalorder %s32, 1
    %s34 = scalar_select %p33, 0, %s32
    %s35 = sadd.s32 1, %s19
    %s36 = scalar_select %p33, %s35, %s19
    %p37 = scmp.ge.s32.totalorder %s36, 2
    %s38 = scalar_select %p37, 0, %s36
    %s39 = ssub.s32 %s19, %s38
    %s40 = ssub.s32 %s21, %s30
    %s41 = sor.u32 %s39, %s40
    %p42 = scmp.eq.s32.totalorder %s41, 0
    %s44 = sadd.s32 %s43, 1
    %s45 = scalar_select %p42, %s43, %s44
    %p48 = pneg %p42
    %p49 = scmp.eq.s32.totalorder %s12, 3
    %p50 = por %p48, %p49
    %p51 = scmp.ne.s32.totalorder %s43, %s46
    %p52 = scmp.eq.s32.totalorder %s12, 0
    %p53 = por %p51, %p52
    %p54 = scmp.ne.s32.totalorder %s43, %s46
    %p55 = scmp.eq.s32.totalorder %s17, 3
    %p56 = por %p54, %p55
    %p57 = scmp.ne.s32.totalorder %s46, %s47
    %p58 = scmp.eq.s32.totalorder %s17, 0
    %p59 = por %p57, %p58
    %p60 = scmp.ne.s32.totalorder %s46, %s47
    %p61 = scmp.eq.s32.totalorder %s18, 3
    %p62 = por %p60, %p61
    %p64 = scmp.ne.s32.totalorder %s47, %s63
    %p65 = scmp.eq.s32.totalorder %s18, 0
    %p66 = por %p64, %p65
    %s68 = sadd.s32 %s67, 1
    %p71 = scmp.eq.s32.totalorder %s12, 3
    %p72 = scmp.ne.s32.totalorder %s67, %s69
    %p73 = scmp.eq.s32.totalorder %s12, 0
    %p74 = por %p72, %p73
    %p75 = scmp.ne.s32.totalorder %s67, %s69
    %p76 = scmp.eq.s32.totalorder %s17, 3
    %p77 = por %p75, %p76
    %p78 = scmp.ne.s32.totalorder %s69, %s70
    %p79 = scmp.eq.s32.totalorder %s17, 0
    %p80 = por %p78, %p79
    %p81 = scmp.ne.s32.totalorder %s69, %s70
    %p82 = scmp.eq.s32.totalorder %s18, 3
    %p83 = por %p81, %p82
    %p85 = scmp.ne.s32.totalorder %s70, %s84
    %p86 = scmp.eq.s32.totalorder %s18, 0
    %p87 = por %p85, %p86
    %s89 = sadd.s32 %s88, 1
    %p92 = scmp.eq.s32.totalorder %s12, 3
    %p93 = scmp.ne.s32.totalorder %s88, %s90
    %p94 = scmp.eq.s32.totalorder %s12, 0
    %p95 = por %p93, %p94
    %p96 = scmp.ne.s32.totalorder %s88, %s90
    %p97 = scmp.eq.s32.totalorder %s17, 3
    %p98 = por %p96, %p97
    %p99 = scmp.ne.s32.totalorder %s90, %s91
    %p100 = scmp.eq.s32.totalorder %s17, 0
    %p101 = por %p99, %p100
    %p102 = scmp.ne.s32.totalorder %s90, %s91
    %p103 = scmp.eq.s32.totalorder %s18, 3
    %p104 = por %p102, %p103
    %p106 = scmp.ne.s32.totalorder %s91, %s105
    %p107 = scmp.eq.s32.totalorder %s18, 0
    %p108 = por %p106, %p107
    %s110 = sadd.s32 %s109, 1
    %p113 = scmp.eq.s32.totalorder %s12, 3
    %p114 = scmp.ne.s32.totalorder %s109, %s111
    %p115 = scmp.eq.s32.totalorder %s12, 0
    %p116 = por %p114, %p115
    %p117 = scmp.ne.s32.totalorder %s109, %s111
    %p118 = scmp.eq.s32.totalorder %s17, 3
    %p119 = por %p117, %p118
    %p120 = scmp.ne.s32.totalorder %s111, %s112
    %p121 = scmp.eq.s32.totalorder %s17, 0
    %p122 = por %p120, %p121
    %p123 = scmp.ne.s32.totalorder %s111, %s112
    %p124 = scmp.eq.s32.totalorder %s18, 3
    %p125 = por %p123, %p124
    %p127 = scmp.ne.s32.totalorder %s112, %s126
    %p128 = scmp.eq.s32.totalorder %s18, 0
    %p129 = por %p127, %p128
    %s131 = sadd.s32 %s130, 1
    %p134 = scmp.eq.s32.totalorder %s12, 3
    %p135 = scmp.ne.s32.totalorder %s130, %s132
    %p136 = scmp.eq.s32.totalorder %s12, 0
    %p137 = por %p135, %p136
    %p138 = scmp.ne.s32.totalorder %s130, %s132
    %p139 = scmp.eq.s32.totalorder %s17, 3
    %p140 = por %p138, %p139
    %p141 = scmp.ne.s32.totalorder %s132, %s133
    %p142 = scmp.eq.s32.totalorder %s17, 0
    %p143 = por %p141, %p142
    %p144 = scmp.ne.s32.totalorder %s132, %s133
    %p145 = scmp.eq.s32.totalorder %s18, 3
    %p146 = por %p144, %p145
    %p148 = scmp.ne.s32.totalorder %s133, %s147
    %p149 = scmp.eq.s32.totalorder %s18, 0
    %p150 = por %p148, %p149
    %s152 = sadd.s32 %s151, 1
    %p155 = scmp.eq.s32.totalorder %s12, 3
    %p156 = scmp.ne.s32.totalorder %s151, %s153
    %p157 = scmp.eq.s32.totalorder %s12, 0
    %p158 = por %p156, %p157
    %p159 = scmp.ne.s32.totalorder %s151, %s153
    %p160 = scmp.eq.s32.totalorder %s17, 3
    %p161 = por %p159, %p160
    %p162 = scmp.ne.s32.totalorder %s153, %s154
    %p163 = scmp.eq.s32.totalorder %s17, 0
    %p164 = por %p162, %p163
    %p165 = scmp.ne.s32.totalorder %s153, %s154
    %p166 = scmp.eq.s32.totalorder %s18, 3
    %p167 = por %p165, %p166
    %p169 = scmp.ne.s32.totalorder %s154, %s168
    %p170 = scmp.eq.s32.totalorder %s18, 0
    %p171 = por %p169, %p170
    %s172 = ssub.s32 %s19, %s38
    %s173 = ssub.s32 %s21, %s30
    %s174 = sor.u32 %s172, %s173
    %p175 = scmp.eq.s32.totalorder %s174, 0
    %s177 = sadd.s32 %s176, 1
    %s178 = scalar_select %p175, %s176, %s177
    %p181 = pneg %p175
    %p182 = scmp.eq.s32.totalorder %s12, 3
    %p183 = por %p181, %p182
    %p184 = scmp.ne.s32.totalorder %s176, %s179
    %p185 = scmp.eq.s32.totalorder %s12, 0
    %p186 = por %p184, %p185
    %p187 = scmp.ne.s32.totalorder %s176, %s179
    %p188 = scmp.eq.s32.totalorder %s17, 3
    %p189 = por %p187, %p188
    %p190 = scmp.ne.s32.totalorder %s179, %s180
    %p191 = scmp.eq.s32.totalorder %s17, 0
    %p192 = por %p190, %p191
    %p193 = scmp.ne.s32.totalorder %s179, %s180
    %p194 = scmp.eq.s32.totalorder %s18, 3
    %p195 = por %p193, %p194
    %p197 = scmp.ne.s32.totalorder %s180, %s196
    %p198 = scmp.eq.s32.totalorder %s18, 0
    %p199 = por %p197, %p198
    %p200 = scmp.le.s32.totalorder 1, %s12
    %p201 = scmp.lt.s32.totalorder %s12, 5
    %p202 = pnand %p200, %p201
    %p203 = pneg %p202
    // Predicated region
    $region9: #{tpu_custom_call.1} parent=5 // pred_check
      _
    $region10: #{tpu_custom_call.1} parent=5 // pred_check_branch
      %205 = sbr.rel (%p202) target = $region12
    $region11: #{tpu_custom_call.1} parent=5 // pred_region
      %s206 = ssub.s32 %s12, 1
      // Predicated region
      $region13: #{tpu_custom_call.1} parent=11 // pred_check
        %p207 = pneg %p80
      $region14: #{tpu_custom_call.1} parent=11 // pred_check_branch
        %209 = sbr.rel (%p207) target = $region16
      $region15: #{tpu_custom_call.1} parent=11 // pred_region
        _
      $region16: #{tpu_custom_call.1} parent=11 // pred_fallthru
        _
      // Predicated region
      $region17: #{tpu_custom_call.1} parent=11 // pred_check
        %p210 = pneg %p101
      $region18: #{tpu_custom_call.1} parent=11 // pred_check_branch
        %212 = sbr.rel (%p210) target = $region20
      $region19: #{tpu_custom_call.1} parent=11 // pred_region
        _
      $region20: #{tpu_custom_call.1} parent=11 // pred_fallthru
        _
      // Predicated region
      $region21: #{tpu_custom_call.1} parent=11 // pred_check
        %p213 = pneg %p122
      $region22: #{tpu_custom_call.1} parent=11 // pred_check_branch
        %215 = sbr.rel (%p213) target = $region24
      $region23: #{tpu_custom_call.1} parent=11 // pred_region
        _
      $region24: #{tpu_custom_call.1} parent=11 // pred_fallthru
        _
      // Predicated region
      $region25: #{tpu_custom_call.1} parent=11 // pred_check
        %p216 = pneg %p143
      $region26: #{tpu_custom_call.1} parent=11 // pred_check_branch
        %218 = sbr.rel (%p216) target = $region28
      $region27: #{tpu_custom_call.1} parent=11 // pred_region
        _
      $region28: #{tpu_custom_call.1} parent=11 // pred_fallthru
        _
      // Predicated region
      $region29: #{tpu_custom_call.1} parent=11 // pred_check
        %p219 = pneg %p164
      $region30: #{tpu_custom_call.1} parent=11 // pred_check_branch
        %221 = sbr.rel (%p219) target = $region32
      $region31: #{tpu_custom_call.1} parent=11 // pred_region
        _
      $region32: #{tpu_custom_call.1} parent=11 // pred_fallthru
        _
    $region12: #{tpu_custom_call.1} parent=5 // pred_fallthru
      _
    %p222 = scmp.lt.s32.totalorder %s12, 4
    // Predicated region
    $region33: #{tpu_custom_call.1} parent=5 // pred_check
      %p223 = pneg %p222
    $region34: #{tpu_custom_call.1} parent=5 // pred_check_branch
      %225 = sbr.rel (%p223) target = $region36
    $region35: #{tpu_custom_call.1} parent=5 // pred_region
      // Predicated region
      $region37: #{tpu_custom_call.1} parent=35 // pred_check
        %p226 = pneg %p53
      $region38: #{tpu_custom_call.1} parent=35 // pred_check_branch
        %228 = sbr.rel (%p226) target = $region40
      $region39: #{tpu_custom_call.1} parent=35 // pred_region
        %p229 = scmp.lt.s32.totalorder %s19, 1
        %s230 = scalar_select %p229, %s19, 1
        %p231 = scmp.lt.s32.totalorder %s21, 1
        %s232 = scalar_select %p231, %s21, 1
        %s233 = smul.addr %s232, 26
        %s234 = smul.addr %s230, 52
        %s235 = sadd.s32 %s233, %s234
        %s236 = smul.addr %s235, 4
        %s237 = scalar_lea.vmem %s0, %s236
      $region40: #{tpu_custom_call.1} parent=35 // pred_fallthru
        _
    $region36: #{tpu_custom_call.1} parent=5 // pred_fallthru
      _
    %p238 = scmp.le.s32.totalorder 1, %s12
    %p239 = scmp.lt.s32.totalorder %s12, 5
    %p240 = pnand %p238, %p239
    %p241 = pneg %p240
    // Predicated region
    $region41: #{tpu_custom_call.1} parent=5 // pred_check
      _
    $region42: #{tpu_custom_call.1} parent=5 // pred_check_branch
      %243 = sbr.rel (%p240) target = $region44
    $region43: #{tpu_custom_call.1} parent=5 // pred_region
      %s244 = ssub.s32 %s12, 1
      %p245 = scmp.lt.s32.totalorder %s22, 1
      %s246 = scalar_select %p245, %s22, 1
      %p247 = scmp.lt.s32.totalorder %s24, 1
      %s248 = scalar_select %p247, %s24, 1
      %s249 = smul.addr %s248, 26
      %s250 = smul.addr %s246, 52
      %s251 = sadd.s32 %s249, %s250
      %s252 = smul.addr %s251, 4
      %s253 = scalar_lea.vmem %s0, %s252
      %p254 = pneg %p59
      %p255 = pneg %p56
      %p256 = pneg %p80
      %p257 = pneg %p77
      %p258 = pneg %p101
      %p259 = pneg %p98
      %p260 = pneg %p122
      %p261 = pneg %p119
      %p262 = pneg %p143
      %p263 = pneg %p140
      %p264 = pneg %p164
      %p265 = pneg %p161
      %p266 = pneg %p192
      %p267 = pneg %p189
      %p268 = scmp.lt.s32.totalorder %s22, 1
      %s269 = scalar_select %p268, %s22, 1
      %p270 = scmp.lt.s32.totalorder %s24, 1
      %s271 = scalar_select %p270, %s24, 1
      %s272 = smul.addr %s271, 5
      %s273 = smul.addr %s269, 10
      %s274 = sadd.s32 %s272, %s273
      %s275 = smul.addr %s274, 8
      %s276 = scalar_lea.vmem %s6, %s275
      %p277 = scmp.lt.s32.totalorder %s22, 1
      %s278 = scalar_select %p277, %s22, 1
      %p279 = scmp.lt.s32.totalorder %s24, 1
      %s280 = scalar_select %p279, %s24, 1
      %s281 = smul.addr %s280, 26
      %s282 = smul.addr %s278, 52
      %s283 = sadd.s32 %s281, %s282
      %s284 = smul.addr %s283, 4
      %s285 = scalar_lea.vmem %s0, %s284
      %p286 = scmp.lt.s32.totalorder %s22, 1
      %s287 = scalar_select %p286, %s22, 1
      %p288 = scmp.lt.s32.totalorder %s24, 1
      %s289 = scalar_select %p288, %s24, 1
      %s290 = smul.addr %s289, 5
      %s291 = smul.addr %s287, 10
      %s292 = sadd.s32 %s290, %s291
      %s293 = smul.addr %s292, 8
      %s294 = scalar_lea.vmem %s6, %s293
      %v296 = vld [vmem:[%s285] sm:$0xf]
      %v297 = vld [vmem:[%s285 + $0x4] sm:$0xf]
      %v298 = vld [vmem:[%s285 + $0x8] sm:$0xf]
      %v299 = vld [vmem:[%s285 + $0xc] sm:$0xf]
      %v300 = vld [vmem:[%s285 + $0x10] sm:$0xf]
      %v301 = vld [vmem:[%s285 + $0x14] sm:$0xf]
      %v302 = vld [vmem:[%s285 + $0x18] sm:$0xf]
      %v303 = vld [vmem:[%s285 + $0x1c] sm:$0xf]
      %v304 = vld [vmem:[%s285 + $0x20] sm:$0xf]
      %v305 = vld [vmem:[%s285 + $0x24] sm:$0xf]
      %v306 = vld [vmem:[%s285 + $0x28] sm:$0xf]
      %v307 = vld [vmem:[%s285 + $0x2c] sm:$0xf]
      %v308 = vld [vmem:[%s285 + $0x30] sm:$0xf]
      %v309 = vld [vmem:[%s285 + $0x34] sm:$0xf]
      %v310 = vld [vmem:[%s285 + $0x38] sm:$0xf]
      %v311 = vld [vmem:[%s285 + $0x3c] sm:$0xf]
      %v312 = vld [vmem:[%s285 + $0x40] sm:$0xf]
      %v313 = vld [vmem:[%s285 + $0x44] sm:$0xf]
      %v314 = vld [vmem:[%s285 + $0x48] sm:$0xf]
      %v315 = vld [vmem:[%s285 + $0x4c] sm:$0xf]
      %v316 = vld [vmem:[%s285 + $0x50] sm:$0xf]
      %v317 = vld [vmem:[%s285 + $0x54] sm:$0x1]
      %v318 = vld [vmem:[%s1] sm:$0xf]
      %v319 = vld [vmem:[%s1 + $0x4] sm:$0x3]
      %v320 = vld [vmem:[%s285 + $0x4] sm:$0xc]
      %v321 = vld [vmem:[%s285 + $0x54] sm:$0xf]
      %v322 = vld [vmem:[%s285 + $0x58] sm:$0x7]
      %s323 = scalar_lea.vmem %s1, 8
      %v324 = vld [vmem:[%s323] sm:$0xf]
      %v325 = vld [vmem:[%s323 + $0x4] sm:$0x3]
      %v348 = vunpack.c.l.b16 %v320
      %v349 = vunpack.c.l.b16 %v298
      %v350 = vunpack.c.l.b16 %v299
      %v351 = vunpack.c.l.b16 %v300
      %v352 = vunpack.c.l.b16 %v301
      %v353 = vunpack.c.l.b16 %v302
      %v354 = vunpack.c.l.b16 %v303
      %v355 = vunpack.c.l.b16 %v304
      %v356 = vunpack.c.l.b16 %v305
      %v357 = vunpack.c.l.b16 %v306
      %v358 = vunpack.c.l.b16 %v307
      %v359 = vunpack.c.l.b16 %v308
      %v360 = vunpack.c.l.b16 %v309
      %v361 = vunpack.c.l.b16 %v310
      %v362 = vunpack.c.l.b16 %v311
      %v363 = vunpack.c.l.b16 %v312
      %v364 = vunpack.c.l.b16 %v313
      %v365 = vunpack.c.l.b16 %v314
      %v366 = vunpack.c.l.b16 %v315
      %v367 = vunpack.c.l.b16 %v316
      %v368 = vunpack.c.l.b16 %v321
      %v369 = vunpack.c.l.b16 %v322
      %v370 = vpack.c.b16 %v349, %v348
      %v371 = vpack.c.b16 %v351, %v350
      %v372 = vpack.c.b16 %v353, %v352
      %v373 = vpack.c.b16 %v355, %v354
      %v374 = vpack.c.b16 %v357, %v356
      %v375 = vpack.c.b16 %v359, %v358
      %v376 = vpack.c.b16 %v361, %v360
      %v377 = vpack.c.b16 %v363, %v362
      %v378 = vpack.c.b16 %v365, %v364
      %v379 = vpack.c.b16 %v367, %v366
      %v380 = vpack.c.b16 %v369, %v368
      %vm381 = vsmask.f32 5376
      %v383 = vshrl.u32 %v370, 16
      %v385 = vrot.slane %v383, 2
      %v386 = vshll.u32 %v370, 16
      %v388 = vrot.slane %v386, 3
      %v389 = vor.u32 %v385, %v388
      %v391 = vshrl.u32 %v371, 16
      %v393 = vrot.slane %v391, 2
      %v394 = vshll.u32 %v371, 16
      %v396 = vrot.slane %v394, 3
      %v397 = vor.u32 %v393, %v396
      %v398 = vsel %vm381, %v389, %v397
      %v400 = vshrl.u32 %v372, 16
      %v402 = vrot.slane %v400, 2
      %v403 = vshll.u32 %v372, 16
      %v405 = vrot.slane %v403, 3
      %v406 = vor.u32 %v402, %v405
      %v407 = vsel %vm381, %v397, %v406
      %v409 = vshrl.u32 %v373, 16
      %v411 = vrot.slane %v409, 2
      %v412 = vshll.u32 %v373, 16
      %v414 = vrot.slane %v412, 3
      %v415 = vor.u32 %v411, %v414
      %v416 = vsel %vm381, %v406, %v415
      %v418 = vshrl.u32 %v374, 16
      %v420 = vrot.slane %v418, 2
      %v421 = vshll.u32 %v374, 16
      %v423 = vrot.slane %v421, 3
      %v424 = vor.u32 %v420, %v423
      %v425 = vsel %vm381, %v415, %v424
      %v427 = vshrl.u32 %v375, 16
      %v429 = vrot.slane %v427, 2
      %v430 = vshll.u32 %v375, 16
      %v432 = vrot.slane %v430, 3
      %v433 = vor.u32 %v429, %v432
      %v434 = vsel %vm381, %v424, %v433
      %v436 = vshrl.u32 %v376, 16
      %v438 = vrot.slane %v436, 2
      %v439 = vshll.u32 %v376, 16
      %v441 = vrot.slane %v439, 3
      %v442 = vor.u32 %v438, %v441
      %v443 = vsel %vm381, %v433, %v442
      %v445 = vshrl.u32 %v377, 16
      %v447 = vrot.slane %v445, 2
      %v448 = vshll.u32 %v377, 16
      %v450 = vrot.slane %v448, 3
      %v451 = vor.u32 %v447, %v450
      %v452 = vsel %vm381, %v442, %v451
      %v454 = vshrl.u32 %v378, 16
      %v456 = vrot.slane %v454, 2
      %v457 = vshll.u32 %v378, 16
      %v459 = vrot.slane %v457, 3
      %v460 = vor.u32 %v456, %v459
      %v461 = vsel %vm381, %v451, %v460
      %v463 = vshrl.u32 %v379, 16
      %v465 = vrot.slane %v463, 2
      %v466 = vshll.u32 %v379, 16
      %v468 = vrot.slane %v466, 3
      %v469 = vor.u32 %v465, %v468
      %v470 = vsel %vm381, %v460, %v469
      %v472 = vshrl.u32 %v380, 16
      %v474 = vrot.slane %v472, 2
      %v475 = vshll.u32 %v380, 16
      %v477 = vrot.slane %v475, 3
      %v478 = vor.u32 %v474, %v477
      %v479 = vsel %vm381, %v469, %v478
      %v482 = vunpack.c.l.b16 %v324
      %v483 = vunpack.c.l.b16 %v325
      %v484 = vpack.c.b16 %v483, %v482
      %vm485 = vcmask 97280
      %v487 = vsel %vm485, %v398, 0
      %v490 = vsel %vm485, %v407, 0
      %v493 = vsel %vm485, %v416, 0
      %v496 = vsel %vm485, %v425, 0
      %v499 = vsel %vm485, %v434, 0
      %v502 = vsel %vm485, %v443, 0
      %v505 = vsel %vm485, %v452, 0
      %v508 = vsel %vm485, %v461, 0
      %v511 = vsel %vm485, %v470, 0
      %v514 = vsel %vm485, %v479, 0
      %v517 = vsel %vm485, %v478, 0
      %vm519 = vcmask 1045504
      %v521 = vsel %vm519, %v484, 0
      %523 = vmatprep.subr.bf16.mxu0 0
      %524 = vmatpush1.bf16.msra.mxu0 0
      %525 = vmatprep.subr.bf16.mxu0 0
      %526 = vmatpush1.bf16.msra.mxu0 0
      %527 = vmatprep.subr.bf16.mxu0 0
      %528 = vmatpush1.bf16.msra.mxu0 0
      %529 = vmatprep.subr.bf16.mxu0 0
      %530 = vmatpush1.bf16.msra.mxu0 0
      %531 = vmatprep.subr.bf16.mxu0 0
      %532 = vmatpush1.bf16.msra.mxu0 0
      %533 = vmatprep.subr.bf16.mxu0 0
      %534 = vmatpush1.bf16.msra.mxu0 0
      %535 = vmatprep.subr.bf16.mxu0 0
      %536 = vmatpush1.bf16.msra.mxu0 0
      %537 = vmatprep.subr.bf16.mxu0 0
      %538 = vmatpush1.bf16.msra.mxu0 %v521
      %539 = vmatprep.subr.bf16.mxu0 0
      %540 = vmatpush2.bf16.msra.mxu0 0
      %541 = vmatprep.subr.bf16.mxu0 0
      %542 = vmatpush2.bf16.msra.mxu0 0
      %543 = vmatprep.subr.bf16.mxu0 0
      %544 = vmatpush2.bf16.msra.mxu0 0
      %545 = vmatprep.subr.bf16.mxu0 0
      %546 = vmatpush2.bf16.msra.mxu0 0
      %547 = vmatprep.subr.bf16.mxu0 0
      %548 = vmatpush2.bf16.msra.mxu0 0
      %549 = vmatprep.subr.bf16.mxu0 0
      %550 = vmatpush2.bf16.msra.mxu0 0
      %551 = vmatprep.subr.bf16.mxu0 0
      %552 = vmatpush2.bf16.msra.mxu0 0
      %553 = vmatprep.subr.bf16.mxu0 0
      %554 = vmatpush2.bf16.msra.mxu0 0
      %555 = vmatprep.mubr.bf16.mxu0 0
      %556 = vmatmul.mubr.bf16.gmra.mxu0 %v487
      %v557 = vpop.f32.mrf.mxu0
      %v558 = vadd.f32 0.0, %v557
      %v559 = vpop.f32.mrf.mxu0
      %v560 = vpop.f32.mrf.mxu0
      %v561 = vadd.f32 0.0, %v560
      %v562 = vpop.f32.mrf.mxu0
      %563 = vmatprep.mubr.bf16.mxu0 0
      %564 = vmatmul.mubr.bf16.gmra.mxu0 %v490
      %v565 = vpop.f32.mrf.mxu0
      %v566 = vadd.f32 0.0, %v565
      %v567 = vpop.f32.mrf.mxu0
      %v568 = vpop.f32.mrf.mxu0
      %v569 = vadd.f32 0.0, %v568
      %v570 = vpop.f32.mrf.mxu0
      %571 = vmatprep.mubr.bf16.mxu0 0
      %572 = vmatmul.mubr.bf16.gmra.mxu0 %v493
      %v573 = vpop.f32.mrf.mxu0
      %v574 = vadd.f32 0.0, %v573
      %v575 = vpop.f32.mrf.mxu0
      %v576 = vpop.f32.mrf.mxu0
      %v577 = vadd.f32 0.0, %v576
      %v578 = vpop.f32.mrf.mxu0
      %579 = vmatprep.mubr.bf16.mxu0 0
      %580 = vmatmul.mubr.bf16.gmra.mxu0 %v496
      %v581 = vpop.f32.mrf.mxu0
      %v582 = vadd.f32 0.0, %v581
      %v583 = vpop.f32.mrf.mxu0
      %v584 = vpop.f32.mrf.mxu0
      %v585 = vadd.f32 0.0, %v584
      %v586 = vpop.f32.mrf.mxu0
      %587 = vmatprep.mubr.bf16.mxu0 0
      %588 = vmatmul.mubr.bf16.gmra.mxu0 %v499
      %v589 = vpop.f32.mrf.mxu0
      %v590 = vadd.f32 0.0, %v589
      %v591 = vpop.f32.mrf.mxu0
      %v592 = vpop.f32.mrf.mxu0
      %v593 = vadd.f32 0.0, %v592
      %v594 = vpop.f32.mrf.mxu0
      %595 = vmatprep.mubr.bf16.mxu0 0
      %596 = vmatmul.mubr.bf16.gmra.mxu0 %v502
      %v597 = vpop.f32.mrf.mxu0
      %v598 = vadd.f32 0.0, %v597
      %v599 = vpop.f32.mrf.mxu0
      %v600 = vpop.f32.mrf.mxu0
      %v601 = vadd.f32 0.0, %v600
      %v602 = vpop.f32.mrf.mxu0
      %603 = vmatprep.mubr.bf16.mxu0 0
      %604 = vmatmul.mubr.bf16.gmra.mxu0 %v505
      %v605 = vpop.f32.mrf.mxu0
      %v606 = vadd.f32 0.0, %v605
      %v607 = vpop.f32.mrf.mxu0
      %v608 = vpop.f32.mrf.mxu0
      %v609 = vadd.f32 0.0, %v608
      %v610 = vpop.f32.mrf.mxu0
      %611 = vmatprep.mubr.bf16.mxu0 0
      %612 = vmatmul.mubr.bf16.gmra.mxu0 %v508
      %v613 = vpop.f32.mrf.mxu0
      %v614 = vadd.f32 0.0, %v613
      %v615 = vpop.f32.mrf.mxu0
      %v616 = vpop.f32.mrf.mxu0
      %v617 = vadd.f32 0.0, %v616
      %v618 = vpop.f32.mrf.mxu0
      %619 = vmatprep.mubr.bf16.mxu0 0
      %620 = vmatmul.mubr.bf16.gmra.mxu0 %v511
      %v621 = vpop.f32.mrf.mxu0
      %v622 = vadd.f32 0.0, %v621
      %v623 = vpop.f32.mrf.mxu0
      %v624 = vpop.f32.mrf.mxu0
      %v625 = vadd.f32 0.0, %v624
      %v626 = vpop.f32.mrf.mxu0
      %627 = vmatprep.mubr.bf16.mxu0 0
      %628 = vmatmul.mubr.bf16.gmra.mxu0 %v514
      %v629 = vpop.f32.mrf.mxu0
      %v630 = vadd.f32 0.0, %v629
      %v631 = vpop.f32.mrf.mxu0
      %v632 = vpop.f32.mrf.mxu0
      %v633 = vadd.f32 0.0, %v632
      %v634 = vpop.f32.mrf.mxu0
      %635 = vmatprep.mubr.bf16.mxu0 0
      %636 = vmatmul.mubr.bf16.gmra.mxu0 %v517
      %v637 = vpop.f32.mrf.mxu0
      %v638 = vpop.f32.mrf.mxu0
      %v639 = vpop.f32.mrf.mxu0
      %v640 = vpop.f32.mrf.mxu0
      %641 = vdwg.mxu0
      %v645 = vunpack.c.l.b16 %v296
      %v646 = vunpack.c.l.b16 %v297
      %v647 = vunpack.c.l.b16 %v317
      %v648 = vpack.c.b16 %v646, %v645
      %v649 = vpack.c.b16 %v350, %v349
      %v650 = vpack.c.b16 %v352, %v351
      %v651 = vpack.c.b16 %v354, %v353
      %v652 = vpack.c.b16 %v356, %v355
      %v653 = vpack.c.b16 %v358, %v357
      %v654 = vpack.c.b16 %v360, %v359
      %v655 = vpack.c.b16 %v362, %v361
      %v656 = vpack.c.b16 %v364, %v363
      %v657 = vpack.c.b16 %v366, %v365
      %v658 = vpack.c.b16 %v647, %v367
      %v661 = vunpack.c.l.b16 %v318
      %v662 = vunpack.c.l.b16 %v319
      %v663 = vpack.c.b16 %v662, %v661
      %v665 = vsel %vm485, %v648, 0
      %v668 = vsel %vm485, %v649, 0
      %v671 = vsel %vm485, %v650, 0
      %v674 = vsel %vm485, %v651, 0
      %v677 = vsel %vm485, %v652, 0
      %v680 = vsel %vm485, %v653, 0
      %v683 = vsel %vm485, %v654, 0
      %v686 = vsel %vm485, %v655, 0
      %v689 = vsel %vm485, %v656, 0
      %v692 = vsel %vm485, %v657, 0
      %v695 = vsel %vm485, %v658, 0
      %v698 = vsel %vm519, %v663, 0
      %700 = vmatprep.subr.bf16.mxu0 0
      %701 = vmatpush1.bf16.msra.mxu0 0
      %702 = vmatprep.subr.bf16.mxu0 0
      %703 = vmatpush1.bf16.msra.mxu0 0
      %704 = vmatprep.subr.bf16.mxu0 0
      %705 = vmatpush1.bf16.msra.mxu0 0
      %706 = vmatprep.subr.bf16.mxu0 0
      %707 = vmatpush1.bf16.msra.mxu0 0
      %708 = vmatprep.subr.bf16.mxu0 0
      %709 = vmatpush1.bf16.msra.mxu0 0
      %710 = vmatprep.subr.bf16.mxu0 0
      %711 = vmatpush1.bf16.msra.mxu0 0
      %712 = vmatprep.subr.bf16.mxu0 0
      %713 = vmatpush1.bf16.msra.mxu0 0
      %714 = vmatprep.subr.bf16.mxu0 0
      %715 = vmatpush1.bf16.msra.mxu0 %v698
      %716 = vmatprep.subr.bf16.mxu0 0
      %717 = vmatpush2.bf16.msra.mxu0 0
      %718 = vmatprep.subr.bf16.mxu0 0
      %719 = vmatpush2.bf16.msra.mxu0 0
      %720 = vmatprep.subr.bf16.mxu0 0
      %721 = vmatpush2.bf16.msra.mxu0 0
      %722 = vmatprep.subr.bf16.mxu0 0
      %723 = vmatpush2.bf16.msra.mxu0 0
      %724 = vmatprep.subr.bf16.mxu0 0
      %725 = vmatpush2.bf16.msra.mxu0 0
      %726 = vmatprep.subr.bf16.mxu0 0
      %727 = vmatpush2.bf16.msra.mxu0 0
      %728 = vmatprep.subr.bf16.mxu0 0
      %729 = vmatpush2.bf16.msra.mxu0 0
      %730 = vmatprep.subr.bf16.mxu0 0
      %731 = vmatpush2.bf16.msra.mxu0 0
      %732 = vmatprep.mubr.bf16.mxu0 0
      %733 = vmatmul.mubr.bf16.gmra.mxu0 %v665
      %v734 = vpop.f32.mrf.mxu0
      %v735 = vadd.f32 %v558, %v734
      %v736 = vpop.f32.mrf.mxu0
      %v737 = vpop.f32.mrf.mxu0
      %v738 = vadd.f32 %v561, %v737
      %v739 = vpop.f32.mrf.mxu0
      %740 = vmatprep.mubr.bf16.mxu0 0
      %741 = vmatmul.mubr.bf16.gmra.mxu0 %v668
      %v742 = vpop.f32.mrf.mxu0
      %v743 = vadd.f32 %v566, %v742
      %v744 = vpop.f32.mrf.mxu0
      %v745 = vpop.f32.mrf.mxu0
      %v746 = vadd.f32 %v569, %v745
      %v747 = vpop.f32.mrf.mxu0
      %748 = vmatprep.mubr.bf16.mxu0 0
      %749 = vmatmul.mubr.bf16.gmra.mxu0 %v671
      %v750 = vpop.f32.mrf.mxu0
      %v751 = vadd.f32 %v574, %v750
      %v752 = vpop.f32.mrf.mxu0
      %v753 = vpop.f32.mrf.mxu0
      %v754 = vadd.f32 %v577, %v753
      %v755 = vpop.f32.mrf.mxu0
      %756 = vmatprep.mubr.bf16.mxu0 0
      %757 = vmatmul.mubr.bf16.gmra.mxu0 %v674
      %v758 = vpop.f32.mrf.mxu0
      %v759 = vadd.f32 %v582, %v758
      %v760 = vpop.f32.mrf.mxu0
      %v761 = vpop.f32.mrf.mxu0
      %v762 = vadd.f32 %v585, %v761
      %v763 = vpop.f32.mrf.mxu0
      %764 = vmatprep.mubr.bf16.mxu0 0
      %765 = vmatmul.mubr.bf16.gmra.mxu0 %v677
      %v766 = vpop.f32.mrf.mxu0
      %v767 = vadd.f32 %v590, %v766
      %v768 = vpop.f32.mrf.mxu0
      %v769 = vpop.f32.mrf.mxu0
      %v770 = vadd.f32 %v593, %v769
      %v771 = vpop.f32.mrf.mxu0
      %772 = vmatprep.mubr.bf16.mxu0 0
      %773 = vmatmul.mubr.bf16.gmra.mxu0 %v680
      %v774 = vpop.f32.mrf.mxu0
      %v775 = vadd.f32 %v598, %v774
      %v776 = vpop.f32.mrf.mxu0
      %v777 = vpop.f32.mrf.mxu0
      %v778 = vadd.f32 %v601, %v777
      %v779 = vpop.f32.mrf.mxu0
      %780 = vmatprep.mubr.bf16.mxu0 0
      %781 = vmatmul.mubr.bf16.gmra.mxu0 %v683
      %v782 = vpop.f32.mrf.mxu0
      %v783 = vadd.f32 %v606, %v782
      %v784 = vpop.f32.mrf.mxu0
      %v785 = vpop.f32.mrf.mxu0
      %v786 = vadd.f32 %v609, %v785
      %v787 = vpop.f32.mrf.mxu0
      %788 = vmatprep.mubr.bf16.mxu0 0
      %789 = vmatmul.mubr.bf16.gmra.mxu0 %v686
      %v790 = vpop.f32.mrf.mxu0
      %v791 = vadd.f32 %v614, %v790
      %v792 = vpop.f32.mrf.mxu0
      %v793 = vpop.f32.mrf.mxu0
      %v794 = vadd.f32 %v617, %v793
      %v795 = vpop.f32.mrf.mxu0
      %796 = vmatprep.mubr.bf16.mxu0 0
      %797 = vmatmul.mubr.bf16.gmra.mxu0 %v689
      %v798 = vpop.f32.mrf.mxu0
      %v799 = vadd.f32 %v622, %v798
      %v800 = vpop.f32.mrf.mxu0
      %v801 = vpop.f32.mrf.mxu0
      %v802 = vadd.f32 %v625, %v801
      %v803 = vpop.f32.mrf.mxu0
      %804 = vmatprep.mubr.bf16.mxu0 0
      %805 = vmatmul.mubr.bf16.gmra.mxu0 %v692
      %v806 = vpop.f32.mrf.mxu0
      %v807 = vadd.f32 %v630, %v806
      %v808 = vpop.f32.mrf.mxu0
      %v809 = vpop.f32.mrf.mxu0
      %v810 = vadd.f32 %v633, %v809
      %v811 = vpop.f32.mrf.mxu0
      %812 = vmatprep.mubr.bf16.mxu0 0
      %813 = vmatmul.mubr.bf16.gmra.mxu0 %v695
      %v814 = vpop.f32.mrf.mxu0
      %v815 = vpop.f32.mrf.mxu0
      %v816 = vpop.f32.mrf.mxu0
      %v817 = vpop.f32.mrf.mxu0
      %818 = vdwg.mxu0
      %v819 = vld [vmem:[%s285 + $0xc] sm:$0xe]
      %v820 = vld [vmem:[%s285 + $0x10] sm:$0xf]
      %v821 = vld [vmem:[%s285 + $0x14] sm:$0xf]
      %v822 = vld [vmem:[%s285 + $0x18] sm:$0xf]
      %v823 = vld [vmem:[%s285 + $0x1c] sm:$0xf]
      %v824 = vld [vmem:[%s285 + $0x20] sm:$0xf]
      %v825 = vld [vmem:[%s285 + $0x24] sm:$0xf]
      %v826 = vld [vmem:[%s285 + $0x28] sm:$0xf]
      %v827 = vld [vmem:[%s285 + $0x2c] sm:$0xf]
      %v828 = vld [vmem:[%s285 + $0x30] sm:$0xf]
      %v829 = vld [vmem:[%s285 + $0x34] sm:$0xf]
      %v830 = vld [vmem:[%s285 + $0x38] sm:$0xf]
      %v831 = vld [vmem:[%s285 + $0x3c] sm:$0xf]
      %v832 = vld [vmem:[%s285 + $0x40] sm:$0xf]
      %v833 = vld [vmem:[%s285 + $0x44] sm:$0xf]
      %v834 = vld [vmem:[%s285 + $0x48] sm:$0xf]
      %v835 = vld [vmem:[%s285 + $0x4c] sm:$0xf]
      %v836 = vld [vmem:[%s285 + $0x50] sm:$0xf]
      %v837 = vld [vmem:[%s285 + $0x54] sm:$0xf]
      %v838 = vld [vmem:[%s285 + $0x58] sm:$0xf]
      %v839 = vld [vmem:[%s285 + $0x5c] sm:$0xf]
      %v840 = vld [vmem:[%s285 + $0x60] sm:$0x3]
      %s841 = scalar_lea.vmem %s1, 16
      %v842 = vld [vmem:[%s841] sm:$0xf]
      %v843 = vld [vmem:[%s841 + $0x4] sm:$0x3]
      %v866 = vunpack.c.l.b16 %v819
      %v867 = vunpack.c.l.b16 %v820
      %v868 = vunpack.c.l.b16 %v821
      %v869 = vunpack.c.l.b16 %v822
      %v870 = vunpack.c.l.b16 %v823
      %v871 = vunpack.c.l.b16 %v824
      %v872 = vunpack.c.l.b16 %v825
      %v873 = vunpack.c.l.b16 %v826
      %v874 = vunpack.c.l.b16 %v827
      %v875 = vunpack.c.l.b16 %v828
      %v876 = vunpack.c.l.b16 %v829
      %v877 = vunpack.c.l.b16 %v830
      %v878 = vunpack.c.l.b16 %v831
      %v879 = vunpack.c.l.b16 %v832
      %v880 = vunpack.c.l.b16 %v833
      %v881 = vunpack.c.l.b16 %v834
      %v882 = vunpack.c.l.b16 %v835
      %v883 = vunpack.c.l.b16 %v836
      %v884 = vunpack.c.l.b16 %v837
      %v885 = vunpack.c.l.b16 %v838
      %v886 = vunpack.c.l.b16 %v839
      %v887 = vunpack.c.l.b16 %v840
      %v888 = vpack.c.b16 %v867, %v866
      %v889 = vpack.c.b16 %v869, %v868
      %v890 = vpack.c.b16 %v871, %v870
      %v891 = vpack.c.b16 %v873, %v872
      %v892 = vpack.c.b16 %v875, %v874
      %v893 = vpack.c.b16 %v877, %v876
      %v894 = vpack.c.b16 %v879, %v878
      %v895 = vpack.c.b16 %v881, %v880
      %v896 = vpack.c.b16 %v883, %v882
      %v897 = vpack.c.b16 %v885, %v884
      %v898 = vpack.c.b16 %v887, %v886
      %vm899 = vcmask 1046528
      %v900 = vrot.slane %v888, 1
      %v901 = vrot.slane %v889, 1
      %v902 = vsel %vm899, %v900, %v901
      %v903 = vrot.slane %v890, 1
      %v904 = vsel %vm899, %v901, %v903
      %v905 = vrot.slane %v891, 1
      %v906 = vsel %vm899, %v903, %v905
      %v907 = vrot.slane %v892, 1
      %v908 = vsel %vm899, %v905, %v907
      %v909 = vrot.slane %v893, 1
      %v910 = vsel %vm899, %v907, %v909
      %v911 = vrot.slane %v894, 1
      %v912 = vsel %vm899, %v909, %v911
      %v913 = vrot.slane %v895, 1
      %v914 = vsel %vm899, %v911, %v913
      %v915 = vrot.slane %v896, 1
      %v916 = vsel %vm899, %v913, %v915
      %v917 = vrot.slane %v897, 1
      %v918 = vsel %vm899, %v915, %v917
      %v919 = vrot.slane %v898, 1
      %v920 = vsel %vm899, %v917, %v919
      %v923 = vunpack.c.l.b16 %v842
      %v924 = vunpack.c.l.b16 %v843
      %v925 = vpack.c.b16 %v924, %v923
      %v927 = vsel %vm485, %v902, 0
      %v930 = vsel %vm485, %v904, 0
      %v933 = vsel %vm485, %v906, 0
      %v936 = vsel %vm485, %v908, 0
      %v939 = vsel %vm485, %v910, 0
      %v942 = vsel %vm485, %v912, 0
      %v945 = vsel %vm485, %v914, 0
      %v948 = vsel %vm485, %v916, 0
      %v951 = vsel %vm485, %v918, 0
      %v954 = vsel %vm485, %v920, 0
      %v957 = vsel %vm485, %v919, 0
      %v960 = vsel %vm519, %v925, 0
      %962 = vmatprep.subr.bf16.mxu0 0
      %963 = vmatpush1.bf16.msra.mxu0 0
      %964 = vmatprep.subr.bf16.mxu0 0
      %965 = vmatpush1.bf16.msra.mxu0 0
      %966 = vmatprep.subr.bf16.mxu0 0
      %967 = vmatpush1.bf16.msra.mxu0 0
      %968 = vmatprep.subr.bf16.mxu0 0
      %969 = vmatpush1.bf16.msra.mxu0 0
      %970 = vmatprep.subr.bf16.mxu0 0
      %971 = vmatpush1.bf16.msra.mxu0 0
      %972 = vmatprep.subr.bf16.mxu0 0
      %973 = vmatpush1.bf16.msra.mxu0 0
      %974 = vmatprep.subr.bf16.mxu0 0
      %975 = vmatpush1.bf16.msra.mxu0 0
      %976 = vmatprep.subr.bf16.mxu0 0
      %977 = vmatpush1.bf16.msra.mxu0 %v960
      %978 = vmatprep.subr.bf16.mxu0 0
      %979 = vmatpush2.bf16.msra.mxu0 0
      %980 = vmatprep.subr.bf16.mxu0 0
      %981 = vmatpush2.bf16.msra.mxu0 0
      %982 = vmatprep.subr.bf16.mxu0 0
      %983 = vmatpush2.bf16.msra.mxu0 0
      %984 = vmatprep.subr.bf16.mxu0 0
      %985 = vmatpush2.bf16.msra.mxu0 0
      %986 = vmatprep.subr.bf16.mxu0 0
      %987 = vmatpush2.bf16.msra.mxu0 0
      %988 = vmatprep.subr.bf16.mxu0 0
      %989 = vmatpush2.bf16.msra.mxu0 0
      %990 = vmatprep.subr.bf16.mxu0 0
      %991 = vmatpush2.bf16.msra.mxu0 0
      %992 = vmatprep.subr.bf16.mxu0 0
      %993 = vmatpush2.bf16.msra.mxu0 0
      %994 = vmatprep.mubr.bf16.mxu0 0
      %995 = vmatmul.mubr.bf16.gmra.mxu0 %v927
      %v996 = vpop.f32.mrf.mxu0
      %v997 = vadd.f32 0.0, %v996
      %v998 = vpop.f32.mrf.mxu0
      %v999 = vpop.f32.mrf.mxu0
      %v1000 = vadd.f32 0.0, %v999
      %v1001 = vpop.f32.mrf.mxu0
      %1002 = vmatprep.mubr.bf16.mxu0 0
      %1003 = vmatmul.mubr.bf16.gmra.mxu0 %v930
      %v1004 = vpop.f32.mrf.mxu0
      %v1005 = vadd.f32 0.0, %v1004
      %v1006 = vpop.f32.mrf.mxu0
      %v1007 = vpop.f32.mrf.mxu0
      %v1008 = vadd.f32 0.0, %v1007
      %v1009 = vpop.f32.mrf.mxu0
      %1010 = vmatprep.mubr.bf16.mxu0 0
      %1011 = vmatmul.mubr.bf16.gmra.mxu0 %v933
      %v1012 = vpop.f32.mrf.mxu0
      %v1013 = vadd.f32 0.0, %v1012
      %v1014 = vpop.f32.mrf.mxu0
      %v1015 = vpop.f32.mrf.mxu0
      %v1016 = vadd.f32 0.0, %v1015
      %v1017 = vpop.f32.mrf.mxu0
      %1018 = vmatprep.mubr.bf16.mxu0 0
      %1019 = vmatmul.mubr.bf16.gmra.mxu0 %v936
      %v1020 = vpop.f32.mrf.mxu0
      %v1021 = vadd.f32 0.0, %v1020
      %v1022 = vpop.f32.mrf.mxu0
      %v1023 = vpop.f32.mrf.mxu0
      %v1024 = vadd.f32 0.0, %v1023
      %v1025 = vpop.f32.mrf.mxu0
      %1026 = vmatprep.mubr.bf16.mxu0 0
      %1027 = vmatmul.mubr.bf16.gmra.mxu0 %v939
      %v1028 = vpop.f32.mrf.mxu0
      %v1029 = vadd.f32 0.0, %v1028
      %v1030 = vpop.f32.mrf.mxu0
      %v1031 = vpop.f32.mrf.mxu0
      %v1032 = vadd.f32 0.0, %v1031
      %v1033 = vpop.f32.mrf.mxu0
      %1034 = vmatprep.mubr.bf16.mxu0 0
      %1035 = vmatmul.mubr.bf16.gmra.mxu0 %v942
      %v1036 = vpop.f32.mrf.mxu0
      %v1037 = vadd.f32 0.0, %v1036
      %v1038 = vpop.f32.mrf.mxu0
      %v1039 = vpop.f32.mrf.mxu0
      %v1040 = vadd.f32 0.0, %v1039
      %v1041 = vpop.f32.mrf.mxu0
      %1042 = vmatprep.mubr.bf16.mxu0 0
      %1043 = vmatmul.mubr.bf16.gmra.mxu0 %v945
      %v1044 = vpop.f32.mrf.mxu0
      %v1045 = vadd.f32 0.0, %v1044
      %v1046 = vpop.f32.mrf.mxu0
      %v1047 = vpop.f32.mrf.mxu0
      %v1048 = vadd.f32 0.0, %v1047
      %v1049 = vpop.f32.mrf.mxu0
      %1050 = vmatprep.mubr.bf16.mxu0 0
      %1051 = vmatmul.mubr.bf16.gmra.mxu0 %v948
      %v1052 = vpop.f32.mrf.mxu0
      %v1053 = vadd.f32 0.0, %v1052
      %v1054 = vpop.f32.mrf.mxu0
      %v1055 = vpop.f32.mrf.mxu0
      %v1056 = vadd.f32 0.0, %v1055
      %v1057 = vpop.f32.mrf.mxu0
      %1058 = vmatprep.mubr.bf16.mxu0 0
      %1059 = vmatmul.mubr.bf16.gmra.mxu0 %v951
      %v1060 = vpop.f32.mrf.mxu0
      %v1061 = vadd.f32 0.0, %v1060
      %v1062 = vpop.f32.mrf.mxu0
      %v1063 = vpop.f32.mrf.mxu0
      %v1064 = vadd.f32 0.0, %v1063
      %v1065 = vpop.f32.mrf.mxu0
      %1066 = vmatprep.mubr.bf16.mxu0 0
      %1067 = vmatmul.mubr.bf16.gmra.mxu0 %v954
      %v1068 = vpop.f32.mrf.mxu0
      %v1069 = vadd.f32 0.0, %v1068
      %v1070 = vpop.f32.mrf.mxu0
      %v1071 = vpop.f32.mrf.mxu0
      %v1072 = vadd.f32 0.0, %v1071
      %v1073 = vpop.f32.mrf.mxu0
      %1074 = vmatprep.mubr.bf16.mxu0 0
      %1075 = vmatmul.mubr.bf16.gmra.mxu0 %v957
      %v1076 = vpop.f32.mrf.mxu0
      %v1077 = vpop.f32.mrf.mxu0
      %v1078 = vpop.f32.mrf.mxu0
      %v1079 = vpop.f32.mrf.mxu0
      %1080 = vdwg.mxu0
      %v1081 = vadd.f32 %v735, %v997
      %v1082 = vadd.f32 %v738, %v1000
      %v1083 = vadd.f32 %v743, %v1005
      %v1084 = vadd.f32 %v746, %v1008
      %v1085 = vadd.f32 %v751, %v1013
      %v1086 = vadd.f32 %v754, %v1016
      %v1087 = vadd.f32 %v759, %v1021
      %v1088 = vadd.f32 %v762, %v1024
      %v1089 = vadd.f32 %v767, %v1029
      %v1090 = vadd.f32 %v770, %v1032
      %v1091 = vadd.f32 %v775, %v1037
      %v1092 = vadd.f32 %v778, %v1040
      %v1093 = vadd.f32 %v783, %v1045
      %v1094 = vadd.f32 %v786, %v1048
      %v1095 = vadd.f32 %v791, %v1053
      %v1096 = vadd.f32 %v794, %v1056
      %v1097 = vadd.f32 %v799, %v1061
      %v1098 = vadd.f32 %v802, %v1064
      %v1099 = vadd.f32 %v807, %v1069
      %v1100 = vadd.f32 %v810, %v1072
      %v1101 = vld [vmem:[%s285 + $0x10] sm:$0x8]
      %v1102 = vld [vmem:[%s285 + $0x14] sm:$0xf]
      %v1103 = vld [vmem:[%s285 + $0x18] sm:$0xf]
      %v1104 = vld [vmem:[%s285 + $0x1c] sm:$0xf]
      %v1105 = vld [vmem:[%s285 + $0x20] sm:$0xf]
      %v1106 = vld [vmem:[%s285 + $0x24] sm:$0xf]
      %v1107 = vld [vmem:[%s285 + $0x28] sm:$0xf]
      %v1108 = vld [vmem:[%s285 + $0x2c] sm:$0xf]
      %v1109 = vld [vmem:[%s285 + $0x30] sm:$0xf]
      %v1110 = vld [vmem:[%s285 + $0x34] sm:$0xf]
      %v1111 = vld [vmem:[%s285 + $0x38] sm:$0xf]
      %v1112 = vld [vmem:[%s285 + $0x3c] sm:$0xf]
      %v1113 = vld [vmem:[%s285 + $0x40] sm:$0xf]
      %v1114 = vld [vmem:[%s285 + $0x44] sm:$0xf]
      %v1115 = vld [vmem:[%s285 + $0x48] sm:$0xf]
      %v1116 = vld [vmem:[%s285 + $0x4c] sm:$0xf]
      %v1117 = vld [vmem:[%s285 + $0x50] sm:$0xf]
      %v1118 = vld [vmem:[%s285 + $0x54] sm:$0xf]
      %v1119 = vld [vmem:[%s285 + $0x58] sm:$0xf]
      %v1120 = vld [vmem:[%s285 + $0x5c] sm:$0xf]
      %v1121 = vld [vmem:[%s285 + $0x60] sm:$0xf]
      %v1122 = vld [vmem:[%s285 + $0x64] sm:$0xf]
      %s1123 = scalar_lea.vmem %s1, 24
      %v1124 = vld [vmem:[%s1123] sm:$0xf]
      %v1125 = vld [vmem:[%s1123 + $0x4] sm:$0x3]
      %v1148 = vunpack.c.l.b16 %v1101
      %v1149 = vunpack.c.l.b16 %v1102
      %v1150 = vunpack.c.l.b16 %v1103
      %v1151 = vunpack.c.l.b16 %v1104
      %v1152 = vunpack.c.l.b16 %v1105
      %v1153 = vunpack.c.l.b16 %v1106
      %v1154 = vunpack.c.l.b16 %v1107
      %v1155 = vunpack.c.l.b16 %v1108
      %v1156 = vunpack.c.l.b16 %v1109
      %v1157 = vunpack.c.l.b16 %v1110
      %v1158 = vunpack.c.l.b16 %v1111
      %v1159 = vunpack.c.l.b16 %v1112
      %v1160 = vunpack.c.l.b16 %v1113
      %v1161 = vunpack.c.l.b16 %v1114
      %v1162 = vunpack.c.l.b16 %v1115
      %v1163 = vunpack.c.l.b16 %v1116
      %v1164 = vunpack.c.l.b16 %v1117
      %v1165 = vunpack.c.l.b16 %v1118
      %v1166 = vunpack.c.l.b16 %v1119
      %v1167 = vunpack.c.l.b16 %v1120
      %v1168 = vunpack.c.l.b16 %v1121
      %v1169 = vunpack.c.l.b16 %v1122
      %v1170 = vpack.c.b16 %v1149, %v1148
      %v1171 = vpack.c.b16 %v1151, %v1150
      %v1172 = vpack.c.b16 %v1153, %v1152
      %v1173 = vpack.c.b16 %v1155, %v1154
      %v1174 = vpack.c.b16 %v1157, %v1156
      %v1175 = vpack.c.b16 %v1159, %v1158
      %v1176 = vpack.c.b16 %v1161, %v1160
      %v1177 = vpack.c.b16 %v1163, %v1162
      %v1178 = vpack.c.b16 %v1165, %v1164
      %v1179 = vpack.c.b16 %v1167, %v1166
      %v1180 = vpack.c.b16 %v1169, %v1168
      %vm1181 = vsmask.f32 4352
      %v1183 = vshrl.u32 %v1170, 16
      %v1185 = vrot.slane %v1183, 3
      %v1186 = vshll.u32 %v1170, 16
      %v1188 = vrot.slane %v1186, 4
      %v1189 = vor.u32 %v1185, %v1188
      %v1191 = vshrl.u32 %v1171, 16
      %v1193 = vrot.slane %v1191, 3
      %v1194 = vshll.u32 %v1171, 16
      %v1196 = vrot.slane %v1194, 4
      %v1197 = vor.u32 %v1193, %v1196
      %v1198 = vsel %vm1181, %v1189, %v1197
      %v1200 = vshrl.u32 %v1172, 16
      %v1202 = vrot.slane %v1200, 3
      %v1203 = vshll.u32 %v1172, 16
      %v1205 = vrot.slane %v1203, 4
      %v1206 = vor.u32 %v1202, %v1205
      %v1207 = vsel %vm1181, %v1197, %v1206
      %v1209 = vshrl.u32 %v1173, 16
      %v1211 = vrot.slane %v1209, 3
      %v1212 = vshll.u32 %v1173, 16
      %v1214 = vrot.slane %v1212, 4
      %v1215 = vor.u32 %v1211, %v1214
      %v1216 = vsel %vm1181, %v1206, %v1215
      %v1218 = vshrl.u32 %v1174, 16
      %v1220 = vrot.slane %v1218, 3
      %v1221 = vshll.u32 %v1174, 16
      %v1223 = vrot.slane %v1221, 4
      %v1224 = vor.u32 %v1220, %v1223
      %v1225 = vsel %vm1181, %v1215, %v1224
      %v1227 = vshrl.u32 %v1175, 16
      %v1229 = vrot.slane %v1227, 3
      %v1230 = vshll.u32 %v1175, 16
      %v1232 = vrot.slane %v1230, 4
      %v1233 = vor.u32 %v1229, %v1232
      %v1234 = vsel %vm1181, %v1224, %v1233
      %v1236 = vshrl.u32 %v1176, 16
      %v1238 = vrot.slane %v1236, 3
      %v1239 = vshll.u32 %v1176, 16
      %v1241 = vrot.slane %v1239, 4
      %v1242 = vor.u32 %v1238, %v1241
      %v1243 = vsel %vm1181, %v1233, %v1242
      %v1245 = vshrl.u32 %v1177, 16
      %v1247 = vrot.slane %v1245, 3
      %v1248 = vshll.u32 %v1177, 16
      %v1250 = vrot.slane %v1248, 4
      %v1251 = vor.u32 %v1247, %v1250
      %v1252 = vsel %vm1181, %v1242, %v1251
      %v1254 = vshrl.u32 %v1178, 16
      %v1256 = vrot.slane %v1254, 3
      %v1257 = vshll.u32 %v1178, 16
      %v1259 = vrot.slane %v1257, 4
      %v1260 = vor.u32 %v1256, %v1259
      %v1261 = vsel %vm1181, %v1251, %v1260
      %v1263 = vshrl.u32 %v1179, 16
      %v1265 = vrot.slane %v1263, 3
      %v1266 = vshll.u32 %v1179, 16
      %v1268 = vrot.slane %v1266, 4
      %v1269 = vor.u32 %v1265, %v1268
      %v1270 = vsel %vm1181, %v1260, %v1269
      %v1272 = vshrl.u32 %v1180, 16
      %v1274 = vrot.slane %v1272, 3
      %v1275 = vshll.u32 %v1180, 16
      %v1277 = vrot.slane %v1275, 4
      %v1278 = vor.u32 %v1274, %v1277
      %v1279 = vsel %vm1181, %v1269, %v1278
      %v1282 = vunpack.c.l.b16 %v1124
      %v1283 = vunpack.c.l.b16 %v1125
      %v1284 = vpack.c.b16 %v1283, %v1282
      %v1286 = vsel %vm485, %v1198, 0
      %v1289 = vsel %vm485, %v1207, 0
      %v1292 = vsel %vm485, %v1216, 0
      %v1295 = vsel %vm485, %v1225, 0
      %v1298 = vsel %vm485, %v1234, 0
      %v1301 = vsel %vm485, %v1243, 0
      %v1304 = vsel %vm485, %v1252, 0
      %v1307 = vsel %vm485, %v1261, 0
      %v1310 = vsel %vm485, %v1270, 0
      %v1313 = vsel %vm485, %v1279, 0
      %v1316 = vsel %vm485, %v1278, 0
      %v1319 = vsel %vm519, %v1284, 0
      %1321 = vmatprep.subr.bf16.mxu0 0
      %1322 = vmatpush1.bf16.msra.mxu0 0
      %1323 = vmatprep.subr.bf16.mxu0 0
      %1324 = vmatpush1.bf16.msra.mxu0 0
      %1325 = vmatprep.subr.bf16.mxu0 0
      %1326 = vmatpush1.bf16.msra.mxu0 0
      %1327 = vmatprep.subr.bf16.mxu0 0
      %1328 = vmatpush1.bf16.msra.mxu0 0
      %1329 = vmatprep.subr.bf16.mxu0 0
      %1330 = vmatpush1.bf16.msra.mxu0 0
      %1331 = vmatprep.subr.bf16.mxu0 0
      %1332 = vmatpush1.bf16.msra.mxu0 0
      %1333 = vmatprep.subr.bf16.mxu0 0
      %1334 = vmatpush1.bf16.msra.mxu0 0
      %1335 = vmatprep.subr.bf16.mxu0 0
      %1336 = vmatpush1.bf16.msra.mxu0 %v1319
      %1337 = vmatprep.subr.bf16.mxu0 0
      %1338 = vmatpush2.bf16.msra.mxu0 0
      %1339 = vmatprep.subr.bf16.mxu0 0
      %1340 = vmatpush2.bf16.msra.mxu0 0
      %1341 = vmatprep.subr.bf16.mxu0 0
      %1342 = vmatpush2.bf16.msra.mxu0 0
      %1343 = vmatprep.subr.bf16.mxu0 0
      %1344 = vmatpush2.bf16.msra.mxu0 0
      %1345 = vmatprep.subr.bf16.mxu0 0
      %1346 = vmatpush2.bf16.msra.mxu0 0
      %1347 = vmatprep.subr.bf16.mxu0 0
      %1348 = vmatpush2.bf16.msra.mxu0 0
      %1349 = vmatprep.subr.bf16.mxu0 0
      %1350 = vmatpush2.bf16.msra.mxu0 0
      %1351 = vmatprep.subr.bf16.mxu0 0
      %1352 = vmatpush2.bf16.msra.mxu0 0
      %1353 = vmatprep.mubr.bf16.mxu0 0
      %1354 = vmatmul.mubr.bf16.gmra.mxu0 %v1286
      %v1355 = vpop.f32.mrf.mxu0
      %v1356 = vadd.f32 0.0, %v1355
      %v1357 = vpop.f32.mrf.mxu0
      %v1358 = vpop.f32.mrf.mxu0
      %v1359 = vadd.f32 0.0, %v1358
      %v1360 = vpop.f32.mrf.mxu0
      %1361 = vmatprep.mubr.bf16.mxu0 0
      %1362 = vmatmul.mubr.bf16.gmra.mxu0 %v1289
      %v1363 = vpop.f32.mrf.mxu0
      %v1364 = vadd.f32 0.0, %v1363
      %v1365 = vpop.f32.mrf.mxu0
      %v1366 = vpop.f32.mrf.mxu0
      %v1367 = vadd.f32 0.0, %v1366
      %v1368 = vpop.f32.mrf.mxu0
      %1369 = vmatprep.mubr.bf16.mxu0 0
      %1370 = vmatmul.mubr.bf16.gmra.mxu0 %v1292
      %v1371 = vpop.f32.mrf.mxu0
      %v1372 = vadd.f32 0.0, %v1371
      %v1373 = vpop.f32.mrf.mxu0
      %v1374 = vpop.f32.mrf.mxu0
      %v1375 = vadd.f32 0.0, %v1374
      %v1376 = vpop.f32.mrf.mxu0
      %1377 = vmatprep.mubr.bf16.mxu0 0
      %1378 = vmatmul.mubr.bf16.gmra.mxu0 %v1295
      %v1379 = vpop.f32.mrf.mxu0
      %v1380 = vadd.f32 0.0, %v1379
      %v1381 = vpop.f32.mrf.mxu0
      %v1382 = vpop.f32.mrf.mxu0
      %v1383 = vadd.f32 0.0, %v1382
      %v1384 = vpop.f32.mrf.mxu0
      %1385 = vmatprep.mubr.bf16.mxu0 0
      %1386 = vmatmul.mubr.bf16.gmra.mxu0 %v1298
      %v1387 = vpop.f32.mrf.mxu0
      %v1388 = vadd.f32 0.0, %v1387
      %v1389 = vpop.f32.mrf.mxu0
      %v1390 = vpop.f32.mrf.mxu0
      %v1391 = vadd.f32 0.0, %v1390
      %v1392 = vpop.f32.mrf.mxu0
      %1393 = vmatprep.mubr.bf16.mxu0 0
      %1394 = vmatmul.mubr.bf16.gmra.mxu0 %v1301
      %v1395 = vpop.f32.mrf.mxu0
      %v1396 = vadd.f32 0.0, %v1395
      %v1397 = vpop.f32.mrf.mxu0
      %v1398 = vpop.f32.mrf.mxu0
      %v1399 = vadd.f32 0.0, %v1398
      %v1400 = vpop.f32.mrf.mxu0
      %1401 = vmatprep.mubr.bf16.mxu0 0
      %1402 = vmatmul.mubr.bf16.gmra.mxu0 %v1304
      %v1403 = vpop.f32.mrf.mxu0
      %v1404 = vadd.f32 0.0, %v1403
      %v1405 = vpop.f32.mrf.mxu0
      %v1406 = vpop.f32.mrf.mxu0
      %v1407 = vadd.f32 0.0, %v1406
      %v1408 = vpop.f32.mrf.mxu0
      %1409 = vmatprep.mubr.bf16.mxu0 0
      %1410 = vmatmul.mubr.bf16.gmra.mxu0 %v1307
      %v1411 = vpop.f32.mrf.mxu0
      %v1412 = vadd.f32 0.0, %v1411
      %v1413 = vpop.f32.mrf.mxu0
      %v1414 = vpop.f32.mrf.mxu0
      %v1415 = vadd.f32 0.0, %v1414
      %v1416 = vpop.f32.mrf.mxu0
      %1417 = vmatprep.mubr.bf16.mxu0 0
      %1418 = vmatmul.mubr.bf16.gmra.mxu0 %v1310
      %v1419 = vpop.f32.mrf.mxu0
      %v1420 = vadd.f32 0.0, %v1419
      %v1421 = vpop.f32.mrf.mxu0
      %v1422 = vpop.f32.mrf.mxu0
      %v1423 = vadd.f32 0.0, %v1422
      %v1424 = vpop.f32.mrf.mxu0
      %1425 = vmatprep.mubr.bf16.mxu0 0
      %1426 = vmatmul.mubr.bf16.gmra.mxu0 %v1313
      %v1427 = vpop.f32.mrf.mxu0
      %v1428 = vadd.f32 0.0, %v1427
      %v1429 = vpop.f32.mrf.mxu0
      %v1430 = vpop.f32.mrf.mxu0
      %v1431 = vadd.f32 0.0, %v1430
      %v1432 = vpop.f32.mrf.mxu0
      %1433 = vmatprep.mubr.bf16.mxu0 0
      %1434 = vmatmul.mubr.bf16.gmra.mxu0 %v1316
      %v1435 = vpop.f32.mrf.mxu0
      %v1436 = vpop.f32.mrf.mxu0
      %v1437 = vpop.f32.mrf.mxu0
      %v1438 = vpop.f32.mrf.mxu0
      %1439 = vdwg.mxu0
      %v1440 = vadd.f32 %v1081, %v1356
      %v1441 = vadd.f32 %v1082, %v1359
      %v1442 = vadd.f32 %v1083, %v1364
      %v1443 = vadd.f32 %v1084, %v1367
      %v1444 = vadd.f32 %v1085, %v1372
      %v1445 = vadd.f32 %v1086, %v1375
      %v1446 = vadd.f32 %v1087, %v1380
      %v1447 = vadd.f32 %v1088, %v1383
      %v1448 = vadd.f32 %v1089, %v1388
      %v1449 = vadd.f32 %v1090, %v1391
      %v1450 = vadd.f32 %v1091, %v1396
      %v1451 = vadd.f32 %v1092, %v1399
      %v1452 = vadd.f32 %v1093, %v1404
      %v1453 = vadd.f32 %v1094, %v1407
      %v1454 = vadd.f32 %v1095, %v1412
      %v1455 = vadd.f32 %v1096, %v1415
      %v1456 = vadd.f32 %v1097, %v1420
      %v1457 = vadd.f32 %v1098, %v1423
      %v1458 = vadd.f32 %v1099, %v1428
      %v1459 = vadd.f32 %v1100, %v1431
      %v1460 = vld [vmem:[%s2] sm:$0x1]
      %v1462 = vlaneseq
      %v1463 = vshrl.u32 %v1462, 7
      %v1464 = vsub.s32 0, %v1463
      %v1465 = vrot.slane %v1460, %v1464
      %v1467 = vadd.f32 %v1440, %v1465
      %v1468 = vadd.f32 %v1441, %v1465
      %v1469 = vadd.f32 %v1442, %v1465
      %v1470 = vadd.f32 %v1443, %v1465
      %v1471 = vadd.f32 %v1444, %v1465
      %v1472 = vadd.f32 %v1445, %v1465
      %v1473 = vadd.f32 %v1446, %v1465
      %v1474 = vadd.f32 %v1447, %v1465
      %v1475 = vadd.f32 %v1448, %v1465
      %v1476 = vadd.f32 %v1449, %v1465
      %v1477 = vadd.f32 %v1450, %v1465
      %v1478 = vadd.f32 %v1451, %v1465
      %v1479 = vadd.f32 %v1452, %v1465
      %v1480 = vadd.f32 %v1453, %v1465
      %v1481 = vadd.f32 %v1454, %v1465
      %v1482 = vadd.f32 %v1455, %v1465
      %v1483 = vadd.f32 %v1456, %v1465
      %v1484 = vadd.f32 %v1457, %v1465
      %v1485 = vadd.f32 %v1458, %v1465
      %v1486 = vadd.f32 %v1459, %v1465
      %vm1487 = vcmp.ge.f32.partialorder %v1467, 0.0
      %vm1488 = vcmp.ge.f32.partialorder %v1468, 0.0
      %vm1489 = vcmp.ge.f32.partialorder %v1469, 0.0
      %vm1490 = vcmp.ge.f32.partialorder %v1470, 0.0
      %vm1491 = vcmp.ge.f32.partialorder %v1471, 0.0
      %vm1492 = vcmp.ge.f32.partialorder %v1472, 0.0
      %vm1493 = vcmp.ge.f32.partialorder %v1473, 0.0
      %vm1494 = vcmp.ge.f32.partialorder %v1474, 0.0
      %vm1495 = vcmp.ge.f32.partialorder %v1475, 0.0
      %vm1496 = vcmp.ge.f32.partialorder %v1476, 0.0
      %vm1497 = vcmp.ge.f32.partialorder %v1477, 0.0
      %vm1498 = vcmp.ge.f32.partialorder %v1478, 0.0
      %vm1499 = vcmp.ge.f32.partialorder %v1479, 0.0
      %vm1500 = vcmp.ge.f32.partialorder %v1480, 0.0
      %vm1501 = vcmp.ge.f32.partialorder %v1481, 0.0
      %vm1502 = vcmp.ge.f32.partialorder %v1482, 0.0
      %vm1503 = vcmp.ge.f32.partialorder %v1483, 0.0
      %vm1504 = vcmp.ge.f32.partialorder %v1484, 0.0
      %vm1505 = vcmp.ge.f32.partialorder %v1485, 0.0
      %vm1506 = vcmp.ge.f32.partialorder %v1486, 0.0
      %v1507 = vmul.f32 %v1467, 0.2
      %v1508 = vmul.f32 %v1468, 0.2
      %v1509 = vmul.f32 %v1469, 0.2
      %v1510 = vmul.f32 %v1470, 0.2
      %v1511 = vmul.f32 %v1471, 0.2
      %v1512 = vmul.f32 %v1472, 0.2
      %v1513 = vmul.f32 %v1473, 0.2
      %v1514 = vmul.f32 %v1474, 0.2
      %v1515 = vmul.f32 %v1475, 0.2
      %v1516 = vmul.f32 %v1476, 0.2
      %v1517 = vmul.f32 %v1477, 0.2
      %v1518 = vmul.f32 %v1478, 0.2
      %v1519 = vmul.f32 %v1479, 0.2
      %v1520 = vmul.f32 %v1480, 0.2
      %v1521 = vmul.f32 %v1481, 0.2
      %v1522 = vmul.f32 %v1482, 0.2
      %v1523 = vmul.f32 %v1483, 0.2
      %v1524 = vmul.f32 %v1484, 0.2
      %v1525 = vmul.f32 %v1485, 0.2
      %v1526 = vmul.f32 %v1486, 0.2
      %v1527 = vsel %vm1487, %v1467, %v1507
      %v1528 = vsel %vm1488, %v1468, %v1508
      %v1529 = vsel %vm1489, %v1469, %v1509
      %v1530 = vsel %vm1490, %v1470, %v1510
      %v1531 = vsel %vm1491, %v1471, %v1511
      %v1532 = vsel %vm1492, %v1472, %v1512
      %v1533 = vsel %vm1493, %v1473, %v1513
      %v1534 = vsel %vm1494, %v1474, %v1514
      %v1535 = vsel %vm1495, %v1475, %v1515
      %v1536 = vsel %vm1496, %v1476, %v1516
      %v1537 = vsel %vm1497, %v1477, %v1517
      %v1538 = vsel %vm1498, %v1478, %v1518
      %v1539 = vsel %vm1499, %v1479, %v1519
      %v1540 = vsel %vm1500, %v1480, %v1520
      %v1541 = vsel %vm1501, %v1481, %v1521
      %v1542 = vsel %vm1502, %v1482, %v1522
      %v1543 = vsel %vm1503, %v1483, %v1523
      %v1544 = vsel %vm1504, %v1484, %v1524
      %v1545 = vsel %vm1505, %v1485, %v1525
      %v1546 = vsel %vm1506, %v1486, %v1526
      %v1547 = vld [vmem:[%s5] sm:$0x3f]
      %vm1551 = vcmask 1042432
      %v1552 = vrot.slane %v1528, 5
      %v1553 = vrot.slane %v1529, 5
      %v1554 = vsel %vm1551, %v1552, %v1553
      %v1555 = vrot.slane %v1530, 5
      %v1556 = vsel %vm1551, %v1553, %v1555
      %v1559 = vadd.f32 %v1527, %v1554
      %v1560 = vadd.f32 %v1528, %v1556
      %vm1561 = vcmask 105472
      %v1563 = vsel %vm1561, %v1547, 0
      %vm1565 = vcmask 1044480
      %v1567 = vsel %vm1565, %v1560, 0
      %1569 = vmatprep.subr.mxu0 0.0
      %1570 = vmatpush1.msra.mxu0 0.0
      %1571 = vmatprep.subr.mxu0 0.0
      %1572 = vmatpush1.msra.mxu0 0.0
      %1573 = vmatprep.subr.mxu0 0.0
      %1574 = vmatpush1.msra.mxu0 0.0
      %1575 = vmatprep.subr.mxu0 0.0
      %1576 = vmatpush1.msra.mxu0 0.0
      %1577 = vmatprep.subr.mxu0 0.0
      %1578 = vmatpush1.msra.mxu0 0.0
      %1579 = vmatprep.subr.mxu0 0.0
      %1580 = vmatpush1.msra.mxu0 0.0
      %1581 = vmatprep.subr.mxu0 0.0
      %1582 = vmatpush1.msra.mxu0 0.0
      %1583 = vmatprep.subr.mxu0 0.0
      %1584 = vmatpush1.msra.mxu0 0.0
      %1585 = vmatprep.subr.mxu0 0.0
      %1586 = vmatpush1.msra.mxu0 0.0
      %1587 = vmatprep.subr.mxu0 0.0
      %1588 = vmatpush1.msra.mxu0 0.0
      %1589 = vmatprep.subr.mxu0 0.0
      %1590 = vmatpush1.msra.mxu0 0.0
      %1591 = vmatprep.subr.mxu0 0.0
      %1592 = vmatpush1.msra.mxu0 0.0
      %1593 = vmatprep.subr.mxu0 0.0
      %1594 = vmatpush1.msra.mxu0 0.0
      %1595 = vmatprep.subr.mxu0 0.0
      %1596 = vmatpush1.msra.mxu0 0.0
      %1597 = vmatprep.subr.mxu0 0.0
      %v1598 = vand.u32 %v1567, 4294901760
      %1599 = vmatpush1.msra.mxu0 %v1598
      %1600 = vmatprep.subr.mxu0 0.0
      %v1601 = vand.u32 %v1559, 4294901760
      %1602 = vmatpush1.msra.mxu0 %v1601
      %1603 = vmatprep.subr.mxu0 0.0
      %1604 = vmatpush2.msra.mxu0 0.0
      %1605 = vmatprep.subr.mxu0 0.0
      %1606 = vmatpush2.msra.mxu0 0.0
      %1607 = vmatprep.subr.mxu0 0.0
      %1608 = vmatpush2.msra.mxu0 0.0
      %1609 = vmatprep.subr.mxu0 0.0
      %1610 = vmatpush2.msra.mxu0 0.0
      %1611 = vmatprep.subr.mxu0 0.0
      %1612 = vmatpush2.msra.mxu0 0.0
      %1613 = vmatprep.subr.mxu0 0.0
      %1614 = vmatpush2.msra.mxu0 0.0
      %1615 = vmatprep.subr.mxu0 0.0
      %1616 = vmatpush2.msra.mxu0 0.0
      %1617 = vmatprep.subr.mxu0 0.0
      %1618 = vmatpush2.msra.mxu0 0.0
      %1619 = vmatprep.subr.mxu0 0.0
      %1620 = vmatpush2.msra.mxu0 0.0
      %1621 = vmatprep.subr.mxu0 0.0
      %1622 = vmatpush2.msra.mxu0 0.0
      %1623 = vmatprep.subr.mxu0 0.0
      %1624 = vmatpush2.msra.mxu0 0.0
      %1625 = vmatprep.subr.mxu0 0.0
      %1626 = vmatpush2.msra.mxu0 0.0
      %1627 = vmatprep.subr.mxu0 0.0
      %1628 = vmatpush2.msra.mxu0 0.0
      %1629 = vmatprep.subr.mxu0 0.0
      %1630 = vmatpush2.msra.mxu0 0.0
      %1631 = vmatprep.subr.mxu0 0.0
      %1632 = vmatpush2.msra.mxu0 0.0
      %1633 = vmatprep.subr.mxu0 0.0
      %1634 = vmatpush2.msra.mxu0 0.0
      %1635 = vmatprep.mubr.f32.mxu0 0.0
      %v1636 = vand.u32 %v1563, 4294901760
      %v1637 = vsub.f32 %v1563, %v1636
      %v1638 = vand.u32 %v1637, 4294901760
      %v1639 = vsub.f32 %v1637, %v1638
      %v1640 = vand.u32 %v1639, 4294901760
      %1641 = vmatmul.mubr.f32.gmra.mxu0 %v1640
      %v1642 = vpop.f32.mrf.mxu0
      %v1643 = vadd.f32 0.0, %v1642
      %v1644 = vpop.f32.mrf.mxu0
      %1645 = vdwg.mxu0
      %1646 = vmatprep.subr.mxu0 0.0
      %1647 = vmatpush1.msra.mxu0 0.0
      %1648 = vmatprep.subr.mxu0 0.0
      %1649 = vmatpush1.msra.mxu0 0.0
      %1650 = vmatprep.subr.mxu0 0.0
      %1651 = vmatpush1.msra.mxu0 0.0
      %1652 = vmatprep.subr.mxu0 0.0
      %1653 = vmatpush1.msra.mxu0 0.0
      %1654 = vmatprep.subr.mxu0 0.0
      %1655 = vmatpush1.msra.mxu0 0.0
      %1656 = vmatprep.subr.mxu0 0.0
      %1657 = vmatpush1.msra.mxu0 0.0
      %1658 = vmatprep.subr.mxu0 0.0
      %1659 = vmatpush1.msra.mxu0 0.0
      %1660 = vmatprep.subr.mxu0 0.0
      %1661 = vmatpush1.msra.mxu0 0.0
      %1662 = vmatprep.subr.mxu0 0.0
      %1663 = vmatpush1.msra.mxu0 0.0
      %1664 = vmatprep.subr.mxu0 0.0
      %1665 = vmatpush1.msra.mxu0 0.0
      %1666 = vmatprep.subr.mxu0 0.0
      %1667 = vmatpush1.msra.mxu0 0.0
      %1668 = vmatprep.subr.mxu0 0.0
      %1669 = vmatpush1.msra.mxu0 0.0
      %1670 = vmatprep.subr.mxu0 0.0
      %1671 = vmatpush1.msra.mxu0 0.0
      %1672 = vmatprep.subr.mxu0 0.0
      %1673 = vmatpush1.msra.mxu0 0.0
      %1674 = vmatprep.subr.mxu0 0.0
      %v1675 = vand.u32 %v1567, 4294901760
      %v1676 = vsub.f32 %v1567, %v1675
      %v1677 = vand.u32 %v1676, 4294901760
      %v1678 = vsub.f32 %v1676, %v1677
      %v1679 = vand.u32 %v1678, 4294901760
      %1680 = vmatpush1.msra.mxu0 %v1679
      %1681 = vmatprep.subr.mxu0 0.0
      %v1682 = vand.u32 %v1559, 4294901760
      %v1683 = vsub.f32 %v1559, %v1682
      %v1684 = vand.u32 %v1683, 4294901760
      %v1685 = vsub.f32 %v1683, %v1684
      %v1686 = vand.u32 %v1685, 4294901760
      %1687 = vmatpush1.msra.mxu0 %v1686
      %1688 = vmatprep.subr.mxu0 0.0
      %1689 = vmatpush2.msra.mxu0 0.0
      %1690 = vmatprep.subr.mxu0 0.0
      %1691 = vmatpush2.msra.mxu0 0.0
      %1692 = vmatprep.subr.mxu0 0.0
      %1693 = vmatpush2.msra.mxu0 0.0
      %1694 = vmatprep.subr.mxu0 0.0
      %1695 = vmatpush2.msra.mxu0 0.0
      %1696 = vmatprep.subr.mxu0 0.0
      %1697 = vmatpush2.msra.mxu0 0.0
      %1698 = vmatprep.subr.mxu0 0.0
      %1699 = vmatpush2.msra.mxu0 0.0
      %1700 = vmatprep.subr.mxu0 0.0
      %1701 = vmatpush2.msra.mxu0 0.0
      %1702 = vmatprep.subr.mxu0 0.0
      %1703 = vmatpush2.msra.mxu0 0.0
      %1704 = vmatprep.subr.mxu0 0.0
      %1705 = vmatpush2.msra.mxu0 0.0
      %1706 = vmatprep.subr.mxu0 0.0
      %1707 = vmatpush2.msra.mxu0 0.0
      %1708 = vmatprep.subr.mxu0 0.0
      %1709 = vmatpush2.msra.mxu0 0.0
      %1710 = vmatprep.subr.mxu0 0.0
      %1711 = vmatpush2.msra.mxu0 0.0
      %1712 = vmatprep.subr.mxu0 0.0
      %1713 = vmatpush2.msra.mxu0 0.0
      %1714 = vmatprep.subr.mxu0 0.0
      %1715 = vmatpush2.msra.mxu0 0.0
      %1716 = vmatprep.subr.mxu0 0.0
      %1717 = vmatpush2.msra.mxu0 0.0
      %1718 = vmatprep.subr.mxu0 0.0
      %1719 = vmatpush2.msra.mxu0 0.0
      %1720 = vmatprep.mubr.f32.mxu0 0.0
      %v1721 = vand.u32 %v1563, 4294901760
      %1722 = vmatmul.mubr.f32.gmra.mxu0 %v1721
      %v1723 = vpop.f32.mrf.mxu0
      %v1724 = vadd.f32 %v1643, %v1723
      %v1725 = vpop.f32.mrf.mxu0
      %1726 = vdwg.mxu0
      %1727 = vmatprep.subr.mxu0 0.0
      %1728 = vmatpush1.msra.mxu0 0.0
      %1729 = vmatprep.subr.mxu0 0.0
      %1730 = vmatpush1.msra.mxu0 0.0
      %1731 = vmatprep.subr.mxu0 0.0
      %1732 = vmatpush1.msra.mxu0 0.0
      %1733 = vmatprep.subr.mxu0 0.0
      %1734 = vmatpush1.msra.mxu0 0.0
      %1735 = vmatprep.subr.mxu0 0.0
      %1736 = vmatpush1.msra.mxu0 0.0
      %1737 = vmatprep.subr.mxu0 0.0
      %1738 = vmatpush1.msra.mxu0 0.0
      %1739 = vmatprep.subr.mxu0 0.0
      %1740 = vmatpush1.msra.mxu0 0.0
      %1741 = vmatprep.subr.mxu0 0.0
      %1742 = vmatpush1.msra.mxu0 0.0
      %1743 = vmatprep.subr.mxu0 0.0
      %1744 = vmatpush1.msra.mxu0 0.0
      %1745 = vmatprep.subr.mxu0 0.0
      %1746 = vmatpush1.msra.mxu0 0.0
      %1747 = vmatprep.subr.mxu0 0.0
      %1748 = vmatpush1.msra.mxu0 0.0
      %1749 = vmatprep.subr.mxu0 0.0
      %1750 = vmatpush1.msra.mxu0 0.0
      %1751 = vmatprep.subr.mxu0 0.0
      %1752 = vmatpush1.msra.mxu0 0.0
      %1753 = vmatprep.subr.mxu0 0.0
      %1754 = vmatpush1.msra.mxu0 0.0
      %1755 = vmatprep.subr.mxu0 0.0
      %v1756 = vand.u32 %v1567, 4294901760
      %v1757 = vsub.f32 %v1567, %v1756
      %1758 = vmatpush1.msra.mxu0 %v1757
      %1759 = vmatprep.subr.mxu0 0.0
      %v1760 = vand.u32 %v1559, 4294901760
      %v1761 = vsub.f32 %v1559, %v1760
      %1762 = vmatpush1.msra.mxu0 %v1761
      %1763 = vmatprep.subr.mxu0 0.0
      %1764 = vmatpush2.msra.mxu0 0.0
      %1765 = vmatprep.subr.mxu0 0.0
      %1766 = vmatpush2.msra.mxu0 0.0
      %1767 = vmatprep.subr.mxu0 0.0
      %1768 = vmatpush2.msra.mxu0 0.0
      %1769 = vmatprep.subr.mxu0 0.0
      %1770 = vmatpush2.msra.mxu0 0.0
      %1771 = vmatprep.subr.mxu0 0.0
      %1772 = vmatpush2.msra.mxu0 0.0
      %1773 = vmatprep.subr.mxu0 0.0
      %1774 = vmatpush2.msra.mxu0 0.0
      %1775 = vmatprep.subr.mxu0 0.0
      %1776 = vmatpush2.msra.mxu0 0.0
      %1777 = vmatprep.subr.mxu0 0.0
      %1778 = vmatpush2.msra.mxu0 0.0
      %1779 = vmatprep.subr.mxu0 0.0
      %1780 = vmatpush2.msra.mxu0 0.0
      %1781 = vmatprep.subr.mxu0 0.0
      %1782 = vmatpush2.msra.mxu0 0.0
      %1783 = vmatprep.subr.mxu0 0.0
      %1784 = vmatpush2.msra.mxu0 0.0
      %1785 = vmatprep.subr.mxu0 0.0
      %1786 = vmatpush2.msra.mxu0 0.0
      %1787 = vmatprep.subr.mxu0 0.0
      %1788 = vmatpush2.msra.mxu0 0.0
      %1789 = vmatprep.subr.mxu0 0.0
      %1790 = vmatpush2.msra.mxu0 0.0
      %1791 = vmatprep.subr.mxu0 0.0
      %1792 = vmatpush2.msra.mxu0 0.0
      %1793 = vmatprep.subr.mxu0 0.0
      %1794 = vmatpush2.msra.mxu0 0.0
      %1795 = vmatprep.mubr.f32.mxu0 0.0
      %v1796 = vand.u32 %v1563, 4294901760
      %v1797 = vsub.f32 %v1563, %v1796
      %1798 = vmatmul.mubr.f32.gmra.mxu0 %v1797
      %v1799 = vpop.f32.mrf.mxu0
      %v1800 = vadd.f32 %v1724, %v1799
      %v1801 = vpop.f32.mrf.mxu0
      %1802 = vdwg.mxu0
      %1803 = vmatprep.subr.mxu0 0.0
      %1804 = vmatpush1.msra.mxu0 0.0
      %1805 = vmatprep.subr.mxu0 0.0
      %1806 = vmatpush1.msra.mxu0 0.0
      %1807 = vmatprep.subr.mxu0 0.0
      %1808 = vmatpush1.msra.mxu0 0.0
      %1809 = vmatprep.subr.mxu0 0.0
      %1810 = vmatpush1.msra.mxu0 0.0
      %1811 = vmatprep.subr.mxu0 0.0
      %1812 = vmatpush1.msra.mxu0 0.0
      %1813 = vmatprep.subr.mxu0 0.0
      %1814 = vmatpush1.msra.mxu0 0.0
      %1815 = vmatprep.subr.mxu0 0.0
      %1816 = vmatpush1.msra.mxu0 0.0
      %1817 = vmatprep.subr.mxu0 0.0
      %1818 = vmatpush1.msra.mxu0 0.0
      %1819 = vmatprep.subr.mxu0 0.0
      %1820 = vmatpush1.msra.mxu0 0.0
      %1821 = vmatprep.subr.mxu0 0.0
      %1822 = vmatpush1.msra.mxu0 0.0
      %1823 = vmatprep.subr.mxu0 0.0
      %1824 = vmatpush1.msra.mxu0 0.0
      %1825 = vmatprep.subr.mxu0 0.0
      %1826 = vmatpush1.msra.mxu0 0.0
      %1827 = vmatprep.subr.mxu0 0.0
      %1828 = vmatpush1.msra.mxu0 0.0
      %1829 = vmatprep.subr.mxu0 0.0
      %1830 = vmatpush1.msra.mxu0 0.0
      %1831 = vmatprep.subr.mxu0 0.0
      %v1832 = vand.u32 %v1567, 4294901760
      %1833 = vmatpush1.msra.mxu0 %v1832
      %1834 = vmatprep.subr.mxu0 0.0
      %v1835 = vand.u32 %v1559, 4294901760
      %1836 = vmatpush1.msra.mxu0 %v1835
      %1837 = vmatprep.subr.mxu0 0.0
      %1838 = vmatpush2.msra.mxu0 0.0
      %1839 = vmatprep.subr.mxu0 0.0
      %1840 = vmatpush2.msra.mxu0 0.0
      %1841 = vmatprep.subr.mxu0 0.0
      %1842 = vmatpush2.msra.mxu0 0.0
      %1843 = vmatprep.subr.mxu0 0.0
      %1844 = vmatpush2.msra.mxu0 0.0
      %1845 = vmatprep.subr.mxu0 0.0
      %1846 = vmatpush2.msra.mxu0 0.0
      %1847 = vmatprep.subr.mxu0 0.0
      %1848 = vmatpush2.msra.mxu0 0.0
      %1849 = vmatprep.subr.mxu0 0.0
      %1850 = vmatpush2.msra.mxu0 0.0
      %1851 = vmatprep.subr.mxu0 0.0
      %1852 = vmatpush2.msra.mxu0 0.0
      %1853 = vmatprep.subr.mxu0 0.0
      %1854 = vmatpush2.msra.mxu0 0.0
      %1855 = vmatprep.subr.mxu0 0.0
      %1856 = vmatpush2.msra.mxu0 0.0
      %1857 = vmatprep.subr.mxu0 0.0
      %1858 = vmatpush2.msra.mxu0 0.0
      %1859 = vmatprep.subr.mxu0 0.0
      %1860 = vmatpush2.msra.mxu0 0.0
      %1861 = vmatprep.subr.mxu0 0.0
      %1862 = vmatpush2.msra.mxu0 0.0
      %1863 = vmatprep.subr.mxu0 0.0
      %1864 = vmatpush2.msra.mxu0 0.0
      %1865 = vmatprep.subr.mxu0 0.0
      %1866 = vmatpush2.msra.mxu0 0.0
      %1867 = vmatprep.subr.mxu0 0.0
      %1868 = vmatpush2.msra.mxu0 0.0
      %1869 = vmatprep.mubr.f32.mxu0 0.0
      %v1870 = vand.u32 %v1563, 4294901760
      %v1871 = vsub.f32 %v1563, %v1870
      %v1872 = vand.u32 %v1871, 4294901760
      %1873 = vmatmul.mubr.f32.gmra.mxu0 %v1872
      %v1874 = vpop.f32.mrf.mxu0
      %v1875 = vadd.f32 %v1800, %v1874
      %v1876 = vpop.f32.mrf.mxu0
      %1877 = vdwg.mxu0
      %1878 = vmatprep.subr.mxu0 0.0
      %1879 = vmatpush1.msra.mxu0 0.0
      %1880 = vmatprep.subr.mxu0 0.0
      %1881 = vmatpush1.msra.mxu0 0.0
      %1882 = vmatprep.subr.mxu0 0.0
      %1883 = vmatpush1.msra.mxu0 0.0
      %1884 = vmatprep.subr.mxu0 0.0
      %1885 = vmatpush1.msra.mxu0 0.0
      %1886 = vmatprep.subr.mxu0 0.0
      %1887 = vmatpush1.msra.mxu0 0.0
      %1888 = vmatprep.subr.mxu0 0.0
      %1889 = vmatpush1.msra.mxu0 0.0
      %1890 = vmatprep.subr.mxu0 0.0
      %1891 = vmatpush1.msra.mxu0 0.0
      %1892 = vmatprep.subr.mxu0 0.0
      %1893 = vmatpush1.msra.mxu0 0.0
      %1894 = vmatprep.subr.mxu0 0.0
      %1895 = vmatpush1.msra.mxu0 0.0
      %1896 = vmatprep.subr.mxu0 0.0
      %1897 = vmatpush1.msra.mxu0 0.0
      %1898 = vmatprep.subr.mxu0 0.0
      %1899 = vmatpush1.msra.mxu0 0.0
      %1900 = vmatprep.subr.mxu0 0.0
      %1901 = vmatpush1.msra.mxu0 0.0
      %1902 = vmatprep.subr.mxu0 0.0
      %1903 = vmatpush1.msra.mxu0 0.0
      %1904 = vmatprep.subr.mxu0 0.0
      %1905 = vmatpush1.msra.mxu0 0.0
      %1906 = vmatprep.subr.mxu0 0.0
      %v1907 = vand.u32 %v1567, 4294901760
      %v1908 = vsub.f32 %v1567, %v1907
      %v1909 = vand.u32 %v1908, 4294901760
      %1910 = vmatpush1.msra.mxu0 %v1909
      %1911 = vmatprep.subr.mxu0 0.0
      %v1912 = vand.u32 %v1559, 4294901760
      %v1913 = vsub.f32 %v1559, %v1912
      %v1914 = vand.u32 %v1913, 4294901760
      %1915 = vmatpush1.msra.mxu0 %v1914
      %1916 = vmatprep.subr.mxu0 0.0
      %1917 = vmatpush2.msra.mxu0 0.0
      %1918 = vmatprep.subr.mxu0 0.0
      %1919 = vmatpush2.msra.mxu0 0.0
      %1920 = vmatprep.subr.mxu0 0.0
      %1921 = vmatpush2.msra.mxu0 0.0
      %1922 = vmatprep.subr.mxu0 0.0
      %1923 = vmatpush2.msra.mxu0 0.0
      %1924 = vmatprep.subr.mxu0 0.0
      %1925 = vmatpush2.msra.mxu0 0.0
      %1926 = vmatprep.subr.mxu0 0.0
      %1927 = vmatpush2.msra.mxu0 0.0
      %1928 = vmatprep.subr.mxu0 0.0
      %1929 = vmatpush2.msra.mxu0 0.0
      %1930 = vmatprep.subr.mxu0 0.0
      %1931 = vmatpush2.msra.mxu0 0.0
      %1932 = vmatprep.subr.mxu0 0.0
      %1933 = vmatpush2.msra.mxu0 0.0
      %1934 = vmatprep.subr.mxu0 0.0
      %1935 = vmatpush2.msra.mxu0 0.0
      %1936 = vmatprep.subr.mxu0 0.0
      %1937 = vmatpush2.msra.mxu0 0.0
      %1938 = vmatprep.subr.mxu0 0.0
      %1939 = vmatpush2.msra.mxu0 0.0
      %1940 = vmatprep.subr.mxu0 0.0
      %1941 = vmatpush2.msra.mxu0 0.0
      %1942 = vmatprep.subr.mxu0 0.0
      %1943 = vmatpush2.msra.mxu0 0.0
      %1944 = vmatprep.subr.mxu0 0.0
      %1945 = vmatpush2.msra.mxu0 0.0
      %1946 = vmatprep.subr.mxu0 0.0
      %1947 = vmatpush2.msra.mxu0 0.0
      %1948 = vmatprep.mubr.f32.mxu0 0.0
      %v1949 = vand.u32 %v1563, 4294901760
      %1950 = vmatmul.mubr.f32.gmra.mxu0 %v1949
      %v1951 = vpop.f32.mrf.mxu0
      %v1952 = vadd.f32 %v1875, %v1951
      %v1953 = vpop.f32.mrf.mxu0
      %1954 = vdwg.mxu0
      %1955 = vmatprep.subr.mxu0 0.0
      %1956 = vmatpush1.msra.mxu0 0.0
      %1957 = vmatprep.subr.mxu0 0.0
      %1958 = vmatpush1.msra.mxu0 0.0
      %1959 = vmatprep.subr.mxu0 0.0
      %1960 = vmatpush1.msra.mxu0 0.0
      %1961 = vmatprep.subr.mxu0 0.0
      %1962 = vmatpush1.msra.mxu0 0.0
      %1963 = vmatprep.subr.mxu0 0.0
      %1964 = vmatpush1.msra.mxu0 0.0
      %1965 = vmatprep.subr.mxu0 0.0
      %1966 = vmatpush1.msra.mxu0 0.0
      %1967 = vmatprep.subr.mxu0 0.0
      %1968 = vmatpush1.msra.mxu0 0.0
      %1969 = vmatprep.subr.mxu0 0.0
      %1970 = vmatpush1.msra.mxu0 0.0
      %1971 = vmatprep.subr.mxu0 0.0
      %1972 = vmatpush1.msra.mxu0 0.0
      %1973 = vmatprep.subr.mxu0 0.0
      %1974 = vmatpush1.msra.mxu0 0.0
      %1975 = vmatprep.subr.mxu0 0.0
      %1976 = vmatpush1.msra.mxu0 0.0
      %1977 = vmatprep.subr.mxu0 0.0
      %1978 = vmatpush1.msra.mxu0 0.0
      %1979 = vmatprep.subr.mxu0 0.0
      %1980 = vmatpush1.msra.mxu0 0.0
      %1981 = vmatprep.subr.mxu0 0.0
      %1982 = vmatpush1.msra.mxu0 0.0
      %1983 = vmatprep.subr.mxu0 0.0
      %v1984 = vand.u32 %v1567, 4294901760
      %1985 = vmatpush1.msra.mxu0 %v1984
      %1986 = vmatprep.subr.mxu0 0.0
      %v1987 = vand.u32 %v1559, 4294901760
      %1988 = vmatpush1.msra.mxu0 %v1987
      %1989 = vmatprep.subr.mxu0 0.0
      %1990 = vmatpush2.msra.mxu0 0.0
      %1991 = vmatprep.subr.mxu0 0.0
      %1992 = vmatpush2.msra.mxu0 0.0
      %1993 = vmatprep.subr.mxu0 0.0
      %1994 = vmatpush2.msra.mxu0 0.0
      %1995 = vmatprep.subr.mxu0 0.0
      %1996 = vmatpush2.msra.mxu0 0.0
      %1997 = vmatprep.subr.mxu0 0.0
      %1998 = vmatpush2.msra.mxu0 0.0
      %1999 = vmatprep.subr.mxu0 0.0
      %2000 = vmatpush2.msra.mxu0 0.0
      %2001 = vmatprep.subr.mxu0 0.0
      %2002 = vmatpush2.msra.mxu0 0.0
      %2003 = vmatprep.subr.mxu0 0.0
      %2004 = vmatpush2.msra.mxu0 0.0
      %2005 = vmatprep.subr.mxu0 0.0
      %2006 = vmatpush2.msra.mxu0 0.0
      %2007 = vmatprep.subr.mxu0 0.0
      %2008 = vmatpush2.msra.mxu0 0.0
      %2009 = vmatprep.subr.mxu0 0.0
      %2010 = vmatpush2.msra.mxu0 0.0
      %2011 = vmatprep.subr.mxu0 0.0
      %2012 = vmatpush2.msra.mxu0 0.0
      %2013 = vmatprep.subr.mxu0 0.0
      %2014 = vmatpush2.msra.mxu0 0.0
      %2015 = vmatprep.subr.mxu0 0.0
      %2016 = vmatpush2.msra.mxu0 0.0
      %2017 = vmatprep.subr.mxu0 0.0
      %2018 = vmatpush2.msra.mxu0 0.0
      %2019 = vmatprep.subr.mxu0 0.0
      %2020 = vmatpush2.msra.mxu0 0.0
      %2021 = vmatprep.mubr.f32.mxu0 0.0
      %v2022 = vand.u32 %v1563, 4294901760
      %2023 = vmatmul.mubr.f32.gmra.mxu0 %v2022
      %v2024 = vpop.f32.mrf.mxu0
      %v2025 = vadd.f32 %v1952, %v2024
      %v2026 = vpop.f32.mrf.mxu0
      %2027 = vdwg.mxu0
      %vm2028 = vcmask 128000
      %2029 = vst.msk [vmem:[%s294] sm:$0x3f] %vm2028, %v2025
      %v2030 = vld [vmem:[%s5] sm:$0x3f]
      %v2034 = vrot.slane %v1531, 5
      %v2035 = vrot.slane %v1532, 5
      %v2036 = vsel %vm1551, %v2034, %v2035
      %v2037 = vrot.slane %v1533, 5
      %v2038 = vsel %vm1551, %v2035, %v2037
      %v2041 = vadd.f32 %v1530, %v2036
      %v2042 = vadd.f32 %v1531, %v2038
      %v2045 = vrot.slane %v2041, 2
      %v2046 = vrot.slane %v2042, 2
      %v2047 = vsel %vm519, %v2045, %v2046
      %v2050 = vsel %vm1561, %v2030, 0
      %v2052 = vsel %vm1565, %v2046, 0
      %2054 = vmatprep.subr.mxu0 0.0
      %2055 = vmatpush1.msra.mxu0 0.0
      %2056 = vmatprep.subr.mxu0 0.0
      %2057 = vmatpush1.msra.mxu0 0.0
      %2058 = vmatprep.subr.mxu0 0.0
      %2059 = vmatpush1.msra.mxu0 0.0
      %2060 = vmatprep.subr.mxu0 0.0
      %2061 = vmatpush1.msra.mxu0 0.0
      %2062 = vmatprep.subr.mxu0 0.0
      %2063 = vmatpush1.msra.mxu0 0.0
      %2064 = vmatprep.subr.mxu0 0.0
      %2065 = vmatpush1.msra.mxu0 0.0
      %2066 = vmatprep.subr.mxu0 0.0
      %2067 = vmatpush1.msra.mxu0 0.0
      %2068 = vmatprep.subr.mxu0 0.0
      %2069 = vmatpush1.msra.mxu0 0.0
      %2070 = vmatprep.subr.mxu0 0.0
      %2071 = vmatpush1.msra.mxu0 0.0
      %2072 = vmatprep.subr.mxu0 0.0
      %2073 = vmatpush1.msra.mxu0 0.0
      %2074 = vmatprep.subr.mxu0 0.0
      %2075 = vmatpush1.msra.mxu0 0.0
      %2076 = vmatprep.subr.mxu0 0.0
      %2077 = vmatpush1.msra.mxu0 0.0
      %2078 = vmatprep.subr.mxu0 0.0
      %2079 = vmatpush1.msra.mxu0 0.0
      %2080 = vmatprep.subr.mxu0 0.0
      %2081 = vmatpush1.msra.mxu0 0.0
      %2082 = vmatprep.subr.mxu0 0.0
      %v2083 = vand.u32 %v2052, 4294901760
      %2084 = vmatpush1.msra.mxu0 %v2083
      %2085 = vmatprep.subr.mxu0 0.0
      %v2086 = vand.u32 %v2047, 4294901760
      %2087 = vmatpush1.msra.mxu0 %v2086
      %2088 = vmatprep.subr.mxu0 0.0
      %2089 = vmatpush2.msra.mxu0 0.0
      %2090 = vmatprep.subr.mxu0 0.0
      %2091 = vmatpush2.msra.mxu0 0.0
      %2092 = vmatprep.subr.mxu0 0.0
      %2093 = vmatpush2.msra.mxu0 0.0
      %2094 = vmatprep.subr.mxu0 0.0
      %2095 = vmatpush2.msra.mxu0 0.0
      %2096 = vmatprep.subr.mxu0 0.0
      %2097 = vmatpush2.msra.mxu0 0.0
      %2098 = vmatprep.subr.mxu0 0.0
      %2099 = vmatpush2.msra.mxu0 0.0
      %2100 = vmatprep.subr.mxu0 0.0
      %2101 = vmatpush2.msra.mxu0 0.0
      %2102 = vmatprep.subr.mxu0 0.0
      %2103 = vmatpush2.msra.mxu0 0.0
      %2104 = vmatprep.subr.mxu0 0.0
      %2105 = vmatpush2.msra.mxu0 0.0
      %2106 = vmatprep.subr.mxu0 0.0
      %2107 = vmatpush2.msra.mxu0 0.0
      %2108 = vmatprep.subr.mxu0 0.0
      %2109 = vmatpush2.msra.mxu0 0.0
      %2110 = vmatprep.subr.mxu0 0.0
      %2111 = vmatpush2.msra.mxu0 0.0
      %2112 = vmatprep.subr.mxu0 0.0
      %2113 = vmatpush2.msra.mxu0 0.0
      %2114 = vmatprep.subr.mxu0 0.0
      %2115 = vmatpush2.msra.mxu0 0.0
      %2116 = vmatprep.subr.mxu0 0.0
      %2117 = vmatpush2.msra.mxu0 0.0
      %2118 = vmatprep.subr.mxu0 0.0
      %2119 = vmatpush2.msra.mxu0 0.0
      %2120 = vmatprep.mubr.f32.mxu0 0.0
      %v2121 = vand.u32 %v2050, 4294901760
      %v2122 = vsub.f32 %v2050, %v2121
      %v2123 = vand.u32 %v2122, 4294901760
      %v2124 = vsub.f32 %v2122, %v2123
      %v2125 = vand.u32 %v2124, 4294901760
      %2126 = vmatmul.mubr.f32.gmra.mxu0 %v2125
      %v2127 = vpop.f32.mrf.mxu0
      %v2128 = vadd.f32 0.0, %v2127
      %v2129 = vpop.f32.mrf.mxu0
      %2130 = vdwg.mxu0
      %2131 = vmatprep.subr.mxu0 0.0
      %2132 = vmatpush1.msra.mxu0 0.0
      %2133 = vmatprep.subr.mxu0 0.0
      %2134 = vmatpush1.msra.mxu0 0.0
      %2135 = vmatprep.subr.mxu0 0.0
      %2136 = vmatpush1.msra.mxu0 0.0
      %2137 = vmatprep.subr.mxu0 0.0
      %2138 = vmatpush1.msra.mxu0 0.0
      %2139 = vmatprep.subr.mxu0 0.0
      %2140 = vmatpush1.msra.mxu0 0.0
      %2141 = vmatprep.subr.mxu0 0.0
      %2142 = vmatpush1.msra.mxu0 0.0
      %2143 = vmatprep.subr.mxu0 0.0
      %2144 = vmatpush1.msra.mxu0 0.0
      %2145 = vmatprep.subr.mxu0 0.0
      %2146 = vmatpush1.msra.mxu0 0.0
      %2147 = vmatprep.subr.mxu0 0.0
      %2148 = vmatpush1.msra.mxu0 0.0
      %2149 = vmatprep.subr.mxu0 0.0
      %2150 = vmatpush1.msra.mxu0 0.0
      %2151 = vmatprep.subr.mxu0 0.0
      %2152 = vmatpush1.msra.mxu0 0.0
      %2153 = vmatprep.subr.mxu0 0.0
      %2154 = vmatpush1.msra.mxu0 0.0
      %2155 = vmatprep.subr.mxu0 0.0
      %2156 = vmatpush1.msra.mxu0 0.0
      %2157 = vmatprep.subr.mxu0 0.0
      %2158 = vmatpush1.msra.mxu0 0.0
      %2159 = vmatprep.subr.mxu0 0.0
      %v2160 = vand.u32 %v2052, 4294901760
      %v2161 = vsub.f32 %v2052, %v2160
      %v2162 = vand.u32 %v2161, 4294901760
      %v2163 = vsub.f32 %v2161, %v2162
      %v2164 = vand.u32 %v2163, 4294901760
      %2165 = vmatpush1.msra.mxu0 %v2164
      %2166 = vmatprep.subr.mxu0 0.0
      %v2167 = vand.u32 %v2047, 4294901760
      %v2168 = vsub.f32 %v2047, %v2167
      %v2169 = vand.u32 %v2168, 4294901760
      %v2170 = vsub.f32 %v2168, %v2169
      %v2171 = vand.u32 %v2170, 4294901760
      %2172 = vmatpush1.msra.mxu0 %v2171
      %2173 = vmatprep.subr.mxu0 0.0
      %2174 = vmatpush2.msra.mxu0 0.0
      %2175 = vmatprep.subr.mxu0 0.0
      %2176 = vmatpush2.msra.mxu0 0.0
      %2177 = vmatprep.subr.mxu0 0.0
      %2178 = vmatpush2.msra.mxu0 0.0
      %2179 = vmatprep.subr.mxu0 0.0
      %2180 = vmatpush2.msra.mxu0 0.0
      %2181 = vmatprep.subr.mxu0 0.0
      %2182 = vmatpush2.msra.mxu0 0.0
      %2183 = vmatprep.subr.mxu0 0.0
      %2184 = vmatpush2.msra.mxu0 0.0
      %2185 = vmatprep.subr.mxu0 0.0
      %2186 = vmatpush2.msra.mxu0 0.0
      %2187 = vmatprep.subr.mxu0 0.0
      %2188 = vmatpush2.msra.mxu0 0.0
      %2189 = vmatprep.subr.mxu0 0.0
      %2190 = vmatpush2.msra.mxu0 0.0
      %2191 = vmatprep.subr.mxu0 0.0
      %2192 = vmatpush2.msra.mxu0 0.0
      %2193 = vmatprep.subr.mxu0 0.0
      %2194 = vmatpush2.msra.mxu0 0.0
      %2195 = vmatprep.subr.mxu0 0.0
      %2196 = vmatpush2.msra.mxu0 0.0
      %2197 = vmatprep.subr.mxu0 0.0
      %2198 = vmatpush2.msra.mxu0 0.0
      %2199 = vmatprep.subr.mxu0 0.0
      %2200 = vmatpush2.msra.mxu0 0.0
      %2201 = vmatprep.subr.mxu0 0.0
      %2202 = vmatpush2.msra.mxu0 0.0
      %2203 = vmatprep.subr.mxu0 0.0
      %2204 = vmatpush2.msra.mxu0 0.0
      %2205 = vmatprep.mubr.f32.mxu0 0.0
      %v2206 = vand.u32 %v2050, 4294901760
      %2207 = vmatmul.mubr.f32.gmra.mxu0 %v2206
      %v2208 = vpop.f32.mrf.mxu0
      %v2209 = vadd.f32 %v2128, %v2208
      %v2210 = vpop.f32.mrf.mxu0
      %2211 = vdwg.mxu0
      %2212 = vmatprep.subr.mxu0 0.0
      %2213 = vmatpush1.msra.mxu0 0.0
      %2214 = vmatprep.subr.mxu0 0.0
      %2215 = vmatpush1.msra.mxu0 0.0
      %2216 = vmatprep.subr.mxu0 0.0
      %2217 = vmatpush1.msra.mxu0 0.0
      %2218 = vmatprep.subr.mxu0 0.0
      %2219 = vmatpush1.msra.mxu0 0.0
      %2220 = vmatprep.subr.mxu0 0.0
      %2221 = vmatpush1.msra.mxu0 0.0
      %2222 = vmatprep.subr.mxu0 0.0
      %2223 = vmatpush1.msra.mxu0 0.0
      %2224 = vmatprep.subr.mxu0 0.0
      %2225 = vmatpush1.msra.mxu0 0.0
      %2226 = vmatprep.subr.mxu0 0.0
      %2227 = vmatpush1.msra.mxu0 0.0
      %2228 = vmatprep.subr.mxu0 0.0
      %2229 = vmatpush1.msra.mxu0 0.0
      %2230 = vmatprep.subr.mxu0 0.0
      %2231 = vmatpush1.msra.mxu0 0.0
      %2232 = vmatprep.subr.mxu0 0.0
      %2233 = vmatpush1.msra.mxu0 0.0
      %2234 = vmatprep.subr.mxu0 0.0
      %2235 = vmatpush1.msra.mxu0 0.0
      %2236 = vmatprep.subr.mxu0 0.0
      %2237 = vmatpush1.msra.mxu0 0.0
      %2238 = vmatprep.subr.mxu0 0.0
      %2239 = vmatpush1.msra.mxu0 0.0
      %2240 = vmatprep.subr.mxu0 0.0
      %v2241 = vand.u32 %v2052, 4294901760
      %v2242 = vsub.f32 %v2052, %v2241
      %2243 = vmatpush1.msra.mxu0 %v2242
      %2244 = vmatprep.subr.mxu0 0.0
      %v2245 = vand.u32 %v2047, 4294901760
      %v2246 = vsub.f32 %v2047, %v2245
      %2247 = vmatpush1.msra.mxu0 %v2246
      %2248 = vmatprep.subr.mxu0 0.0
      %2249 = vmatpush2.msra.mxu0 0.0
      %2250 = vmatprep.subr.mxu0 0.0
      %2251 = vmatpush2.msra.mxu0 0.0
      %2252 = vmatprep.subr.mxu0 0.0
      %2253 = vmatpush2.msra.mxu0 0.0
      %2254 = vmatprep.subr.mxu0 0.0
      %2255 = vmatpush2.msra.mxu0 0.0
      %2256 = vmatprep.subr.mxu0 0.0
      %2257 = vmatpush2.msra.mxu0 0.0
      %2258 = vmatprep.subr.mxu0 0.0
      %2259 = vmatpush2.msra.mxu0 0.0
      %2260 = vmatprep.subr.mxu0 0.0
      %2261 = vmatpush2.msra.mxu0 0.0
      %2262 = vmatprep.subr.mxu0 0.0
      %2263 = vmatpush2.msra.mxu0 0.0
      %2264 = vmatprep.subr.mxu0 0.0
      %2265 = vmatpush2.msra.mxu0 0.0
      %2266 = vmatprep.subr.mxu0 0.0
      %2267 = vmatpush2.msra.mxu0 0.0
      %2268 = vmatprep.subr.mxu0 0.0
      %2269 = vmatpush2.msra.mxu0 0.0
      %2270 = vmatprep.subr.mxu0 0.0
      %2271 = vmatpush2.msra.mxu0 0.0
      %2272 = vmatprep.subr.mxu0 0.0
      %2273 = vmatpush2.msra.mxu0 0.0
      %2274 = vmatprep.subr.mxu0 0.0
      %2275 = vmatpush2.msra.mxu0 0.0
      %2276 = vmatprep.subr.mxu0 0.0
      %2277 = vmatpush2.msra.mxu0 0.0
      %2278 = vmatprep.subr.mxu0 0.0
      %2279 = vmatpush2.msra.mxu0 0.0
      %2280 = vmatprep.mubr.f32.mxu0 0.0
      %v2281 = vand.u32 %v2050, 4294901760
      %v2282 = vsub.f32 %v2050, %v2281
      %2283 = vmatmul.mubr.f32.gmra.mxu0 %v2282
      %v2284 = vpop.f32.mrf.mxu0
      %v2285 = vadd.f32 %v2209, %v2284
      %v2286 = vpop.f32.mrf.mxu0
      %2287 = vdwg.mxu0
      %2288 = vmatprep.subr.mxu0 0.0
      %2289 = vmatpush1.msra.mxu0 0.0
      %2290 = vmatprep.subr.mxu0 0.0
      %2291 = vmatpush1.msra.mxu0 0.0
      %2292 = vmatprep.subr.mxu0 0.0
      %2293 = vmatpush1.msra.mxu0 0.0
      %2294 = vmatprep.subr.mxu0 0.0
      %2295 = vmatpush1.msra.mxu0 0.0
      %2296 = vmatprep.subr.mxu0 0.0
      %2297 = vmatpush1.msra.mxu0 0.0
      %2298 = vmatprep.subr.mxu0 0.0
      %2299 = vmatpush1.msra.mxu0 0.0
      %2300 = vmatprep.subr.mxu0 0.0
      %2301 = vmatpush1.msra.mxu0 0.0
      %2302 = vmatprep.subr.mxu0 0.0
      %2303 = vmatpush1.msra.mxu0 0.0
      %2304 = vmatprep.subr.mxu0 0.0
      %2305 = vmatpush1.msra.mxu0 0.0
      %2306 = vmatprep.subr.mxu0 0.0
      %2307 = vmatpush1.msra.mxu0 0.0
      %2308 = vmatprep.subr.mxu0 0.0
      %2309 = vmatpush1.msra.mxu0 0.0
      %2310 = vmatprep.subr.mxu0 0.0
      %2311 = vmatpush1.msra.mxu0 0.0
      %2312 = vmatprep.subr.mxu0 0.0
      %2313 = vmatpush1.msra.mxu0 0.0
      %2314 = vmatprep.subr.mxu0 0.0
      %2315 = vmatpush1.msra.mxu0 0.0
      %2316 = vmatprep.subr.mxu0 0.0
      %v2317 = vand.u32 %v2052, 4294901760
      %2318 = vmatpush1.msra.mxu0 %v2317
      %2319 = vmatprep.subr.mxu0 0.0
      %v2320 = vand.u32 %v2047, 4294901760
      %2321 = vmatpush1.msra.mxu0 %v2320
      %2322 = vmatprep.subr.mxu0 0.0
      %2323 = vmatpush2.msra.mxu0 0.0
      %2324 = vmatprep.subr.mxu0 0.0
      %2325 = vmatpush2.msra.mxu0 0.0
      %2326 = vmatprep.subr.mxu0 0.0
      %2327 = vmatpush2.msra.mxu0 0.0
      %2328 = vmatprep.subr.mxu0 0.0
      %2329 = vmatpush2.msra.mxu0 0.0
      %2330 = vmatprep.subr.mxu0 0.0
      %2331 = vmatpush2.msra.mxu0 0.0
      %2332 = vmatprep.subr.mxu0 0.0
      %2333 = vmatpush2.msra.mxu0 0.0
      %2334 = vmatprep.subr.mxu0 0.0
      %2335 = vmatpush2.msra.mxu0 0.0
      %2336 = vmatprep.subr.mxu0 0.0
      %2337 = vmatpush2.msra.mxu0 0.0
      %2338 = vmatprep.subr.mxu0 0.0
      %2339 = vmatpush2.msra.mxu0 0.0
      %2340 = vmatprep.subr.mxu0 0.0
      %2341 = vmatpush2.msra.mxu0 0.0
      %2342 = vmatprep.subr.mxu0 0.0
      %2343 = vmatpush2.msra.mxu0 0.0
      %2344 = vmatprep.subr.mxu0 0.0
      %2345 = vmatpush2.msra.mxu0 0.0
      %2346 = vmatprep.subr.mxu0 0.0
      %2347 = vmatpush2.msra.mxu0 0.0
      %2348 = vmatprep.subr.mxu0 0.0
      %2349 = vmatpush2.msra.mxu0 0.0
      %2350 = vmatprep.subr.mxu0 0.0
      %2351 = vmatpush2.msra.mxu0 0.0
      %2352 = vmatprep.subr.mxu0 0.0
      %2353 = vmatpush2.msra.mxu0 0.0
      %2354 = vmatprep.mubr.f32.mxu0 0.0
      %v2355 = vand.u32 %v2050, 4294901760
      %v2356 = vsub.f32 %v2050, %v2355
      %v2357 = vand.u32 %v2356, 4294901760
      %2358 = vmatmul.mubr.f32.gmra.mxu0 %v2357
      %v2359 = vpop.f32.mrf.mxu0
      %v2360 = vadd.f32 %v2285, %v2359
      %v2361 = vpop.f32.mrf.mxu0
      %2362 = vdwg.mxu0
      %2363 = vmatprep.subr.mxu0 0.0
      %2364 = vmatpush1.msra.mxu0 0.0
      %2365 = vmatprep.subr.mxu0 0.0
      %2366 = vmatpush1.msra.mxu0 0.0
      %2367 = vmatprep.subr.mxu0 0.0
      %2368 = vmatpush1.msra.mxu0 0.0
      %2369 = vmatprep.subr.mxu0 0.0
      %2370 = vmatpush1.msra.mxu0 0.0
      %2371 = vmatprep.subr.mxu0 0.0
      %2372 = vmatpush1.msra.mxu0 0.0
      %2373 = vmatprep.subr.mxu0 0.0
      %2374 = vmatpush1.msra.mxu0 0.0
      %2375 = vmatprep.subr.mxu0 0.0
      %2376 = vmatpush1.msra.mxu0 0.0
      %2377 = vmatprep.subr.mxu0 0.0
      %2378 = vmatpush1.msra.mxu0 0.0
      %2379 = vmatprep.subr.mxu0 0.0
      %2380 = vmatpush1.msra.mxu0 0.0
      %2381 = vmatprep.subr.mxu0 0.0
      %2382 = vmatpush1.msra.mxu0 0.0
      %2383 = vmatprep.subr.mxu0 0.0
      %2384 = vmatpush1.msra.mxu0 0.0
      %2385 = vmatprep.subr.mxu0 0.0
      %2386 = vmatpush1.msra.mxu0 0.0
      %2387 = vmatprep.subr.mxu0 0.0
      %2388 = vmatpush1.msra.mxu0 0.0
      %2389 = vmatprep.subr.mxu0 0.0
      %2390 = vmatpush1.msra.mxu0 0.0
      %2391 = vmatprep.subr.mxu0 0.0
      %v2392 = vand.u32 %v2052, 4294901760
      %v2393 = vsub.f32 %v2052, %v2392
      %v2394 = vand.u32 %v2393, 4294901760
      %2395 = vmatpush1.msra.mxu0 %v2394
      %2396 = vmatprep.subr.mxu0 0.0
      %v2397 = vand.u32 %v2047, 4294901760
      %v2398 = vsub.f32 %v2047, %v2397
      %v2399 = vand.u32 %v2398, 4294901760
      %2400 = vmatpush1.msra.mxu0 %v2399
      %2401 = vmatprep.subr.mxu0 0.0
      %2402 = vmatpush2.msra.mxu0 0.0
      %2403 = vmatprep.subr.mxu0 0.0
      %2404 = vmatpush2.msra.mxu0 0.0
      %2405 = vmatprep.subr.mxu0 0.0
      %2406 = vmatpush2.msra.mxu0 0.0
      %2407 = vmatprep.subr.mxu0 0.0
      %2408 = vmatpush2.msra.mxu0 0.0
      %2409 = vmatprep.subr.mxu0 0.0
      %2410 = vmatpush2.msra.mxu0 0.0
      %2411 = vmatprep.subr.mxu0 0.0
      %2412 = vmatpush2.msra.mxu0 0.0
      %2413 = vmatprep.subr.mxu0 0.0
      %2414 = vmatpush2.msra.mxu0 0.0
      %2415 = vmatprep.subr.mxu0 0.0
      %2416 = vmatpush2.msra.mxu0 0.0
      %2417 = vmatprep.subr.mxu0 0.0
      %2418 = vmatpush2.msra.mxu0 0.0
      %2419 = vmatprep.subr.mxu0 0.0
      %2420 = vmatpush2.msra.mxu0 0.0
      %2421 = vmatprep.subr.mxu0 0.0
      %2422 = vmatpush2.msra.mxu0 0.0
      %2423 = vmatprep.subr.mxu0 0.0
      %2424 = vmatpush2.msra.mxu0 0.0
      %2425 = vmatprep.subr.mxu0 0.0
      %2426 = vmatpush2.msra.mxu0 0.0
      %2427 = vmatprep.subr.mxu0 0.0
      %2428 = vmatpush2.msra.mxu0 0.0
      %2429 = vmatprep.subr.mxu0 0.0
      %2430 = vmatpush2.msra.mxu0 0.0
      %2431 = vmatprep.subr.mxu0 0.0
      %2432 = vmatpush2.msra.mxu0 0.0
      %2433 = vmatprep.mubr.f32.mxu0 0.0
      %v2434 = vand.u32 %v2050, 4294901760
      %2435 = vmatmul.mubr.f32.gmra.mxu0 %v2434
      %v2436 = vpop.f32.mrf.mxu0
      %v2437 = vadd.f32 %v2360, %v2436
      %v2438 = vpop.f32.mrf.mxu0
      %2439 = vdwg.mxu0
      %2440 = vmatprep.subr.mxu0 0.0
      %2441 = vmatpush1.msra.mxu0 0.0
      %2442 = vmatprep.subr.mxu0 0.0
      %2443 = vmatpush1.msra.mxu0 0.0
      %2444 = vmatprep.subr.mxu0 0.0
      %2445 = vmatpush1.msra.mxu0 0.0
      %2446 = vmatprep.subr.mxu0 0.0
      %2447 = vmatpush1.msra.mxu0 0.0
      %2448 = vmatprep.subr.mxu0 0.0
      %2449 = vmatpush1.msra.mxu0 0.0
      %2450 = vmatprep.subr.mxu0 0.0
      %2451 = vmatpush1.msra.mxu0 0.0
      %2452 = vmatprep.subr.mxu0 0.0
      %2453 = vmatpush1.msra.mxu0 0.0
      %2454 = vmatprep.subr.mxu0 0.0
      %2455 = vmatpush1.msra.mxu0 0.0
      %2456 = vmatprep.subr.mxu0 0.0
      %2457 = vmatpush1.msra.mxu0 0.0
      %2458 = vmatprep.subr.mxu0 0.0
      %2459 = vmatpush1.msra.mxu0 0.0
      %2460 = vmatprep.subr.mxu0 0.0
      %2461 = vmatpush1.msra.mxu0 0.0
      %2462 = vmatprep.subr.mxu0 0.0
      %2463 = vmatpush1.msra.mxu0 0.0
      %2464 = vmatprep.subr.mxu0 0.0
      %2465 = vmatpush1.msra.mxu0 0.0
      %2466 = vmatprep.subr.mxu0 0.0
      %2467 = vmatpush1.msra.mxu0 0.0
      %2468 = vmatprep.subr.mxu0 0.0
      %v2469 = vand.u32 %v2052, 4294901760
      %2470 = vmatpush1.msra.mxu0 %v2469
      %2471 = vmatprep.subr.mxu0 0.0
      %v2472 = vand.u32 %v2047, 4294901760
      %2473 = vmatpush1.msra.mxu0 %v2472
      %2474 = vmatprep.subr.mxu0 0.0
      %2475 = vmatpush2.msra.mxu0 0.0
      %2476 = vmatprep.subr.mxu0 0.0
      %2477 = vmatpush2.msra.mxu0 0.0
      %2478 = vmatprep.subr.mxu0 0.0
      %2479 = vmatpush2.msra.mxu0 0.0
      %2480 = vmatprep.subr.mxu0 0.0
      %2481 = vmatpush2.msra.mxu0 0.0
      %2482 = vmatprep.subr.mxu0 0.0
      %2483 = vmatpush2.msra.mxu0 0.0
      %2484 = vmatprep.subr.mxu0 0.0
      %2485 = vmatpush2.msra.mxu0 0.0
      %2486 = vmatprep.subr.mxu0 0.0
      %2487 = vmatpush2.msra.mxu0 0.0
      %2488 = vmatprep.subr.mxu0 0.0
      %2489 = vmatpush2.msra.mxu0 0.0
      %2490 = vmatprep.subr.mxu0 0.0
      %2491 = vmatpush2.msra.mxu0 0.0
      %2492 = vmatprep.subr.mxu0 0.0
      %2493 = vmatpush2.msra.mxu0 0.0
      %2494 = vmatprep.subr.mxu0 0.0
      %2495 = vmatpush2.msra.mxu0 0.0
      %2496 = vmatprep.subr.mxu0 0.0
      %2497 = vmatpush2.msra.mxu0 0.0
      %2498 = vmatprep.subr.mxu0 0.0
      %2499 = vmatpush2.msra.mxu0 0.0
      %2500 = vmatprep.subr.mxu0 0.0
      %2501 = vmatpush2.msra.mxu0 0.0
      %2502 = vmatprep.subr.mxu0 0.0
      %2503 = vmatpush2.msra.mxu0 0.0
      %2504 = vmatprep.subr.mxu0 0.0
      %2505 = vmatpush2.msra.mxu0 0.0
      %2506 = vmatprep.mubr.f32.mxu0 0.0
      %v2507 = vand.u32 %v2050, 4294901760
      %2508 = vmatmul.mubr.f32.gmra.mxu0 %v2507
      %v2509 = vpop.f32.mrf.mxu0
      %v2510 = vadd.f32 %v2437, %v2509
      %v2511 = vpop.f32.mrf.mxu0
      %2512 = vdwg.mxu0
      %2513 = vst.msk [vmem:[%s294 + $0x6] sm:$0x3f] %vm2028, %v2510
      %v2514 = vld [vmem:[%s5] sm:$0x3f]
      %v2517 = vrot.slane %v1535, 5
      %v2518 = vrot.slane %v1536, 5
      %v2519 = vsel %vm1551, %v2517, %v2518
      %v2523 = vadd.f32 %v1533, %v2517
      %v2524 = vadd.f32 %v1534, %v2519
      %v2525 = vadd.f32 %v1535, %v2518
      %vm2529 = vcmask 1043456
      %v2530 = vrot.slane %v2523, 4
      %v2531 = vrot.slane %v2524, 4
      %v2532 = vsel %vm2529, %v2530, %v2531
      %v2533 = vrot.slane %v2525, 4
      %v2534 = vsel %vm2529, %v2531, %v2533
      %v2537 = vsel %vm1561, %v2514, 0
      %v2539 = vsel %vm1565, %v2534, 0
      %2541 = vmatprep.subr.mxu0 0.0
      %2542 = vmatpush1.msra.mxu0 0.0
      %2543 = vmatprep.subr.mxu0 0.0
      %2544 = vmatpush1.msra.mxu0 0.0
      %2545 = vmatprep.subr.mxu0 0.0
      %2546 = vmatpush1.msra.mxu0 0.0
      %2547 = vmatprep.subr.mxu0 0.0
      %2548 = vmatpush1.msra.mxu0 0.0
      %2549 = vmatprep.subr.mxu0 0.0
      %2550 = vmatpush1.msra.mxu0 0.0
      %2551 = vmatprep.subr.mxu0 0.0
      %2552 = vmatpush1.msra.mxu0 0.0
      %2553 = vmatprep.subr.mxu0 0.0
      %2554 = vmatpush1.msra.mxu0 0.0
      %2555 = vmatprep.subr.mxu0 0.0
      %2556 = vmatpush1.msra.mxu0 0.0
      %2557 = vmatprep.subr.mxu0 0.0
      %2558 = vmatpush1.msra.mxu0 0.0
      %2559 = vmatprep.subr.mxu0 0.0
      %2560 = vmatpush1.msra.mxu0 0.0
      %2561 = vmatprep.subr.mxu0 0.0
      %2562 = vmatpush1.msra.mxu0 0.0
      %2563 = vmatprep.subr.mxu0 0.0
      %2564 = vmatpush1.msra.mxu0 0.0
      %2565 = vmatprep.subr.mxu0 0.0
      %2566 = vmatpush1.msra.mxu0 0.0
      %2567 = vmatprep.subr.mxu0 0.0
      %2568 = vmatpush1.msra.mxu0 0.0
      %2569 = vmatprep.subr.mxu0 0.0
      %v2570 = vand.u32 %v2539, 4294901760
      %2571 = vmatpush1.msra.mxu0 %v2570
      %2572 = vmatprep.subr.mxu0 0.0
      %v2573 = vand.u32 %v2532, 4294901760
      %2574 = vmatpush1.msra.mxu0 %v2573
      %2575 = vmatprep.subr.mxu0 0.0
      %2576 = vmatpush2.msra.mxu0 0.0
      %2577 = vmatprep.subr.mxu0 0.0
      %2578 = vmatpush2.msra.mxu0 0.0
      %2579 = vmatprep.subr.mxu0 0.0
      %2580 = vmatpush2.msra.mxu0 0.0
      %2581 = vmatprep.subr.mxu0 0.0
      %2582 = vmatpush2.msra.mxu0 0.0
      %2583 = vmatprep.subr.mxu0 0.0
      %2584 = vmatpush2.msra.mxu0 0.0
      %2585 = vmatprep.subr.mxu0 0.0
      %2586 = vmatpush2.msra.mxu0 0.0
      %2587 = vmatprep.subr.mxu0 0.0
      %2588 = vmatpush2.msra.mxu0 0.0
      %2589 = vmatprep.subr.mxu0 0.0
      %2590 = vmatpush2.msra.mxu0 0.0
      %2591 = vmatprep.subr.mxu0 0.0
      %2592 = vmatpush2.msra.mxu0 0.0
      %2593 = vmatprep.subr.mxu0 0.0
      %2594 = vmatpush2.msra.mxu0 0.0
      %2595 = vmatprep.subr.mxu0 0.0
      %2596 = vmatpush2.msra.mxu0 0.0
      %2597 = vmatprep.subr.mxu0 0.0
      %2598 = vmatpush2.msra.mxu0 0.0
      %2599 = vmatprep.subr.mxu0 0.0
      %2600 = vmatpush2.msra.mxu0 0.0
      %2601 = vmatprep.subr.mxu0 0.0
      %2602 = vmatpush2.msra.mxu0 0.0
      %2603 = vmatprep.subr.mxu0 0.0
      %2604 = vmatpush2.msra.mxu0 0.0
      %2605 = vmatprep.subr.mxu0 0.0
      %2606 = vmatpush2.msra.mxu0 0.0
      %2607 = vmatprep.mubr.f32.mxu0 0.0
      %v2608 = vand.u32 %v2537, 4294901760
      %v2609 = vsub.f32 %v2537, %v2608
      %v2610 = vand.u32 %v2609, 4294901760
      %v2611 = vsub.f32 %v2609, %v2610
      %v2612 = vand.u32 %v2611, 4294901760
      %2613 = vmatmul.mubr.f32.gmra.mxu0 %v2612
      %v2614 = vpop.f32.mrf.mxu0
      %v2615 = vadd.f32 0.0, %v2614
      %v2616 = vpop.f32.mrf.mxu0
      %2617 = vdwg.mxu0
      %2618 = vmatprep.subr.mxu0 0.0
      %2619 = vmatpush1.msra.mxu0 0.0
      %2620 = vmatprep.subr.mxu0 0.0
      %2621 = vmatpush1.msra.mxu0 0.0
      %2622 = vmatprep.subr.mxu0 0.0
      %2623 = vmatpush1.msra.mxu0 0.0
      %2624 = vmatprep.subr.mxu0 0.0
      %2625 = vmatpush1.msra.mxu0 0.0
      %2626 = vmatprep.subr.mxu0 0.0
      %2627 = vmatpush1.msra.mxu0 0.0
      %2628 = vmatprep.subr.mxu0 0.0
      %2629 = vmatpush1.msra.mxu0 0.0
      %2630 = vmatprep.subr.mxu0 0.0
      %2631 = vmatpush1.msra.mxu0 0.0
      %2632 = vmatprep.subr.mxu0 0.0
      %2633 = vmatpush1.msra.mxu0 0.0
      %2634 = vmatprep.subr.mxu0 0.0
      %2635 = vmatpush1.msra.mxu0 0.0
      %2636 = vmatprep.subr.mxu0 0.0
      %2637 = vmatpush1.msra.mxu0 0.0
      %2638 = vmatprep.subr.mxu0 0.0
      %2639 = vmatpush1.msra.mxu0 0.0
      %2640 = vmatprep.subr.mxu0 0.0
      %2641 = vmatpush1.msra.mxu0 0.0
      %2642 = vmatprep.subr.mxu0 0.0
      %2643 = vmatpush1.msra.mxu0 0.0
      %2644 = vmatprep.subr.mxu0 0.0
      %2645 = vmatpush1.msra.mxu0 0.0
      %2646 = vmatprep.subr.mxu0 0.0
      %v2647 = vand.u32 %v2539, 4294901760
      %v2648 = vsub.f32 %v2539, %v2647
      %v2649 = vand.u32 %v2648, 4294901760
      %v2650 = vsub.f32 %v2648, %v2649
      %v2651 = vand.u32 %v2650, 4294901760
      %2652 = vmatpush1.msra.mxu0 %v2651
      %2653 = vmatprep.subr.mxu0 0.0
      %v2654 = vand.u32 %v2532, 4294901760
      %v2655 = vsub.f32 %v2532, %v2654
      %v2656 = vand.u32 %v2655, 4294901760
      %v2657 = vsub.f32 %v2655, %v2656
      %v2658 = vand.u32 %v2657, 4294901760
      %2659 = vmatpush1.msra.mxu0 %v2658
      %2660 = vmatprep.subr.mxu0 0.0
      %2661 = vmatpush2.msra.mxu0 0.0
      %2662 = vmatprep.subr.mxu0 0.0
      %2663 = vmatpush2.msra.mxu0 0.0
      %2664 = vmatprep.subr.mxu0 0.0
      %2665 = vmatpush2.msra.mxu0 0.0
      %2666 = vmatprep.subr.mxu0 0.0
      %2667 = vmatpush2.msra.mxu0 0.0
      %2668 = vmatprep.subr.mxu0 0.0
      %2669 = vmatpush2.msra.mxu0 0.0
      %2670 = vmatprep.subr.mxu0 0.0
      %2671 = vmatpush2.msra.mxu0 0.0
      %2672 = vmatprep.subr.mxu0 0.0
      %2673 = vmatpush2.msra.mxu0 0.0
      %2674 = vmatprep.subr.mxu0 0.0
      %2675 = vmatpush2.msra.mxu0 0.0
      %2676 = vmatprep.subr.mxu0 0.0
      %2677 = vmatpush2.msra.mxu0 0.0
      %2678 = vmatprep.subr.mxu0 0.0
      %2679 = vmatpush2.msra.mxu0 0.0
      %2680 = vmatprep.subr.mxu0 0.0
      %2681 = vmatpush2.msra.mxu0 0.0
      %2682 = vmatprep.subr.mxu0 0.0
      %2683 = vmatpush2.msra.mxu0 0.0
      %2684 = vmatprep.subr.mxu0 0.0
      %2685 = vmatpush2.msra.mxu0 0.0
      %2686 = vmatprep.subr.mxu0 0.0
      %2687 = vmatpush2.msra.mxu0 0.0
      %2688 = vmatprep.subr.mxu0 0.0
      %2689 = vmatpush2.msra.mxu0 0.0
      %2690 = vmatprep.subr.mxu0 0.0
      %2691 = vmatpush2.msra.mxu0 0.0
      %2692 = vmatprep.mubr.f32.mxu0 0.0
      %v2693 = vand.u32 %v2537, 4294901760
      %2694 = vmatmul.mubr.f32.gmra.mxu0 %v2693
      %v2695 = vpop.f32.mrf.mxu0
      %v2696 = vadd.f32 %v2615, %v2695
      %v2697 = vpop.f32.mrf.mxu0
      %2698 = vdwg.mxu0
      %2699 = vmatprep.subr.mxu0 0.0
      %2700 = vmatpush1.msra.mxu0 0.0
      %2701 = vmatprep.subr.mxu0 0.0
      %2702 = vmatpush1.msra.mxu0 0.0
      %2703 = vmatprep.subr.mxu0 0.0
      %2704 = vmatpush1.msra.mxu0 0.0
      %2705 = vmatprep.subr.mxu0 0.0
      %2706 = vmatpush1.msra.mxu0 0.0
      %2707 = vmatprep.subr.mxu0 0.0
      %2708 = vmatpush1.msra.mxu0 0.0
      %2709 = vmatprep.subr.mxu0 0.0
      %2710 = vmatpush1.msra.mxu0 0.0
      %2711 = vmatprep.subr.mxu0 0.0
      %2712 = vmatpush1.msra.mxu0 0.0
      %2713 = vmatprep.subr.mxu0 0.0
      %2714 = vmatpush1.msra.mxu0 0.0
      %2715 = vmatprep.subr.mxu0 0.0
      %2716 = vmatpush1.msra.mxu0 0.0
      %2717 = vmatprep.subr.mxu0 0.0
      %2718 = vmatpush1.msra.mxu0 0.0
      %2719 = vmatprep.subr.mxu0 0.0
      %2720 = vmatpush1.msra.mxu0 0.0
      %2721 = vmatprep.subr.mxu0 0.0
      %2722 = vmatpush1.msra.mxu0 0.0
      %2723 = vmatprep.subr.mxu0 0.0
      %2724 = vmatpush1.msra.mxu0 0.0
      %2725 = vmatprep.subr.mxu0 0.0
      %2726 = vmatpush1.msra.mxu0 0.0
      %2727 = vmatprep.subr.mxu0 0.0
      %v2728 = vand.u32 %v2539, 4294901760
      %v2729 = vsub.f32 %v2539, %v2728
      %2730 = vmatpush1.msra.mxu0 %v2729
      %2731 = vmatprep.subr.mxu0 0.0
      %v2732 = vand.u32 %v2532, 4294901760
      %v2733 = vsub.f32 %v2532, %v2732
      %2734 = vmatpush1.msra.mxu0 %v2733
      %2735 = vmatprep.subr.mxu0 0.0
      %2736 = vmatpush2.msra.mxu0 0.0
      %2737 = vmatprep.subr.mxu0 0.0
      %2738 = vmatpush2.msra.mxu0 0.0
      %2739 = vmatprep.subr.mxu0 0.0
      %2740 = vmatpush2.msra.mxu0 0.0
      %2741 = vmatprep.subr.mxu0 0.0
      %2742 = vmatpush2.msra.mxu0 0.0
      %2743 = vmatprep.subr.mxu0 0.0
      %2744 = vmatpush2.msra.mxu0 0.0
      %2745 = vmatprep.subr.mxu0 0.0
      %2746 = vmatpush2.msra.mxu0 0.0
      %2747 = vmatprep.subr.mxu0 0.0
      %2748 = vmatpush2.msra.mxu0 0.0
      %2749 = vmatprep.subr.mxu0 0.0
      %2750 = vmatpush2.msra.mxu0 0.0
      %2751 = vmatprep.subr.mxu0 0.0
      %2752 = vmatpush2.msra.mxu0 0.0
      %2753 = vmatprep.subr.mxu0 0.0
      %2754 = vmatpush2.msra.mxu0 0.0
      %2755 = vmatprep.subr.mxu0 0.0
      %2756 = vmatpush2.msra.mxu0 0.0
      %2757 = vmatprep.subr.mxu0 0.0
      %2758 = vmatpush2.msra.mxu0 0.0
      %2759 = vmatprep.subr.mxu0 0.0
      %2760 = vmatpush2.msra.mxu0 0.0
      %2761 = vmatprep.subr.mxu0 0.0
      %2762 = vmatpush2.msra.mxu0 0.0
      %2763 = vmatprep.subr.mxu0 0.0
      %2764 = vmatpush2.msra.mxu0 0.0
      %2765 = vmatprep.subr.mxu0 0.0
      %2766 = vmatpush2.msra.mxu0 0.0
      %2767 = vmatprep.mubr.f32.mxu0 0.0
      %v2768 = vand.u32 %v2537, 4294901760
      %v2769 = vsub.f32 %v2537, %v2768
      %2770 = vmatmul.mubr.f32.gmra.mxu0 %v2769
      %v2771 = vpop.f32.mrf.mxu0
      %v2772 = vadd.f32 %v2696, %v2771
      %v2773 = vpop.f32.mrf.mxu0
      %2774 = vdwg.mxu0
      %2775 = vmatprep.subr.mxu0 0.0
      %2776 = vmatpush1.msra.mxu0 0.0
      %2777 = vmatprep.subr.mxu0 0.0
      %2778 = vmatpush1.msra.mxu0 0.0
      %2779 = vmatprep.subr.mxu0 0.0
      %2780 = vmatpush1.msra.mxu0 0.0
      %2781 = vmatprep.subr.mxu0 0.0
      %2782 = vmatpush1.msra.mxu0 0.0
      %2783 = vmatprep.subr.mxu0 0.0
      %2784 = vmatpush1.msra.mxu0 0.0
      %2785 = vmatprep.subr.mxu0 0.0
      %2786 = vmatpush1.msra.mxu0 0.0
      %2787 = vmatprep.subr.mxu0 0.0
      %2788 = vmatpush1.msra.mxu0 0.0
      %2789 = vmatprep.subr.mxu0 0.0
      %2790 = vmatpush1.msra.mxu0 0.0
      %2791 = vmatprep.subr.mxu0 0.0
      %2792 = vmatpush1.msra.mxu0 0.0
      %2793 = vmatprep.subr.mxu0 0.0
      %2794 = vmatpush1.msra.mxu0 0.0
      %2795 = vmatprep.subr.mxu0 0.0
      %2796 = vmatpush1.msra.mxu0 0.0
      %2797 = vmatprep.subr.mxu0 0.0
      %2798 = vmatpush1.msra.mxu0 0.0
      %2799 = vmatprep.subr.mxu0 0.0
      %2800 = vmatpush1.msra.mxu0 0.0
      %2801 = vmatprep.subr.mxu0 0.0
      %2802 = vmatpush1.msra.mxu0 0.0
      %2803 = vmatprep.subr.mxu0 0.0
      %v2804 = vand.u32 %v2539, 4294901760
      %2805 = vmatpush1.msra.mxu0 %v2804
      %2806 = vmatprep.subr.mxu0 0.0
      %v2807 = vand.u32 %v2532, 4294901760
      %2808 = vmatpush1.msra.mxu0 %v2807
      %2809 = vmatprep.subr.mxu0 0.0
      %2810 = vmatpush2.msra.mxu0 0.0
      %2811 = vmatprep.subr.mxu0 0.0
      %2812 = vmatpush2.msra.mxu0 0.0
      %2813 = vmatprep.subr.mxu0 0.0
      %2814 = vmatpush2.msra.mxu0 0.0
      %2815 = vmatprep.subr.mxu0 0.0
      %2816 = vmatpush2.msra.mxu0 0.0
      %2817 = vmatprep.subr.mxu0 0.0
      %2818 = vmatpush2.msra.mxu0 0.0
      %2819 = vmatprep.subr.mxu0 0.0
      %2820 = vmatpush2.msra.mxu0 0.0
      %2821 = vmatprep.subr.mxu0 0.0
      %2822 = vmatpush2.msra.mxu0 0.0
      %2823 = vmatprep.subr.mxu0 0.0
      %2824 = vmatpush2.msra.mxu0 0.0
      %2825 = vmatprep.subr.mxu0 0.0
      %2826 = vmatpush2.msra.mxu0 0.0
      %2827 = vmatprep.subr.mxu0 0.0
      %2828 = vmatpush2.msra.mxu0 0.0
      %2829 = vmatprep.subr.mxu0 0.0
      %2830 = vmatpush2.msra.mxu0 0.0
      %2831 = vmatprep.subr.mxu0 0.0
      %2832 = vmatpush2.msra.mxu0 0.0
      %2833 = vmatprep.subr.mxu0 0.0
      %2834 = vmatpush2.msra.mxu0 0.0
      %2835 = vmatprep.subr.mxu0 0.0
      %2836 = vmatpush2.msra.mxu0 0.0
      %2837 = vmatprep.subr.mxu0 0.0
      %2838 = vmatpush2.msra.mxu0 0.0
      %2839 = vmatprep.subr.mxu0 0.0
      %2840 = vmatpush2.msra.mxu0 0.0
      %2841 = vmatprep.mubr.f32.mxu0 0.0
      %v2842 = vand.u32 %v2537, 4294901760
      %v2843 = vsub.f32 %v2537, %v2842
      %v2844 = vand.u32 %v2843, 4294901760
      %2845 = vmatmul.mubr.f32.gmra.mxu0 %v2844
      %v2846 = vpop.f32.mrf.mxu0
      %v2847 = vadd.f32 %v2772, %v2846
      %v2848 = vpop.f32.mrf.mxu0
      %2849 = vdwg.mxu0
      %2850 = vmatprep.subr.mxu0 0.0
      %2851 = vmatpush1.msra.mxu0 0.0
      %2852 = vmatprep.subr.mxu0 0.0
      %2853 = vmatpush1.msra.mxu0 0.0
      %2854 = vmatprep.subr.mxu0 0.0
      %2855 = vmatpush1.msra.mxu0 0.0
      %2856 = vmatprep.subr.mxu0 0.0
      %2857 = vmatpush1.msra.mxu0 0.0
      %2858 = vmatprep.subr.mxu0 0.0
      %2859 = vmatpush1.msra.mxu0 0.0
      %2860 = vmatprep.subr.mxu0 0.0
      %2861 = vmatpush1.msra.mxu0 0.0
      %2862 = vmatprep.subr.mxu0 0.0
      %2863 = vmatpush1.msra.mxu0 0.0
      %2864 = vmatprep.subr.mxu0 0.0
      %2865 = vmatpush1.msra.mxu0 0.0
      %2866 = vmatprep.subr.mxu0 0.0
      %2867 = vmatpush1.msra.mxu0 0.0
      %2868 = vmatprep.subr.mxu0 0.0
      %2869 = vmatpush1.msra.mxu0 0.0
      %2870 = vmatprep.subr.mxu0 0.0
      %2871 = vmatpush1.msra.mxu0 0.0
      %2872 = vmatprep.subr.mxu0 0.0
      %2873 = vmatpush1.msra.mxu0 0.0
      %2874 = vmatprep.subr.mxu0 0.0
      %2875 = vmatpush1.msra.mxu0 0.0
      %2876 = vmatprep.subr.mxu0 0.0
      %2877 = vmatpush1.msra.mxu0 0.0
      %2878 = vmatprep.subr.mxu0 0.0
      %v2879 = vand.u32 %v2539, 4294901760
      %v2880 = vsub.f32 %v2539, %v2879
      %v2881 = vand.u32 %v2880, 4294901760
      %2882 = vmatpush1.msra.mxu0 %v2881
      %2883 = vmatprep.subr.mxu0 0.0
      %v2884 = vand.u32 %v2532, 4294901760
      %v2885 = vsub.f32 %v2532, %v2884
      %v2886 = vand.u32 %v2885, 4294901760
      %2887 = vmatpush1.msra.mxu0 %v2886
      %2888 = vmatprep.subr.mxu0 0.0
      %2889 = vmatpush2.msra.mxu0 0.0
      %2890 = vmatprep.subr.mxu0 0.0
      %2891 = vmatpush2.msra.mxu0 0.0
      %2892 = vmatprep.subr.mxu0 0.0
      %2893 = vmatpush2.msra.mxu0 0.0
      %2894 = vmatprep.subr.mxu0 0.0
      %2895 = vmatpush2.msra.mxu0 0.0
      %2896 = vmatprep.subr.mxu0 0.0
      %2897 = vmatpush2.msra.mxu0 0.0
      %2898 = vmatprep.subr.mxu0 0.0
      %2899 = vmatpush2.msra.mxu0 0.0
      %2900 = vmatprep.subr.mxu0 0.0
      %2901 = vmatpush2.msra.mxu0 0.0
      %2902 = vmatprep.subr.mxu0 0.0
      %2903 = vmatpush2.msra.mxu0 0.0
      %2904 = vmatprep.subr.mxu0 0.0
      %2905 = vmatpush2.msra.mxu0 0.0
      %2906 = vmatprep.subr.mxu0 0.0
      %2907 = vmatpush2.msra.mxu0 0.0
      %2908 = vmatprep.subr.mxu0 0.0
      %2909 = vmatpush2.msra.mxu0 0.0
      %2910 = vmatprep.subr.mxu0 0.0
      %2911 = vmatpush2.msra.mxu0 0.0
      %2912 = vmatprep.subr.mxu0 0.0
      %2913 = vmatpush2.msra.mxu0 0.0
      %2914 = vmatprep.subr.mxu0 0.0
      %2915 = vmatpush2.msra.mxu0 0.0
      %2916 = vmatprep.subr.mxu0 0.0
      %2917 = vmatpush2.msra.mxu0 0.0
      %2918 = vmatprep.subr.mxu0 0.0
      %2919 = vmatpush2.msra.mxu0 0.0
      %2920 = vmatprep.mubr.f32.mxu0 0.0
      %v2921 = vand.u32 %v2537, 4294901760
      %2922 = vmatmul.mubr.f32.gmra.mxu0 %v2921
      %v2923 = vpop.f32.mrf.mxu0
      %v2924 = vadd.f32 %v2847, %v2923
      %v2925 = vpop.f32.mrf.mxu0
      %2926 = vdwg.mxu0
      %2927 = vmatprep.subr.mxu0 0.0
      %2928 = vmatpush1.msra.mxu0 0.0
      %2929 = vmatprep.subr.mxu0 0.0
      %2930 = vmatpush1.msra.mxu0 0.0
      %2931 = vmatprep.subr.mxu0 0.0
      %2932 = vmatpush1.msra.mxu0 0.0
      %2933 = vmatprep.subr.mxu0 0.0
      %2934 = vmatpush1.msra.mxu0 0.0
      %2935 = vmatprep.subr.mxu0 0.0
      %2936 = vmatpush1.msra.mxu0 0.0
      %2937 = vmatprep.subr.mxu0 0.0
      %2938 = vmatpush1.msra.mxu0 0.0
      %2939 = vmatprep.subr.mxu0 0.0
      %2940 = vmatpush1.msra.mxu0 0.0
      %2941 = vmatprep.subr.mxu0 0.0
      %2942 = vmatpush1.msra.mxu0 0.0
      %2943 = vmatprep.subr.mxu0 0.0
      %2944 = vmatpush1.msra.mxu0 0.0
      %2945 = vmatprep.subr.mxu0 0.0
      %2946 = vmatpush1.msra.mxu0 0.0
      %2947 = vmatprep.subr.mxu0 0.0
      %2948 = vmatpush1.msra.mxu0 0.0
      %2949 = vmatprep.subr.mxu0 0.0
      %2950 = vmatpush1.msra.mxu0 0.0
      %2951 = vmatprep.subr.mxu0 0.0
      %2952 = vmatpush1.msra.mxu0 0.0
      %2953 = vmatprep.subr.mxu0 0.0
      %2954 = vmatpush1.msra.mxu0 0.0
      %2955 = vmatprep.subr.mxu0 0.0
      %v2956 = vand.u32 %v2539, 4294901760
      %2957 = vmatpush1.msra.mxu0 %v2956
      %2958 = vmatprep.subr.mxu0 0.0
      %v2959 = vand.u32 %v2532, 4294901760
      %2960 = vmatpush1.msra.mxu0 %v2959
      %2961 = vmatprep.subr.mxu0 0.0
      %2962 = vmatpush2.msra.mxu0 0.0
      %2963 = vmatprep.subr.mxu0 0.0
      %2964 = vmatpush2.msra.mxu0 0.0
      %2965 = vmatprep.subr.mxu0 0.0
      %2966 = vmatpush2.msra.mxu0 0.0
      %2967 = vmatprep.subr.mxu0 0.0
      %2968 = vmatpush2.msra.mxu0 0.0
      %2969 = vmatprep.subr.mxu0 0.0
      %2970 = vmatpush2.msra.mxu0 0.0
      %2971 = vmatprep.subr.mxu0 0.0
      %2972 = vmatpush2.msra.mxu0 0.0
      %2973 = vmatprep.subr.mxu0 0.0
      %2974 = vmatpush2.msra.mxu0 0.0
      %2975 = vmatprep.subr.mxu0 0.0
      %2976 = vmatpush2.msra.mxu0 0.0
      %2977 = vmatprep.subr.mxu0 0.0
      %2978 = vmatpush2.msra.mxu0 0.0
      %2979 = vmatprep.subr.mxu0 0.0
      %2980 = vmatpush2.msra.mxu0 0.0
      %2981 = vmatprep.subr.mxu0 0.0
      %2982 = vmatpush2.msra.mxu0 0.0
      %2983 = vmatprep.subr.mxu0 0.0
      %2984 = vmatpush2.msra.mxu0 0.0
      %2985 = vmatprep.subr.mxu0 0.0
      %2986 = vmatpush2.msra.mxu0 0.0
      %2987 = vmatprep.subr.mxu0 0.0
      %2988 = vmatpush2.msra.mxu0 0.0
      %2989 = vmatprep.subr.mxu0 0.0
      %2990 = vmatpush2.msra.mxu0 0.0
      %2991 = vmatprep.subr.mxu0 0.0
      %2992 = vmatpush2.msra.mxu0 0.0
      %2993 = vmatprep.mubr.f32.mxu0 0.0
      %v2994 = vand.u32 %v2537, 4294901760
      %2995 = vmatmul.mubr.f32.gmra.mxu0 %v2994
      %v2996 = vpop.f32.mrf.mxu0
      %v2997 = vadd.f32 %v2924, %v2996
      %v2998 = vpop.f32.mrf.mxu0
      %2999 = vdwg.mxu0
      %3000 = vst.msk [vmem:[%s294 + $0xc] sm:$0x3f] %vm2028, %v2997
      %v3001 = vld [vmem:[%s5] sm:$0x3f]
      %v3004 = vrot.slane %v1538, 5
      %v3005 = vrot.slane %v1539, 5
      %v3006 = vsel %vm1551, %v3004, %v3005
      %v3010 = vadd.f32 %v1536, %v3004
      %v3011 = vadd.f32 %v1537, %v3006
      %v3012 = vadd.f32 %v1538, %v3005
      %vm3016 = vcmask 1041408
      %v3017 = vrot.slane %v3010, 6
      %v3018 = vrot.slane %v3011, 6
      %v3019 = vsel %vm3016, %v3017, %v3018
      %v3020 = vrot.slane %v3012, 6
      %v3021 = vsel %vm3016, %v3018, %v3020
      %v3024 = vsel %vm1561, %v3001, 0
      %v3026 = vsel %vm1565, %v3021, 0
      %3028 = vmatprep.subr.mxu0 0.0
      %3029 = vmatpush1.msra.mxu0 0.0
      %3030 = vmatprep.subr.mxu0 0.0
      %3031 = vmatpush1.msra.mxu0 0.0
      %3032 = vmatprep.subr.mxu0 0.0
      %3033 = vmatpush1.msra.mxu0 0.0
      %3034 = vmatprep.subr.mxu0 0.0
      %3035 = vmatpush1.msra.mxu0 0.0
      %3036 = vmatprep.subr.mxu0 0.0
      %3037 = vmatpush1.msra.mxu0 0.0
      %3038 = vmatprep.subr.mxu0 0.0
      %3039 = vmatpush1.msra.mxu0 0.0
      %3040 = vmatprep.subr.mxu0 0.0
      %3041 = vmatpush1.msra.mxu0 0.0
      %3042 = vmatprep.subr.mxu0 0.0
      %3043 = vmatpush1.msra.mxu0 0.0
      %3044 = vmatprep.subr.mxu0 0.0
      %3045 = vmatpush1.msra.mxu0 0.0
      %3046 = vmatprep.subr.mxu0 0.0
      %3047 = vmatpush1.msra.mxu0 0.0
      %3048 = vmatprep.subr.mxu0 0.0
      %3049 = vmatpush1.msra.mxu0 0.0
      %3050 = vmatprep.subr.mxu0 0.0
      %3051 = vmatpush1.msra.mxu0 0.0
      %3052 = vmatprep.subr.mxu0 0.0
      %3053 = vmatpush1.msra.mxu0 0.0
      %3054 = vmatprep.subr.mxu0 0.0
      %3055 = vmatpush1.msra.mxu0 0.0
      %3056 = vmatprep.subr.mxu0 0.0
      %v3057 = vand.u32 %v3026, 4294901760
      %3058 = vmatpush1.msra.mxu0 %v3057
      %3059 = vmatprep.subr.mxu0 0.0
      %v3060 = vand.u32 %v3019, 4294901760
      %3061 = vmatpush1.msra.mxu0 %v3060
      %3062 = vmatprep.subr.mxu0 0.0
      %3063 = vmatpush2.msra.mxu0 0.0
      %3064 = vmatprep.subr.mxu0 0.0
      %3065 = vmatpush2.msra.mxu0 0.0
      %3066 = vmatprep.subr.mxu0 0.0
      %3067 = vmatpush2.msra.mxu0 0.0
      %3068 = vmatprep.subr.mxu0 0.0
      %3069 = vmatpush2.msra.mxu0 0.0
      %3070 = vmatprep.subr.mxu0 0.0
      %3071 = vmatpush2.msra.mxu0 0.0
      %3072 = vmatprep.subr.mxu0 0.0
      %3073 = vmatpush2.msra.mxu0 0.0
      %3074 = vmatprep.subr.mxu0 0.0
      %3075 = vmatpush2.msra.mxu0 0.0
      %3076 = vmatprep.subr.mxu0 0.0
      %3077 = vmatpush2.msra.mxu0 0.0
      %3078 = vmatprep.subr.mxu0 0.0
      %3079 = vmatpush2.msra.mxu0 0.0
      %3080 = vmatprep.subr.mxu0 0.0
      %3081 = vmatpush2.msra.mxu0 0.0
      %3082 = vmatprep.subr.mxu0 0.0
      %3083 = vmatpush2.msra.mxu0 0.0
      %3084 = vmatprep.subr.mxu0 0.0
      %3085 = vmatpush2.msra.mxu0 0.0
      %3086 = vmatprep.subr.mxu0 0.0
      %3087 = vmatpush2.msra.mxu0 0.0
      %3088 = vmatprep.subr.mxu0 0.0
      %3089 = vmatpush2.msra.mxu0 0.0
      %3090 = vmatprep.subr.mxu0 0.0
      %3091 = vmatpush2.msra.mxu0 0.0
      %3092 = vmatprep.subr.mxu0 0.0
      %3093 = vmatpush2.msra.mxu0 0.0
      %3094 = vmatprep.mubr.f32.mxu0 0.0
      %v3095 = vand.u32 %v3024, 4294901760
      %v3096 = vsub.f32 %v3024, %v3095
      %v3097 = vand.u32 %v3096, 4294901760
      %v3098 = vsub.f32 %v3096, %v3097
      %v3099 = vand.u32 %v3098, 4294901760
      %3100 = vmatmul.mubr.f32.gmra.mxu0 %v3099
      %v3101 = vpop.f32.mrf.mxu0
      %v3102 = vadd.f32 0.0, %v3101
      %v3103 = vpop.f32.mrf.mxu0
      %3104 = vdwg.mxu0
      %3105 = vmatprep.subr.mxu0 0.0
      %3106 = vmatpush1.msra.mxu0 0.0
      %3107 = vmatprep.subr.mxu0 0.0
      %3108 = vmatpush1.msra.mxu0 0.0
      %3109 = vmatprep.subr.mxu0 0.0
      %3110 = vmatpush1.msra.mxu0 0.0
      %3111 = vmatprep.subr.mxu0 0.0
      %3112 = vmatpush1.msra.mxu0 0.0
      %3113 = vmatprep.subr.mxu0 0.0
      %3114 = vmatpush1.msra.mxu0 0.0
      %3115 = vmatprep.subr.mxu0 0.0
      %3116 = vmatpush1.msra.mxu0 0.0
      %3117 = vmatprep.subr.mxu0 0.0
      %3118 = vmatpush1.msra.mxu0 0.0
      %3119 = vmatprep.subr.mxu0 0.0
      %3120 = vmatpush1.msra.mxu0 0.0
      %3121 = vmatprep.subr.mxu0 0.0
      %3122 = vmatpush1.msra.mxu0 0.0
      %3123 = vmatprep.subr.mxu0 0.0
      %3124 = vmatpush1.msra.mxu0 0.0
      %3125 = vmatprep.subr.mxu0 0.0
      %3126 = vmatpush1.msra.mxu0 0.0
      %3127 = vmatprep.subr.mxu0 0.0
      %3128 = vmatpush1.msra.mxu0 0.0
      %3129 = vmatprep.subr.mxu0 0.0
      %3130 = vmatpush1.msra.mxu0 0.0
      %3131 = vmatprep.subr.mxu0 0.0
      %3132 = vmatpush1.msra.mxu0 0.0
      %3133 = vmatprep.subr.mxu0 0.0
      %v3134 = vand.u32 %v3026, 4294901760
      %v3135 = vsub.f32 %v3026, %v3134
      %v3136 = vand.u32 %v3135, 4294901760
      %v3137 = vsub.f32 %v3135, %v3136
      %v3138 = vand.u32 %v3137, 4294901760
      %3139 = vmatpush1.msra.mxu0 %v3138
      %3140 = vmatprep.subr.mxu0 0.0
      %v3141 = vand.u32 %v3019, 4294901760
      %v3142 = vsub.f32 %v3019, %v3141
      %v3143 = vand.u32 %v3142, 4294901760
      %v3144 = vsub.f32 %v3142, %v3143
      %v3145 = vand.u32 %v3144, 4294901760
      %3146 = vmatpush1.msra.mxu0 %v3145
      %3147 = vmatprep.subr.mxu0 0.0
      %3148 = vmatpush2.msra.mxu0 0.0
      %3149 = vmatprep.subr.mxu0 0.0
      %3150 = vmatpush2.msra.mxu0 0.0
      %3151 = vmatprep.subr.mxu0 0.0
      %3152 = vmatpush2.msra.mxu0 0.0
      %3153 = vmatprep.subr.mxu0 0.0
      %3154 = vmatpush2.msra.mxu0 0.0
      %3155 = vmatprep.subr.mxu0 0.0
      %3156 = vmatpush2.msra.mxu0 0.0
      %3157 = vmatprep.subr.mxu0 0.0
      %3158 = vmatpush2.msra.mxu0 0.0
      %3159 = vmatprep.subr.mxu0 0.0
      %3160 = vmatpush2.msra.mxu0 0.0
      %3161 = vmatprep.subr.mxu0 0.0
      %3162 = vmatpush2.msra.mxu0 0.0
      %3163 = vmatprep.subr.mxu0 0.0
      %3164 = vmatpush2.msra.mxu0 0.0
      %3165 = vmatprep.subr.mxu0 0.0
      %3166 = vmatpush2.msra.mxu0 0.0
      %3167 = vmatprep.subr.mxu0 0.0
      %3168 = vmatpush2.msra.mxu0 0.0
      %3169 = vmatprep.subr.mxu0 0.0
      %3170 = vmatpush2.msra.mxu0 0.0
      %3171 = vmatprep.subr.mxu0 0.0
      %3172 = vmatpush2.msra.mxu0 0.0
      %3173 = vmatprep.subr.mxu0 0.0
      %3174 = vmatpush2.msra.mxu0 0.0
      %3175 = vmatprep.subr.mxu0 0.0
      %3176 = vmatpush2.msra.mxu0 0.0
      %3177 = vmatprep.subr.mxu0 0.0
      %3178 = vmatpush2.msra.mxu0 0.0
      %3179 = vmatprep.mubr.f32.mxu0 0.0
      %v3180 = vand.u32 %v3024, 4294901760
      %3181 = vmatmul.mubr.f32.gmra.mxu0 %v3180
      %v3182 = vpop.f32.mrf.mxu0
      %v3183 = vadd.f32 %v3102, %v3182
      %v3184 = vpop.f32.mrf.mxu0
      %3185 = vdwg.mxu0
      %3186 = vmatprep.subr.mxu0 0.0
      %3187 = vmatpush1.msra.mxu0 0.0
      %3188 = vmatprep.subr.mxu0 0.0
      %3189 = vmatpush1.msra.mxu0 0.0
      %3190 = vmatprep.subr.mxu0 0.0
      %3191 = vmatpush1.msra.mxu0 0.0
      %3192 = vmatprep.subr.mxu0 0.0
      %3193 = vmatpush1.msra.mxu0 0.0
      %3194 = vmatprep.subr.mxu0 0.0
      %3195 = vmatpush1.msra.mxu0 0.0
      %3196 = vmatprep.subr.mxu0 0.0
      %3197 = vmatpush1.msra.mxu0 0.0
      %3198 = vmatprep.subr.mxu0 0.0
      %3199 = vmatpush1.msra.mxu0 0.0
      %3200 = vmatprep.subr.mxu0 0.0
      %3201 = vmatpush1.msra.mxu0 0.0
      %3202 = vmatprep.subr.mxu0 0.0
      %3203 = vmatpush1.msra.mxu0 0.0
      %3204 = vmatprep.subr.mxu0 0.0
      %3205 = vmatpush1.msra.mxu0 0.0
      %3206 = vmatprep.subr.mxu0 0.0
      %3207 = vmatpush1.msra.mxu0 0.0
      %3208 = vmatprep.subr.mxu0 0.0
      %3209 = vmatpush1.msra.mxu0 0.0
      %3210 = vmatprep.subr.mxu0 0.0
      %3211 = vmatpush1.msra.mxu0 0.0
      %3212 = vmatprep.subr.mxu0 0.0
      %3213 = vmatpush1.msra.mxu0 0.0
      %3214 = vmatprep.subr.mxu0 0.0
      %v3215 = vand.u32 %v3026, 4294901760
      %v3216 = vsub.f32 %v3026, %v3215
      %3217 = vmatpush1.msra.mxu0 %v3216
      %3218 = vmatprep.subr.mxu0 0.0
      %v3219 = vand.u32 %v3019, 4294901760
      %v3220 = vsub.f32 %v3019, %v3219
      %3221 = vmatpush1.msra.mxu0 %v3220
      %3222 = vmatprep.subr.mxu0 0.0
      %3223 = vmatpush2.msra.mxu0 0.0
      %3224 = vmatprep.subr.mxu0 0.0
      %3225 = vmatpush2.msra.mxu0 0.0
      %3226 = vmatprep.subr.mxu0 0.0
      %3227 = vmatpush2.msra.mxu0 0.0
      %3228 = vmatprep.subr.mxu0 0.0
      %3229 = vmatpush2.msra.mxu0 0.0
      %3230 = vmatprep.subr.mxu0 0.0
      %3231 = vmatpush2.msra.mxu0 0.0
      %3232 = vmatprep.subr.mxu0 0.0
      %3233 = vmatpush2.msra.mxu0 0.0
      %3234 = vmatprep.subr.mxu0 0.0
      %3235 = vmatpush2.msra.mxu0 0.0
      %3236 = vmatprep.subr.mxu0 0.0
      %3237 = vmatpush2.msra.mxu0 0.0
      %3238 = vmatprep.subr.mxu0 0.0
      %3239 = vmatpush2.msra.mxu0 0.0
      %3240 = vmatprep.subr.mxu0 0.0
      %3241 = vmatpush2.msra.mxu0 0.0
      %3242 = vmatprep.subr.mxu0 0.0
      %3243 = vmatpush2.msra.mxu0 0.0
      %3244 = vmatprep.subr.mxu0 0.0
      %3245 = vmatpush2.msra.mxu0 0.0
      %3246 = vmatprep.subr.mxu0 0.0
      %3247 = vmatpush2.msra.mxu0 0.0
      %3248 = vmatprep.subr.mxu0 0.0
      %3249 = vmatpush2.msra.mxu0 0.0
      %3250 = vmatprep.subr.mxu0 0.0
      %3251 = vmatpush2.msra.mxu0 0.0
      %3252 = vmatprep.subr.mxu0 0.0
      %3253 = vmatpush2.msra.mxu0 0.0
      %3254 = vmatprep.mubr.f32.mxu0 0.0
      %v3255 = vand.u32 %v3024, 4294901760
      %v3256 = vsub.f32 %v3024, %v3255
      %3257 = vmatmul.mubr.f32.gmra.mxu0 %v3256
      %v3258 = vpop.f32.mrf.mxu0
      %v3259 = vadd.f32 %v3183, %v3258
      %v3260 = vpop.f32.mrf.mxu0
      %3261 = vdwg.mxu0
      %3262 = vmatprep.subr.mxu0 0.0
      %3263 = vmatpush1.msra.mxu0 0.0
      %3264 = vmatprep.subr.mxu0 0.0
      %3265 = vmatpush1.msra.mxu0 0.0
      %3266 = vmatprep.subr.mxu0 0.0
      %3267 = vmatpush1.msra.mxu0 0.0
      %3268 = vmatprep.subr.mxu0 0.0
      %3269 = vmatpush1.msra.mxu0 0.0
      %3270 = vmatprep.subr.mxu0 0.0
      %3271 = vmatpush1.msra.mxu0 0.0
      %3272 = vmatprep.subr.mxu0 0.0
      %3273 = vmatpush1.msra.mxu0 0.0
      %3274 = vmatprep.subr.mxu0 0.0
      %3275 = vmatpush1.msra.mxu0 0.0
      %3276 = vmatprep.subr.mxu0 0.0
      %3277 = vmatpush1.msra.mxu0 0.0
      %3278 = vmatprep.subr.mxu0 0.0
      %3279 = vmatpush1.msra.mxu0 0.0
      %3280 = vmatprep.subr.mxu0 0.0
      %3281 = vmatpush1.msra.mxu0 0.0
      %3282 = vmatprep.subr.mxu0 0.0
      %3283 = vmatpush1.msra.mxu0 0.0
      %3284 = vmatprep.subr.mxu0 0.0
      %3285 = vmatpush1.msra.mxu0 0.0
      %3286 = vmatprep.subr.mxu0 0.0
      %3287 = vmatpush1.msra.mxu0 0.0
      %3288 = vmatprep.subr.mxu0 0.0
      %3289 = vmatpush1.msra.mxu0 0.0
      %3290 = vmatprep.subr.mxu0 0.0
      %v3291 = vand.u32 %v3026, 4294901760
      %3292 = vmatpush1.msra.mxu0 %v3291
      %3293 = vmatprep.subr.mxu0 0.0
      %v3294 = vand.u32 %v3019, 4294901760
      %3295 = vmatpush1.msra.mxu0 %v3294
      %3296 = vmatprep.subr.mxu0 0.0
      %3297 = vmatpush2.msra.mxu0 0.0
      %3298 = vmatprep.subr.mxu0 0.0
      %3299 = vmatpush2.msra.mxu0 0.0
      %3300 = vmatprep.subr.mxu0 0.0
      %3301 = vmatpush2.msra.mxu0 0.0
      %3302 = vmatprep.subr.mxu0 0.0
      %3303 = vmatpush2.msra.mxu0 0.0
      %3304 = vmatprep.subr.mxu0 0.0
      %3305 = vmatpush2.msra.mxu0 0.0
      %3306 = vmatprep.subr.mxu0 0.0
      %3307 = vmatpush2.msra.mxu0 0.0
      %3308 = vmatprep.subr.mxu0 0.0
      %3309 = vmatpush2.msra.mxu0 0.0
      %3310 = vmatprep.subr.mxu0 0.0
      %3311 = vmatpush2.msra.mxu0 0.0
      %3312 = vmatprep.subr.mxu0 0.0
      %3313 = vmatpush2.msra.mxu0 0.0
      %3314 = vmatprep.subr.mxu0 0.0
      %3315 = vmatpush2.msra.mxu0 0.0
      %3316 = vmatprep.subr.mxu0 0.0
      %3317 = vmatpush2.msra.mxu0 0.0
      %3318 = vmatprep.subr.mxu0 0.0
      %3319 = vmatpush2.msra.mxu0 0.0
      %3320 = vmatprep.subr.mxu0 0.0
      %3321 = vmatpush2.msra.mxu0 0.0
      %3322 = vmatprep.subr.mxu0 0.0
      %3323 = vmatpush2.msra.mxu0 0.0
      %3324 = vmatprep.subr.mxu0 0.0
      %3325 = vmatpush2.msra.mxu0 0.0
      %3326 = vmatprep.subr.mxu0 0.0
      %3327 = vmatpush2.msra.mxu0 0.0
      %3328 = vmatprep.mubr.f32.mxu0 0.0
      %v3329 = vand.u32 %v3024, 4294901760
      %v3330 = vsub.f32 %v3024, %v3329
      %v3331 = vand.u32 %v3330, 4294901760
      %3332 = vmatmul.mubr.f32.gmra.mxu0 %v3331
      %v3333 = vpop.f32.mrf.mxu0
      %v3334 = vadd.f32 %v3259, %v3333
      %v3335 = vpop.f32.mrf.mxu0
      %3336 = vdwg.mxu0
      %3337 = vmatprep.subr.mxu0 0.0
      %3338 = vmatpush1.msra.mxu0 0.0
      %3339 = vmatprep.subr.mxu0 0.0
      %3340 = vmatpush1.msra.mxu0 0.0
      %3341 = vmatprep.subr.mxu0 0.0
      %3342 = vmatpush1.msra.mxu0 0.0
      %3343 = vmatprep.subr.mxu0 0.0
      %3344 = vmatpush1.msra.mxu0 0.0
      %3345 = vmatprep.subr.mxu0 0.0
      %3346 = vmatpush1.msra.mxu0 0.0
      %3347 = vmatprep.subr.mxu0 0.0
      %3348 = vmatpush1.msra.mxu0 0.0
      %3349 = vmatprep.subr.mxu0 0.0
      %3350 = vmatpush1.msra.mxu0 0.0
      %3351 = vmatprep.subr.mxu0 0.0
      %3352 = vmatpush1.msra.mxu0 0.0
      %3353 = vmatprep.subr.mxu0 0.0
      %3354 = vmatpush1.msra.mxu0 0.0
      %3355 = vmatprep.subr.mxu0 0.0
      %3356 = vmatpush1.msra.mxu0 0.0
      %3357 = vmatprep.subr.mxu0 0.0
      %3358 = vmatpush1.msra.mxu0 0.0
      %3359 = vmatprep.subr.mxu0 0.0
      %3360 = vmatpush1.msra.mxu0 0.0
      %3361 = vmatprep.subr.mxu0 0.0
      %3362 = vmatpush1.msra.mxu0 0.0
      %3363 = vmatprep.subr.mxu0 0.0
      %3364 = vmatpush1.msra.mxu0 0.0
      %3365 = vmatprep.subr.mxu0 0.0
      %v3366 = vand.u32 %v3026, 4294901760
      %v3367 = vsub.f32 %v3026, %v3366
      %v3368 = vand.u32 %v3367, 4294901760
      %3369 = vmatpush1.msra.mxu0 %v3368
      %3370 = vmatprep.subr.mxu0 0.0
      %v3371 = vand.u32 %v3019, 4294901760
      %v3372 = vsub.f32 %v3019, %v3371
      %v3373 = vand.u32 %v3372, 4294901760
      %3374 = vmatpush1.msra.mxu0 %v3373
      %3375 = vmatprep.subr.mxu0 0.0
      %3376 = vmatpush2.msra.mxu0 0.0
      %3377 = vmatprep.subr.mxu0 0.0
      %3378 = vmatpush2.msra.mxu0 0.0
      %3379 = vmatprep.subr.mxu0 0.0
      %3380 = vmatpush2.msra.mxu0 0.0
      %3381 = vmatprep.subr.mxu0 0.0
      %3382 = vmatpush2.msra.mxu0 0.0
      %3383 = vmatprep.subr.mxu0 0.0
      %3384 = vmatpush2.msra.mxu0 0.0
      %3385 = vmatprep.subr.mxu0 0.0
      %3386 = vmatpush2.msra.mxu0 0.0
      %3387 = vmatprep.subr.mxu0 0.0
      %3388 = vmatpush2.msra.mxu0 0.0
      %3389 = vmatprep.subr.mxu0 0.0
      %3390 = vmatpush2.msra.mxu0 0.0
      %3391 = vmatprep.subr.mxu0 0.0
      %3392 = vmatpush2.msra.mxu0 0.0
      %3393 = vmatprep.subr.mxu0 0.0
      %3394 = vmatpush2.msra.mxu0 0.0
      %3395 = vmatprep.subr.mxu0 0.0
      %3396 = vmatpush2.msra.mxu0 0.0
      %3397 = vmatprep.subr.mxu0 0.0
      %3398 = vmatpush2.msra.mxu0 0.0
      %3399 = vmatprep.subr.mxu0 0.0
      %3400 = vmatpush2.msra.mxu0 0.0
      %3401 = vmatprep.subr.mxu0 0.0
      %3402 = vmatpush2.msra.mxu0 0.0
      %3403 = vmatprep.subr.mxu0 0.0
      %3404 = vmatpush2.msra.mxu0 0.0
      %3405 = vmatprep.subr.mxu0 0.0
      %3406 = vmatpush2.msra.mxu0 0.0
      %3407 = vmatprep.mubr.f32.mxu0 0.0
      %v3408 = vand.u32 %v3024, 4294901760
      %3409 = vmatmul.mubr.f32.gmra.mxu0 %v3408
      %v3410 = vpop.f32.mrf.mxu0
      %v3411 = vadd.f32 %v3334, %v3410
      %v3412 = vpop.f32.mrf.mxu0
      %3413 = vdwg.mxu0
      %3414 = vmatprep.subr.mxu0 0.0
      %3415 = vmatpush1.msra.mxu0 0.0
      %3416 = vmatprep.subr.mxu0 0.0
      %3417 = vmatpush1.msra.mxu0 0.0
      %3418 = vmatprep.subr.mxu0 0.0
      %3419 = vmatpush1.msra.mxu0 0.0
      %3420 = vmatprep.subr.mxu0 0.0
      %3421 = vmatpush1.msra.mxu0 0.0
      %3422 = vmatprep.subr.mxu0 0.0
      %3423 = vmatpush1.msra.mxu0 0.0
      %3424 = vmatprep.subr.mxu0 0.0
      %3425 = vmatpush1.msra.mxu0 0.0
      %3426 = vmatprep.subr.mxu0 0.0
      %3427 = vmatpush1.msra.mxu0 0.0
      %3428 = vmatprep.subr.mxu0 0.0
      %3429 = vmatpush1.msra.mxu0 0.0
      %3430 = vmatprep.subr.mxu0 0.0
      %3431 = vmatpush1.msra.mxu0 0.0
      %3432 = vmatprep.subr.mxu0 0.0
      %3433 = vmatpush1.msra.mxu0 0.0
      %3434 = vmatprep.subr.mxu0 0.0
      %3435 = vmatpush1.msra.mxu0 0.0
      %3436 = vmatprep.subr.mxu0 0.0
      %3437 = vmatpush1.msra.mxu0 0.0
      %3438 = vmatprep.subr.mxu0 0.0
      %3439 = vmatpush1.msra.mxu0 0.0
      %3440 = vmatprep.subr.mxu0 0.0
      %3441 = vmatpush1.msra.mxu0 0.0
      %3442 = vmatprep.subr.mxu0 0.0
      %v3443 = vand.u32 %v3026, 4294901760
      %3444 = vmatpush1.msra.mxu0 %v3443
      %3445 = vmatprep.subr.mxu0 0.0
      %v3446 = vand.u32 %v3019, 4294901760
      %3447 = vmatpush1.msra.mxu0 %v3446
      %3448 = vmatprep.subr.mxu0 0.0
      %3449 = vmatpush2.msra.mxu0 0.0
      %3450 = vmatprep.subr.mxu0 0.0
      %3451 = vmatpush2.msra.mxu0 0.0
      %3452 = vmatprep.subr.mxu0 0.0
      %3453 = vmatpush2.msra.mxu0 0.0
      %3454 = vmatprep.subr.mxu0 0.0
      %3455 = vmatpush2.msra.mxu0 0.0
      %3456 = vmatprep.subr.mxu0 0.0
      %3457 = vmatpush2.msra.mxu0 0.0
      %3458 = vmatprep.subr.mxu0 0.0
      %3459 = vmatpush2.msra.mxu0 0.0
      %3460 = vmatprep.subr.mxu0 0.0
      %3461 = vmatpush2.msra.mxu0 0.0
      %3462 = vmatprep.subr.mxu0 0.0
      %3463 = vmatpush2.msra.mxu0 0.0
      %3464 = vmatprep.subr.mxu0 0.0
      %3465 = vmatpush2.msra.mxu0 0.0
      %3466 = vmatprep.subr.mxu0 0.0
      %3467 = vmatpush2.msra.mxu0 0.0
      %3468 = vmatprep.subr.mxu0 0.0
      %3469 = vmatpush2.msra.mxu0 0.0
      %3470 = vmatprep.subr.mxu0 0.0
      %3471 = vmatpush2.msra.mxu0 0.0
      %3472 = vmatprep.subr.mxu0 0.0
      %3473 = vmatpush2.msra.mxu0 0.0
      %3474 = vmatprep.subr.mxu0 0.0
      %3475 = vmatpush2.msra.mxu0 0.0
      %3476 = vmatprep.subr.mxu0 0.0
      %3477 = vmatpush2.msra.mxu0 0.0
      %3478 = vmatprep.subr.mxu0 0.0
      %3479 = vmatpush2.msra.mxu0 0.0
      %3480 = vmatprep.mubr.f32.mxu0 0.0
      %v3481 = vand.u32 %v3024, 4294901760
      %3482 = vmatmul.mubr.f32.gmra.mxu0 %v3481
      %v3483 = vpop.f32.mrf.mxu0
      %v3484 = vadd.f32 %v3411, %v3483
      %v3485 = vpop.f32.mrf.mxu0
      %3486 = vdwg.mxu0
      %3487 = vst.msk [vmem:[%s294 + $0x12] sm:$0x3f] %vm2028, %v3484
      %v3488 = vld [vmem:[%s5] sm:$0x3f]
      %v3492 = vrot.slane %v1541, 5
      %v3493 = vrot.slane %v1542, 5
      %v3494 = vsel %vm1551, %v3492, %v3493
      %v3495 = vrot.slane %v1543, 5
      %v3496 = vsel %vm1551, %v3493, %v3495
      %v3499 = vadd.f32 %v1540, %v3494
      %v3500 = vadd.f32 %v1541, %v3496
      %v3502 = vsel %vm1561, %v3488, 0
      %v3505 = vsel %vm1565, %v3500, 0
      %3507 = vmatprep.subr.mxu0 0.0
      %3508 = vmatpush1.msra.mxu0 0.0
      %3509 = vmatprep.subr.mxu0 0.0
      %3510 = vmatpush1.msra.mxu0 0.0
      %3511 = vmatprep.subr.mxu0 0.0
      %3512 = vmatpush1.msra.mxu0 0.0
      %3513 = vmatprep.subr.mxu0 0.0
      %3514 = vmatpush1.msra.mxu0 0.0
      %3515 = vmatprep.subr.mxu0 0.0
      %3516 = vmatpush1.msra.mxu0 0.0
      %3517 = vmatprep.subr.mxu0 0.0
      %3518 = vmatpush1.msra.mxu0 0.0
      %3519 = vmatprep.subr.mxu0 0.0
      %3520 = vmatpush1.msra.mxu0 0.0
      %3521 = vmatprep.subr.mxu0 0.0
      %3522 = vmatpush1.msra.mxu0 0.0
      %3523 = vmatprep.subr.mxu0 0.0
      %3524 = vmatpush1.msra.mxu0 0.0
      %3525 = vmatprep.subr.mxu0 0.0
      %3526 = vmatpush1.msra.mxu0 0.0
      %3527 = vmatprep.subr.mxu0 0.0
      %3528 = vmatpush1.msra.mxu0 0.0
      %3529 = vmatprep.subr.mxu0 0.0
      %3530 = vmatpush1.msra.mxu0 0.0
      %3531 = vmatprep.subr.mxu0 0.0
      %3532 = vmatpush1.msra.mxu0 0.0
      %3533 = vmatprep.subr.mxu0 0.0
      %3534 = vmatpush1.msra.mxu0 0.0
      %3535 = vmatprep.subr.mxu0 0.0
      %v3536 = vand.u32 %v3505, 4294901760
      %3537 = vmatpush1.msra.mxu0 %v3536
      %3538 = vmatprep.subr.mxu0 0.0
      %v3539 = vand.u32 %v3499, 4294901760
      %3540 = vmatpush1.msra.mxu0 %v3539
      %3541 = vmatprep.subr.mxu0 0.0
      %3542 = vmatpush2.msra.mxu0 0.0
      %3543 = vmatprep.subr.mxu0 0.0
      %3544 = vmatpush2.msra.mxu0 0.0
      %3545 = vmatprep.subr.mxu0 0.0
      %3546 = vmatpush2.msra.mxu0 0.0
      %3547 = vmatprep.subr.mxu0 0.0
      %3548 = vmatpush2.msra.mxu0 0.0
      %3549 = vmatprep.subr.mxu0 0.0
      %3550 = vmatpush2.msra.mxu0 0.0
      %3551 = vmatprep.subr.mxu0 0.0
      %3552 = vmatpush2.msra.mxu0 0.0
      %3553 = vmatprep.subr.mxu0 0.0
      %3554 = vmatpush2.msra.mxu0 0.0
      %3555 = vmatprep.subr.mxu0 0.0
      %3556 = vmatpush2.msra.mxu0 0.0
      %3557 = vmatprep.subr.mxu0 0.0
      %3558 = vmatpush2.msra.mxu0 0.0
      %3559 = vmatprep.subr.mxu0 0.0
      %3560 = vmatpush2.msra.mxu0 0.0
      %3561 = vmatprep.subr.mxu0 0.0
      %3562 = vmatpush2.msra.mxu0 0.0
      %3563 = vmatprep.subr.mxu0 0.0
      %3564 = vmatpush2.msra.mxu0 0.0
      %3565 = vmatprep.subr.mxu0 0.0
      %3566 = vmatpush2.msra.mxu0 0.0
      %3567 = vmatprep.subr.mxu0 0.0
      %3568 = vmatpush2.msra.mxu0 0.0
      %3569 = vmatprep.subr.mxu0 0.0
      %3570 = vmatpush2.msra.mxu0 0.0
      %3571 = vmatprep.subr.mxu0 0.0
      %3572 = vmatpush2.msra.mxu0 0.0
      %3573 = vmatprep.mubr.f32.mxu0 0.0
      %v3574 = vand.u32 %v3502, 4294901760
      %v3575 = vsub.f32 %v3502, %v3574
      %v3576 = vand.u32 %v3575, 4294901760
      %v3577 = vsub.f32 %v3575, %v3576
      %v3578 = vand.u32 %v3577, 4294901760
      %3579 = vmatmul.mubr.f32.gmra.mxu0 %v3578
      %v3580 = vpop.f32.mrf.mxu0
      %v3581 = vadd.f32 0.0, %v3580
      %v3582 = vpop.f32.mrf.mxu0
      %3583 = vdwg.mxu0
      %3584 = vmatprep.subr.mxu0 0.0
      %3585 = vmatpush1.msra.mxu0 0.0
      %3586 = vmatprep.subr.mxu0 0.0
      %3587 = vmatpush1.msra.mxu0 0.0
      %3588 = vmatprep.subr.mxu0 0.0
      %3589 = vmatpush1.msra.mxu0 0.0
      %3590 = vmatprep.subr.mxu0 0.0
      %3591 = vmatpush1.msra.mxu0 0.0
      %3592 = vmatprep.subr.mxu0 0.0
      %3593 = vmatpush1.msra.mxu0 0.0
      %3594 = vmatprep.subr.mxu0 0.0
      %3595 = vmatpush1.msra.mxu0 0.0
      %3596 = vmatprep.subr.mxu0 0.0
      %3597 = vmatpush1.msra.mxu0 0.0
      %3598 = vmatprep.subr.mxu0 0.0
      %3599 = vmatpush1.msra.mxu0 0.0
      %3600 = vmatprep.subr.mxu0 0.0
      %3601 = vmatpush1.msra.mxu0 0.0
      %3602 = vmatprep.subr.mxu0 0.0
      %3603 = vmatpush1.msra.mxu0 0.0
      %3604 = vmatprep.subr.mxu0 0.0
      %3605 = vmatpush1.msra.mxu0 0.0
      %3606 = vmatprep.subr.mxu0 0.0
      %3607 = vmatpush1.msra.mxu0 0.0
      %3608 = vmatprep.subr.mxu0 0.0
      %3609 = vmatpush1.msra.mxu0 0.0
      %3610 = vmatprep.subr.mxu0 0.0
      %3611 = vmatpush1.msra.mxu0 0.0
      %3612 = vmatprep.subr.mxu0 0.0
      %v3613 = vand.u32 %v3505, 4294901760
      %v3614 = vsub.f32 %v3505, %v3613
      %v3615 = vand.u32 %v3614, 4294901760
      %v3616 = vsub.f32 %v3614, %v3615
      %v3617 = vand.u32 %v3616, 4294901760
      %3618 = vmatpush1.msra.mxu0 %v3617
      %3619 = vmatprep.subr.mxu0 0.0
      %v3620 = vand.u32 %v3499, 4294901760
      %v3621 = vsub.f32 %v3499, %v3620
      %v3622 = vand.u32 %v3621, 4294901760
      %v3623 = vsub.f32 %v3621, %v3622
      %v3624 = vand.u32 %v3623, 4294901760
      %3625 = vmatpush1.msra.mxu0 %v3624
      %3626 = vmatprep.subr.mxu0 0.0
      %3627 = vmatpush2.msra.mxu0 0.0
      %3628 = vmatprep.subr.mxu0 0.0
      %3629 = vmatpush2.msra.mxu0 0.0
      %3630 = vmatprep.subr.mxu0 0.0
      %3631 = vmatpush2.msra.mxu0 0.0
      %3632 = vmatprep.subr.mxu0 0.0
      %3633 = vmatpush2.msra.mxu0 0.0
      %3634 = vmatprep.subr.mxu0 0.0
      %3635 = vmatpush2.msra.mxu0 0.0
      %3636 = vmatprep.subr.mxu0 0.0
      %3637 = vmatpush2.msra.mxu0 0.0
      %3638 = vmatprep.subr.mxu0 0.0
      %3639 = vmatpush2.msra.mxu0 0.0
      %3640 = vmatprep.subr.mxu0 0.0
      %3641 = vmatpush2.msra.mxu0 0.0
      %3642 = vmatprep.subr.mxu0 0.0
      %3643 = vmatpush2.msra.mxu0 0.0
      %3644 = vmatprep.subr.mxu0 0.0
      %3645 = vmatpush2.msra.mxu0 0.0
      %3646 = vmatprep.subr.mxu0 0.0
      %3647 = vmatpush2.msra.mxu0 0.0
      %3648 = vmatprep.subr.mxu0 0.0
      %3649 = vmatpush2.msra.mxu0 0.0
      %3650 = vmatprep.subr.mxu0 0.0
      %3651 = vmatpush2.msra.mxu0 0.0
      %3652 = vmatprep.subr.mxu0 0.0
      %3653 = vmatpush2.msra.mxu0 0.0
      %3654 = vmatprep.subr.mxu0 0.0
      %3655 = vmatpush2.msra.mxu0 0.0
      %3656 = vmatprep.subr.mxu0 0.0
      %3657 = vmatpush2.msra.mxu0 0.0
      %3658 = vmatprep.mubr.f32.mxu0 0.0
      %v3659 = vand.u32 %v3502, 4294901760
      %3660 = vmatmul.mubr.f32.gmra.mxu0 %v3659
      %v3661 = vpop.f32.mrf.mxu0
      %v3662 = vadd.f32 %v3581, %v3661
      %v3663 = vpop.f32.mrf.mxu0
      %3664 = vdwg.mxu0
      %3665 = vmatprep.subr.mxu0 0.0
      %3666 = vmatpush1.msra.mxu0 0.0
      %3667 = vmatprep.subr.mxu0 0.0
      %3668 = vmatpush1.msra.mxu0 0.0
      %3669 = vmatprep.subr.mxu0 0.0
      %3670 = vmatpush1.msra.mxu0 0.0
      %3671 = vmatprep.subr.mxu0 0.0
      %3672 = vmatpush1.msra.mxu0 0.0
      %3673 = vmatprep.subr.mxu0 0.0
      %3674 = vmatpush1.msra.mxu0 0.0
      %3675 = vmatprep.subr.mxu0 0.0
      %3676 = vmatpush1.msra.mxu0 0.0
      %3677 = vmatprep.subr.mxu0 0.0
      %3678 = vmatpush1.msra.mxu0 0.0
      %3679 = vmatprep.subr.mxu0 0.0
      %3680 = vmatpush1.msra.mxu0 0.0
      %3681 = vmatprep.subr.mxu0 0.0
      %3682 = vmatpush1.msra.mxu0 0.0
      %3683 = vmatprep.subr.mxu0 0.0
      %3684 = vmatpush1.msra.mxu0 0.0
      %3685 = vmatprep.subr.mxu0 0.0
      %3686 = vmatpush1.msra.mxu0 0.0
      %3687 = vmatprep.subr.mxu0 0.0
      %3688 = vmatpush1.msra.mxu0 0.0
      %3689 = vmatprep.subr.mxu0 0.0
      %3690 = vmatpush1.msra.mxu0 0.0
      %3691 = vmatprep.subr.mxu0 0.0
      %3692 = vmatpush1.msra.mxu0 0.0
      %3693 = vmatprep.subr.mxu0 0.0
      %v3694 = vand.u32 %v3505, 4294901760
      %v3695 = vsub.f32 %v3505, %v3694
      %3696 = vmatpush1.msra.mxu0 %v3695
      %3697 = vmatprep.subr.mxu0 0.0
      %v3698 = vand.u32 %v3499, 4294901760
      %v3699 = vsub.f32 %v3499, %v3698
      %3700 = vmatpush1.msra.mxu0 %v3699
      %3701 = vmatprep.subr.mxu0 0.0
      %3702 = vmatpush2.msra.mxu0 0.0
      %3703 = vmatprep.subr.mxu0 0.0
      %3704 = vmatpush2.msra.mxu0 0.0
      %3705 = vmatprep.subr.mxu0 0.0
      %3706 = vmatpush2.msra.mxu0 0.0
      %3707 = vmatprep.subr.mxu0 0.0
      %3708 = vmatpush2.msra.mxu0 0.0
      %3709 = vmatprep.subr.mxu0 0.0
      %3710 = vmatpush2.msra.mxu0 0.0
      %3711 = vmatprep.subr.mxu0 0.0
      %3712 = vmatpush2.msra.mxu0 0.0
      %3713 = vmatprep.subr.mxu0 0.0
      %3714 = vmatpush2.msra.mxu0 0.0
      %3715 = vmatprep.subr.mxu0 0.0
      %3716 = vmatpush2.msra.mxu0 0.0
      %3717 = vmatprep.subr.mxu0 0.0
      %3718 = vmatpush2.msra.mxu0 0.0
      %3719 = vmatprep.subr.mxu0 0.0
      %3720 = vmatpush2.msra.mxu0 0.0
      %3721 = vmatprep.subr.mxu0 0.0
      %3722 = vmatpush2.msra.mxu0 0.0
      %3723 = vmatprep.subr.mxu0 0.0
      %3724 = vmatpush2.msra.mxu0 0.0
      %3725 = vmatprep.subr.mxu0 0.0
      %3726 = vmatpush2.msra.mxu0 0.0
      %3727 = vmatprep.subr.mxu0 0.0
      %3728 = vmatpush2.msra.mxu0 0.0
      %3729 = vmatprep.subr.mxu0 0.0
      %3730 = vmatpush2.msra.mxu0 0.0
      %3731 = vmatprep.subr.mxu0 0.0
      %3732 = vmatpush2.msra.mxu0 0.0
      %3733 = vmatprep.mubr.f32.mxu0 0.0
      %v3734 = vand.u32 %v3502, 4294901760
      %v3735 = vsub.f32 %v3502, %v3734
      %3736 = vmatmul.mubr.f32.gmra.mxu0 %v3735
      %v3737 = vpop.f32.mrf.mxu0
      %v3738 = vadd.f32 %v3662, %v3737
      %v3739 = vpop.f32.mrf.mxu0
      %3740 = vdwg.mxu0
      %3741 = vmatprep.subr.mxu0 0.0
      %3742 = vmatpush1.msra.mxu0 0.0
      %3743 = vmatprep.subr.mxu0 0.0
      %3744 = vmatpush1.msra.mxu0 0.0
      %3745 = vmatprep.subr.mxu0 0.0
      %3746 = vmatpush1.msra.mxu0 0.0
      %3747 = vmatprep.subr.mxu0 0.0
      %3748 = vmatpush1.msra.mxu0 0.0
      %3749 = vmatprep.subr.mxu0 0.0
      %3750 = vmatpush1.msra.mxu0 0.0
      %3751 = vmatprep.subr.mxu0 0.0
      %3752 = vmatpush1.msra.mxu0 0.0
      %3753 = vmatprep.subr.mxu0 0.0
      %3754 = vmatpush1.msra.mxu0 0.0
      %3755 = vmatprep.subr.mxu0 0.0
      %3756 = vmatpush1.msra.mxu0 0.0
      %3757 = vmatprep.subr.mxu0 0.0
      %3758 = vmatpush1.msra.mxu0 0.0
      %3759 = vmatprep.subr.mxu0 0.0
      %3760 = vmatpush1.msra.mxu0 0.0
      %3761 = vmatprep.subr.mxu0 0.0
      %3762 = vmatpush1.msra.mxu0 0.0
      %3763 = vmatprep.subr.mxu0 0.0
      %3764 = vmatpush1.msra.mxu0 0.0
      %3765 = vmatprep.subr.mxu0 0.0
      %3766 = vmatpush1.msra.mxu0 0.0
      %3767 = vmatprep.subr.mxu0 0.0
      %3768 = vmatpush1.msra.mxu0 0.0
      %3769 = vmatprep.subr.mxu0 0.0
      %v3770 = vand.u32 %v3505, 4294901760
      %3771 = vmatpush1.msra.mxu0 %v3770
      %3772 = vmatprep.subr.mxu0 0.0
      %v3773 = vand.u32 %v3499, 4294901760
      %3774 = vmatpush1.msra.mxu0 %v3773
      %3775 = vmatprep.subr.mxu0 0.0
      %3776 = vmatpush2.msra.mxu0 0.0
      %3777 = vmatprep.subr.mxu0 0.0
      %3778 = vmatpush2.msra.mxu0 0.0
      %3779 = vmatprep.subr.mxu0 0.0
      %3780 = vmatpush2.msra.mxu0 0.0
      %3781 = vmatprep.subr.mxu0 0.0
      %3782 = vmatpush2.msra.mxu0 0.0
      %3783 = vmatprep.subr.mxu0 0.0
      %3784 = vmatpush2.msra.mxu0 0.0
      %3785 = vmatprep.subr.mxu0 0.0
      %3786 = vmatpush2.msra.mxu0 0.0
      %3787 = vmatprep.subr.mxu0 0.0
      %3788 = vmatpush2.msra.mxu0 0.0
      %3789 = vmatprep.subr.mxu0 0.0
      %3790 = vmatpush2.msra.mxu0 0.0
      %3791 = vmatprep.subr.mxu0 0.0
      %3792 = vmatpush2.msra.mxu0 0.0
      %3793 = vmatprep.subr.mxu0 0.0
      %3794 = vmatpush2.msra.mxu0 0.0
      %3795 = vmatprep.subr.mxu0 0.0
      %3796 = vmatpush2.msra.mxu0 0.0
      %3797 = vmatprep.subr.mxu0 0.0
      %3798 = vmatpush2.msra.mxu0 0.0
      %3799 = vmatprep.subr.mxu0 0.0
      %3800 = vmatpush2.msra.mxu0 0.0
      %3801 = vmatprep.subr.mxu0 0.0
      %3802 = vmatpush2.msra.mxu0 0.0
      %3803 = vmatprep.subr.mxu0 0.0
      %3804 = vmatpush2.msra.mxu0 0.0
      %3805 = vmatprep.subr.mxu0 0.0
      %3806 = vmatpush2.msra.mxu0 0.0
      %3807 = vmatprep.mubr.f32.mxu0 0.0
      %v3808 = vand.u32 %v3502, 4294901760
      %v3809 = vsub.f32 %v3502, %v3808
      %v3810 = vand.u32 %v3809, 4294901760
      %3811 = vmatmul.mubr.f32.gmra.mxu0 %v3810
      %v3812 = vpop.f32.mrf.mxu0
      %v3813 = vadd.f32 %v3738, %v3812
      %v3814 = vpop.f32.mrf.mxu0
      %3815 = vdwg.mxu0
      %3816 = vmatprep.subr.mxu0 0.0
      %3817 = vmatpush1.msra.mxu0 0.0
      %3818 = vmatprep.subr.mxu0 0.0
      %3819 = vmatpush1.msra.mxu0 0.0
      %3820 = vmatprep.subr.mxu0 0.0
      %3821 = vmatpush1.msra.mxu0 0.0
      %3822 = vmatprep.subr.mxu0 0.0
      %3823 = vmatpush1.msra.mxu0 0.0
      %3824 = vmatprep.subr.mxu0 0.0
      %3825 = vmatpush1.msra.mxu0 0.0
      %3826 = vmatprep.subr.mxu0 0.0
      %3827 = vmatpush1.msra.mxu0 0.0
      %3828 = vmatprep.subr.mxu0 0.0
      %3829 = vmatpush1.msra.mxu0 0.0
      %3830 = vmatprep.subr.mxu0 0.0
      %3831 = vmatpush1.msra.mxu0 0.0
      %3832 = vmatprep.subr.mxu0 0.0
      %3833 = vmatpush1.msra.mxu0 0.0
      %3834 = vmatprep.subr.mxu0 0.0
      %3835 = vmatpush1.msra.mxu0 0.0
      %3836 = vmatprep.subr.mxu0 0.0
      %3837 = vmatpush1.msra.mxu0 0.0
      %3838 = vmatprep.subr.mxu0 0.0
      %3839 = vmatpush1.msra.mxu0 0.0
      %3840 = vmatprep.subr.mxu0 0.0
      %3841 = vmatpush1.msra.mxu0 0.0
      %3842 = vmatprep.subr.mxu0 0.0
      %3843 = vmatpush1.msra.mxu0 0.0
      %3844 = vmatprep.subr.mxu0 0.0
      %v3845 = vand.u32 %v3505, 4294901760
      %v3846 = vsub.f32 %v3505, %v3845
      %v3847 = vand.u32 %v3846, 4294901760
      %3848 = vmatpush1.msra.mxu0 %v3847
      %3849 = vmatprep.subr.mxu0 0.0
      %v3850 = vand.u32 %v3499, 4294901760
      %v3851 = vsub.f32 %v3499, %v3850
      %v3852 = vand.u32 %v3851, 4294901760
      %3853 = vmatpush1.msra.mxu0 %v3852
      %3854 = vmatprep.subr.mxu0 0.0
      %3855 = vmatpush2.msra.mxu0 0.0
      %3856 = vmatprep.subr.mxu0 0.0
      %3857 = vmatpush2.msra.mxu0 0.0
      %3858 = vmatprep.subr.mxu0 0.0
      %3859 = vmatpush2.msra.mxu0 0.0
      %3860 = vmatprep.subr.mxu0 0.0
      %3861 = vmatpush2.msra.mxu0 0.0
      %3862 = vmatprep.subr.mxu0 0.0
      %3863 = vmatpush2.msra.mxu0 0.0
      %3864 = vmatprep.subr.mxu0 0.0
      %3865 = vmatpush2.msra.mxu0 0.0
      %3866 = vmatprep.subr.mxu0 0.0
      %3867 = vmatpush2.msra.mxu0 0.0
      %3868 = vmatprep.subr.mxu0 0.0
      %3869 = vmatpush2.msra.mxu0 0.0
      %3870 = vmatprep.subr.mxu0 0.0
      %3871 = vmatpush2.msra.mxu0 0.0
      %3872 = vmatprep.subr.mxu0 0.0
      %3873 = vmatpush2.msra.mxu0 0.0
      %3874 = vmatprep.subr.mxu0 0.0
      %3875 = vmatpush2.msra.mxu0 0.0
      %3876 = vmatprep.subr.mxu0 0.0
      %3877 = vmatpush2.msra.mxu0 0.0
      %3878 = vmatprep.subr.mxu0 0.0
      %3879 = vmatpush2.msra.mxu0 0.0
      %3880 = vmatprep.subr.mxu0 0.0
      %3881 = vmatpush2.msra.mxu0 0.0
      %3882 = vmatprep.subr.mxu0 0.0
      %3883 = vmatpush2.msra.mxu0 0.0
      %3884 = vmatprep.subr.mxu0 0.0
      %3885 = vmatpush2.msra.mxu0 0.0
      %3886 = vmatprep.mubr.f32.mxu0 0.0
      %v3887 = vand.u32 %v3502, 4294901760
      %3888 = vmatmul.mubr.f32.gmra.mxu0 %v3887
      %v3889 = vpop.f32.mrf.mxu0
      %v3890 = vadd.f32 %v3813, %v3889
      %v3891 = vpop.f32.mrf.mxu0
      %3892 = vdwg.mxu0
      %3893 = vmatprep.subr.mxu0 0.0
      %3894 = vmatpush1.msra.mxu0 0.0
      %3895 = vmatprep.subr.mxu0 0.0
      %3896 = vmatpush1.msra.mxu0 0.0
      %3897 = vmatprep.subr.mxu0 0.0
      %3898 = vmatpush1.msra.mxu0 0.0
      %3899 = vmatprep.subr.mxu0 0.0
      %3900 = vmatpush1.msra.mxu0 0.0
      %3901 = vmatprep.subr.mxu0 0.0
      %3902 = vmatpush1.msra.mxu0 0.0
      %3903 = vmatprep.subr.mxu0 0.0
      %3904 = vmatpush1.msra.mxu0 0.0
      %3905 = vmatprep.subr.mxu0 0.0
      %3906 = vmatpush1.msra.mxu0 0.0
      %3907 = vmatprep.subr.mxu0 0.0
      %3908 = vmatpush1.msra.mxu0 0.0
      %3909 = vmatprep.subr.mxu0 0.0
      %3910 = vmatpush1.msra.mxu0 0.0
      %3911 = vmatprep.subr.mxu0 0.0
      %3912 = vmatpush1.msra.mxu0 0.0
      %3913 = vmatprep.subr.mxu0 0.0
      %3914 = vmatpush1.msra.mxu0 0.0
      %3915 = vmatprep.subr.mxu0 0.0
      %3916 = vmatpush1.msra.mxu0 0.0
      %3917 = vmatprep.subr.mxu0 0.0
      %3918 = vmatpush1.msra.mxu0 0.0
      %3919 = vmatprep.subr.mxu0 0.0
      %3920 = vmatpush1.msra.mxu0 0.0
      %3921 = vmatprep.subr.mxu0 0.0
      %v3922 = vand.u32 %v3505, 4294901760
      %3923 = vmatpush1.msra.mxu0 %v3922
      %3924 = vmatprep.subr.mxu0 0.0
      %v3925 = vand.u32 %v3499, 4294901760
      %3926 = vmatpush1.msra.mxu0 %v3925
      %3927 = vmatprep.subr.mxu0 0.0
      %3928 = vmatpush2.msra.mxu0 0.0
      %3929 = vmatprep.subr.mxu0 0.0
      %3930 = vmatpush2.msra.mxu0 0.0
      %3931 = vmatprep.subr.mxu0 0.0
      %3932 = vmatpush2.msra.mxu0 0.0
      %3933 = vmatprep.subr.mxu0 0.0
      %3934 = vmatpush2.msra.mxu0 0.0
      %3935 = vmatprep.subr.mxu0 0.0
      %3936 = vmatpush2.msra.mxu0 0.0
      %3937 = vmatprep.subr.mxu0 0.0
      %3938 = vmatpush2.msra.mxu0 0.0
      %3939 = vmatprep.subr.mxu0 0.0
      %3940 = vmatpush2.msra.mxu0 0.0
      %3941 = vmatprep.subr.mxu0 0.0
      %3942 = vmatpush2.msra.mxu0 0.0
      %3943 = vmatprep.subr.mxu0 0.0
      %3944 = vmatpush2.msra.mxu0 0.0
      %3945 = vmatprep.subr.mxu0 0.0
      %3946 = vmatpush2.msra.mxu0 0.0
      %3947 = vmatprep.subr.mxu0 0.0
      %3948 = vmatpush2.msra.mxu0 0.0
      %3949 = vmatprep.subr.mxu0 0.0
      %3950 = vmatpush2.msra.mxu0 0.0
      %3951 = vmatprep.subr.mxu0 0.0
      %3952 = vmatpush2.msra.mxu0 0.0
      %3953 = vmatprep.subr.mxu0 0.0
      %3954 = vmatpush2.msra.mxu0 0.0
      %3955 = vmatprep.subr.mxu0 0.0
      %3956 = vmatpush2.msra.mxu0 0.0
      %3957 = vmatprep.subr.mxu0 0.0
      %3958 = vmatpush2.msra.mxu0 0.0
      %3959 = vmatprep.mubr.f32.mxu0 0.0
      %v3960 = vand.u32 %v3502, 4294901760
      %3961 = vmatmul.mubr.f32.gmra.mxu0 %v3960
      %v3962 = vpop.f32.mrf.mxu0
      %v3963 = vadd.f32 %v3890, %v3962
      %v3964 = vpop.f32.mrf.mxu0
      %3965 = vdwg.mxu0
      %3966 = vst.msk [vmem:[%s294 + $0x18] sm:$0x3f] %vm2028, %v3963
      %v3967 = vld [vmem:[%s5] sm:$0x3f]
      %v3971 = vrot.slane %v1544, 5
      %v3972 = vrot.slane %v1545, 5
      %v3973 = vsel %vm1551, %v3971, %v3972
      %v3974 = vrot.slane %v1546, 5
      %v3975 = vsel %vm1551, %v3972, %v3974
      %v3978 = vadd.f32 %v1543, %v3973
      %v3979 = vadd.f32 %v1544, %v3975
      %v3982 = vrot.slane %v3978, 2
      %v3983 = vrot.slane %v3979, 2
      %v3984 = vsel %vm519, %v3982, %v3983
      %v3987 = vsel %vm1561, %v3967, 0
      %v3989 = vsel %vm1565, %v3983, 0
      %3991 = vmatprep.subr.mxu0 0.0
      %3992 = vmatpush1.msra.mxu0 0.0
      %3993 = vmatprep.subr.mxu0 0.0
      %3994 = vmatpush1.msra.mxu0 0.0
      %3995 = vmatprep.subr.mxu0 0.0
      %3996 = vmatpush1.msra.mxu0 0.0
      %3997 = vmatprep.subr.mxu0 0.0
      %3998 = vmatpush1.msra.mxu0 0.0
      %3999 = vmatprep.subr.mxu0 0.0
      %4000 = vmatpush1.msra.mxu0 0.0
      %4001 = vmatprep.subr.mxu0 0.0
      %4002 = vmatpush1.msra.mxu0 0.0
      %4003 = vmatprep.subr.mxu0 0.0
      %4004 = vmatpush1.msra.mxu0 0.0
      %4005 = vmatprep.subr.mxu0 0.0
      %4006 = vmatpush1.msra.mxu0 0.0
      %4007 = vmatprep.subr.mxu0 0.0
      %4008 = vmatpush1.msra.mxu0 0.0
      %4009 = vmatprep.subr.mxu0 0.0
      %4010 = vmatpush1.msra.mxu0 0.0
      %4011 = vmatprep.subr.mxu0 0.0
      %4012 = vmatpush1.msra.mxu0 0.0
      %4013 = vmatprep.subr.mxu0 0.0
      %4014 = vmatpush1.msra.mxu0 0.0
      %4015 = vmatprep.subr.mxu0 0.0
      %4016 = vmatpush1.msra.mxu0 0.0
      %4017 = vmatprep.subr.mxu0 0.0
      %4018 = vmatpush1.msra.mxu0 0.0
      %4019 = vmatprep.subr.mxu0 0.0
      %v4020 = vand.u32 %v3989, 4294901760
      %4021 = vmatpush1.msra.mxu0 %v4020
      %4022 = vmatprep.subr.mxu0 0.0
      %v4023 = vand.u32 %v3984, 4294901760
      %4024 = vmatpush1.msra.mxu0 %v4023
      %4025 = vmatprep.subr.mxu0 0.0
      %4026 = vmatpush2.msra.mxu0 0.0
      %4027 = vmatprep.subr.mxu0 0.0
      %4028 = vmatpush2.msra.mxu0 0.0
      %4029 = vmatprep.subr.mxu0 0.0
      %4030 = vmatpush2.msra.mxu0 0.0
      %4031 = vmatprep.subr.mxu0 0.0
      %4032 = vmatpush2.msra.mxu0 0.0
      %4033 = vmatprep.subr.mxu0 0.0
      %4034 = vmatpush2.msra.mxu0 0.0
      %4035 = vmatprep.subr.mxu0 0.0
      %4036 = vmatpush2.msra.mxu0 0.0
      %4037 = vmatprep.subr.mxu0 0.0
      %4038 = vmatpush2.msra.mxu0 0.0
      %4039 = vmatprep.subr.mxu0 0.0
      %4040 = vmatpush2.msra.mxu0 0.0
      %4041 = vmatprep.subr.mxu0 0.0
      %4042 = vmatpush2.msra.mxu0 0.0
      %4043 = vmatprep.subr.mxu0 0.0
      %4044 = vmatpush2.msra.mxu0 0.0
      %4045 = vmatprep.subr.mxu0 0.0
      %4046 = vmatpush2.msra.mxu0 0.0
      %4047 = vmatprep.subr.mxu0 0.0
      %4048 = vmatpush2.msra.mxu0 0.0
      %4049 = vmatprep.subr.mxu0 0.0
      %4050 = vmatpush2.msra.mxu0 0.0
      %4051 = vmatprep.subr.mxu0 0.0
      %4052 = vmatpush2.msra.mxu0 0.0
      %4053 = vmatprep.subr.mxu0 0.0
      %4054 = vmatpush2.msra.mxu0 0.0
      %4055 = vmatprep.subr.mxu0 0.0
      %4056 = vmatpush2.msra.mxu0 0.0
      %4057 = vmatprep.mubr.f32.mxu0 0.0
      %v4058 = vand.u32 %v3987, 4294901760
      %v4059 = vsub.f32 %v3987, %v4058
      %v4060 = vand.u32 %v4059, 4294901760
      %v4061 = vsub.f32 %v4059, %v4060
      %v4062 = vand.u32 %v4061, 4294901760
      %4063 = vmatmul.mubr.f32.gmra.mxu0 %v4062
      %v4064 = vpop.f32.mrf.mxu0
      %v4065 = vadd.f32 0.0, %v4064
      %v4066 = vpop.f32.mrf.mxu0
      %4067 = vdwg.mxu0
      %4068 = vmatprep.subr.mxu0 0.0
      %4069 = vmatpush1.msra.mxu0 0.0
      %4070 = vmatprep.subr.mxu0 0.0
      %4071 = vmatpush1.msra.mxu0 0.0
      %4072 = vmatprep.subr.mxu0 0.0
      %4073 = vmatpush1.msra.mxu0 0.0
      %4074 = vmatprep.subr.mxu0 0.0
      %4075 = vmatpush1.msra.mxu0 0.0
      %4076 = vmatprep.subr.mxu0 0.0
      %4077 = vmatpush1.msra.mxu0 0.0
      %4078 = vmatprep.subr.mxu0 0.0
      %4079 = vmatpush1.msra.mxu0 0.0
      %4080 = vmatprep.subr.mxu0 0.0
      %4081 = vmatpush1.msra.mxu0 0.0
      %4082 = vmatprep.subr.mxu0 0.0
      %4083 = vmatpush1.msra.mxu0 0.0
      %4084 = vmatprep.subr.mxu0 0.0
      %4085 = vmatpush1.msra.mxu0 0.0
      %4086 = vmatprep.subr.mxu0 0.0
      %4087 = vmatpush1.msra.mxu0 0.0
      %4088 = vmatprep.subr.mxu0 0.0
      %4089 = vmatpush1.msra.mxu0 0.0
      %4090 = vmatprep.subr.mxu0 0.0
      %4091 = vmatpush1.msra.mxu0 0.0
      %4092 = vmatprep.subr.mxu0 0.0
      %4093 = vmatpush1.msra.mxu0 0.0
      %4094 = vmatprep.subr.mxu0 0.0
      %4095 = vmatpush1.msra.mxu0 0.0
      %4096 = vmatprep.subr.mxu0 0.0
      %v4097 = vand.u32 %v3989, 4294901760
      %v4098 = vsub.f32 %v3989, %v4097
      %v4099 = vand.u32 %v4098, 4294901760
      %v4100 = vsub.f32 %v4098, %v4099
      %v4101 = vand.u32 %v4100, 4294901760
      %4102 = vmatpush1.msra.mxu0 %v4101
      %4103 = vmatprep.subr.mxu0 0.0
      %v4104 = vand.u32 %v3984, 4294901760
      %v4105 = vsub.f32 %v3984, %v4104
      %v4106 = vand.u32 %v4105, 4294901760
      %v4107 = vsub.f32 %v4105, %v4106
      %v4108 = vand.u32 %v4107, 4294901760
      %4109 = vmatpush1.msra.mxu0 %v4108
      %4110 = vmatprep.subr.mxu0 0.0
      %4111 = vmatpush2.msra.mxu0 0.0
      %4112 = vmatprep.subr.mxu0 0.0
      %4113 = vmatpush2.msra.mxu0 0.0
      %4114 = vmatprep.subr.mxu0 0.0
      %4115 = vmatpush2.msra.mxu0 0.0
      %4116 = vmatprep.subr.mxu0 0.0
      %4117 = vmatpush2.msra.mxu0 0.0
      %4118 = vmatprep.subr.mxu0 0.0
      %4119 = vmatpush2.msra.mxu0 0.0
      %4120 = vmatprep.subr.mxu0 0.0
      %4121 = vmatpush2.msra.mxu0 0.0
      %4122 = vmatprep.subr.mxu0 0.0
      %4123 = vmatpush2.msra.mxu0 0.0
      %4124 = vmatprep.subr.mxu0 0.0
      %4125 = vmatpush2.msra.mxu0 0.0
      %4126 = vmatprep.subr.mxu0 0.0
      %4127 = vmatpush2.msra.mxu0 0.0
      %4128 = vmatprep.subr.mxu0 0.0
      %4129 = vmatpush2.msra.mxu0 0.0
      %4130 = vmatprep.subr.mxu0 0.0
      %4131 = vmatpush2.msra.mxu0 0.0
      %4132 = vmatprep.subr.mxu0 0.0
      %4133 = vmatpush2.msra.mxu0 0.0
      %4134 = vmatprep.subr.mxu0 0.0
      %4135 = vmatpush2.msra.mxu0 0.0
      %4136 = vmatprep.subr.mxu0 0.0
      %4137 = vmatpush2.msra.mxu0 0.0
      %4138 = vmatprep.subr.mxu0 0.0
      %4139 = vmatpush2.msra.mxu0 0.0
      %4140 = vmatprep.subr.mxu0 0.0
      %4141 = vmatpush2.msra.mxu0 0.0
      %4142 = vmatprep.mubr.f32.mxu0 0.0
      %v4143 = vand.u32 %v3987, 4294901760
      %4144 = vmatmul.mubr.f32.gmra.mxu0 %v4143
      %v4145 = vpop.f32.mrf.mxu0
      %v4146 = vadd.f32 %v4065, %v4145
      %v4147 = vpop.f32.mrf.mxu0
      %4148 = vdwg.mxu0
      %4149 = vmatprep.subr.mxu0 0.0
      %4150 = vmatpush1.msra.mxu0 0.0
      %4151 = vmatprep.subr.mxu0 0.0
      %4152 = vmatpush1.msra.mxu0 0.0
      %4153 = vmatprep.subr.mxu0 0.0
      %4154 = vmatpush1.msra.mxu0 0.0
      %4155 = vmatprep.subr.mxu0 0.0
      %4156 = vmatpush1.msra.mxu0 0.0
      %4157 = vmatprep.subr.mxu0 0.0
      %4158 = vmatpush1.msra.mxu0 0.0
      %4159 = vmatprep.subr.mxu0 0.0
      %4160 = vmatpush1.msra.mxu0 0.0
      %4161 = vmatprep.subr.mxu0 0.0
      %4162 = vmatpush1.msra.mxu0 0.0
      %4163 = vmatprep.subr.mxu0 0.0
      %4164 = vmatpush1.msra.mxu0 0.0
      %4165 = vmatprep.subr.mxu0 0.0
      %4166 = vmatpush1.msra.mxu0 0.0
      %4167 = vmatprep.subr.mxu0 0.0
      %4168 = vmatpush1.msra.mxu0 0.0
      %4169 = vmatprep.subr.mxu0 0.0
      %4170 = vmatpush1.msra.mxu0 0.0
      %4171 = vmatprep.subr.mxu0 0.0
      %4172 = vmatpush1.msra.mxu0 0.0
      %4173 = vmatprep.subr.mxu0 0.0
      %4174 = vmatpush1.msra.mxu0 0.0
      %4175 = vmatprep.subr.mxu0 0.0
      %4176 = vmatpush1.msra.mxu0 0.0
      %4177 = vmatprep.subr.mxu0 0.0
      %v4178 = vand.u32 %v3989, 4294901760
      %v4179 = vsub.f32 %v3989, %v4178
      %4180 = vmatpush1.msra.mxu0 %v4179
      %4181 = vmatprep.subr.mxu0 0.0
      %v4182 = vand.u32 %v3984, 4294901760
      %v4183 = vsub.f32 %v3984, %v4182
      %4184 = vmatpush1.msra.mxu0 %v4183
      %4185 = vmatprep.subr.mxu0 0.0
      %4186 = vmatpush2.msra.mxu0 0.0
      %4187 = vmatprep.subr.mxu0 0.0
      %4188 = vmatpush2.msra.mxu0 0.0
      %4189 = vmatprep.subr.mxu0 0.0
      %4190 = vmatpush2.msra.mxu0 0.0
      %4191 = vmatprep.subr.mxu0 0.0
      %4192 = vmatpush2.msra.mxu0 0.0
      %4193 = vmatprep.subr.mxu0 0.0
      %4194 = vmatpush2.msra.mxu0 0.0
      %4195 = vmatprep.subr.mxu0 0.0
      %4196 = vmatpush2.msra.mxu0 0.0
      %4197 = vmatprep.subr.mxu0 0.0
      %4198 = vmatpush2.msra.mxu0 0.0
      %4199 = vmatprep.subr.mxu0 0.0
      %4200 = vmatpush2.msra.mxu0 0.0
      %4201 = vmatprep.subr.mxu0 0.0
      %4202 = vmatpush2.msra.mxu0 0.0
      %4203 = vmatprep.subr.mxu0 0.0
      %4204 = vmatpush2.msra.mxu0 0.0
      %4205 = vmatprep.subr.mxu0 0.0
      %4206 = vmatpush2.msra.mxu0 0.0
      %4207 = vmatprep.subr.mxu0 0.0
      %4208 = vmatpush2.msra.mxu0 0.0
      %4209 = vmatprep.subr.mxu0 0.0
      %4210 = vmatpush2.msra.mxu0 0.0
      %4211 = vmatprep.subr.mxu0 0.0
      %4212 = vmatpush2.msra.mxu0 0.0
      %4213 = vmatprep.subr.mxu0 0.0
      %4214 = vmatpush2.msra.mxu0 0.0
      %4215 = vmatprep.subr.mxu0 0.0
      %4216 = vmatpush2.msra.mxu0 0.0
      %4217 = vmatprep.mubr.f32.mxu0 0.0
      %v4218 = vand.u32 %v3987, 4294901760
      %v4219 = vsub.f32 %v3987, %v4218
      %4220 = vmatmul.mubr.f32.gmra.mxu0 %v4219
      %v4221 = vpop.f32.mrf.mxu0
      %v4222 = vadd.f32 %v4146, %v4221
      %v4223 = vpop.f32.mrf.mxu0
      %4224 = vdwg.mxu0
      %4225 = vmatprep.subr.mxu0 0.0
      %4226 = vmatpush1.msra.mxu0 0.0
      %4227 = vmatprep.subr.mxu0 0.0
      %4228 = vmatpush1.msra.mxu0 0.0
      %4229 = vmatprep.subr.mxu0 0.0
      %4230 = vmatpush1.msra.mxu0 0.0
      %4231 = vmatprep.subr.mxu0 0.0
      %4232 = vmatpush1.msra.mxu0 0.0
      %4233 = vmatprep.subr.mxu0 0.0
      %4234 = vmatpush1.msra.mxu0 0.0
      %4235 = vmatprep.subr.mxu0 0.0
      %4236 = vmatpush1.msra.mxu0 0.0
      %4237 = vmatprep.subr.mxu0 0.0
      %4238 = vmatpush1.msra.mxu0 0.0
      %4239 = vmatprep.subr.mxu0 0.0
      %4240 = vmatpush1.msra.mxu0 0.0
      %4241 = vmatprep.subr.mxu0 0.0
      %4242 = vmatpush1.msra.mxu0 0.0
      %4243 = vmatprep.subr.mxu0 0.0
      %4244 = vmatpush1.msra.mxu0 0.0
      %4245 = vmatprep.subr.mxu0 0.0
      %4246 = vmatpush1.msra.mxu0 0.0
      %4247 = vmatprep.subr.mxu0 0.0
      %4248 = vmatpush1.msra.mxu0 0.0
      %4249 = vmatprep.subr.mxu0 0.0
      %4250 = vmatpush1.msra.mxu0 0.0
      %4251 = vmatprep.subr.mxu0 0.0
      %4252 = vmatpush1.msra.mxu0 0.0
      %4253 = vmatprep.subr.mxu0 0.0
      %v4254 = vand.u32 %v3989, 4294901760
      %4255 = vmatpush1.msra.mxu0 %v4254
      %4256 = vmatprep.subr.mxu0 0.0
      %v4257 = vand.u32 %v3984, 4294901760
      %4258 = vmatpush1.msra.mxu0 %v4257
      %4259 = vmatprep.subr.mxu0 0.0
      %4260 = vmatpush2.msra.mxu0 0.0
      %4261 = vmatprep.subr.mxu0 0.0
      %4262 = vmatpush2.msra.mxu0 0.0
      %4263 = vmatprep.subr.mxu0 0.0
      %4264 = vmatpush2.msra.mxu0 0.0
      %4265 = vmatprep.subr.mxu0 0.0
      %4266 = vmatpush2.msra.mxu0 0.0
      %4267 = vmatprep.subr.mxu0 0.0
      %4268 = vmatpush2.msra.mxu0 0.0
      %4269 = vmatprep.subr.mxu0 0.0
      %4270 = vmatpush2.msra.mxu0 0.0
      %4271 = vmatprep.subr.mxu0 0.0
      %4272 = vmatpush2.msra.mxu0 0.0
      %4273 = vmatprep.subr.mxu0 0.0
      %4274 = vmatpush2.msra.mxu0 0.0
      %4275 = vmatprep.subr.mxu0 0.0
      %4276 = vmatpush2.msra.mxu0 0.0
      %4277 = vmatprep.subr.mxu0 0.0
      %4278 = vmatpush2.msra.mxu0 0.0
      %4279 = vmatprep.subr.mxu0 0.0
      %4280 = vmatpush2.msra.mxu0 0.0
      %4281 = vmatprep.subr.mxu0 0.0
      %4282 = vmatpush2.msra.mxu0 0.0
      %4283 = vmatprep.subr.mxu0 0.0
      %4284 = vmatpush2.msra.mxu0 0.0
      %4285 = vmatprep.subr.mxu0 0.0
      %4286 = vmatpush2.msra.mxu0 0.0
      %4287 = vmatprep.subr.mxu0 0.0
      %4288 = vmatpush2.msra.mxu0 0.0
      %4289 = vmatprep.subr.mxu0 0.0
      %4290 = vmatpush2.msra.mxu0 0.0
      %4291 = vmatprep.mubr.f32.mxu0 0.0
      %v4292 = vand.u32 %v3987, 4294901760
      %v4293 = vsub.f32 %v3987, %v4292
      %v4294 = vand.u32 %v4293, 4294901760
      %4295 = vmatmul.mubr.f32.gmra.mxu0 %v4294
      %v4296 = vpop.f32.mrf.mxu0
      %v4297 = vadd.f32 %v4222, %v4296
      %v4298 = vpop.f32.mrf.mxu0
      %4299 = vdwg.mxu0
      %4300 = vmatprep.subr.mxu0 0.0
      %4301 = vmatpush1.msra.mxu0 0.0
      %4302 = vmatprep.subr.mxu0 0.0
      %4303 = vmatpush1.msra.mxu0 0.0
      %4304 = vmatprep.subr.mxu0 0.0
      %4305 = vmatpush1.msra.mxu0 0.0
      %4306 = vmatprep.subr.mxu0 0.0
      %4307 = vmatpush1.msra.mxu0 0.0
      %4308 = vmatprep.subr.mxu0 0.0
      %4309 = vmatpush1.msra.mxu0 0.0
      %4310 = vmatprep.subr.mxu0 0.0
      %4311 = vmatpush1.msra.mxu0 0.0
      %4312 = vmatprep.subr.mxu0 0.0
      %4313 = vmatpush1.msra.mxu0 0.0
      %4314 = vmatprep.subr.mxu0 0.0
      %4315 = vmatpush1.msra.mxu0 0.0
      %4316 = vmatprep.subr.mxu0 0.0
      %4317 = vmatpush1.msra.mxu0 0.0
      %4318 = vmatprep.subr.mxu0 0.0
      %4319 = vmatpush1.msra.mxu0 0.0
      %4320 = vmatprep.subr.mxu0 0.0
      %4321 = vmatpush1.msra.mxu0 0.0
      %4322 = vmatprep.subr.mxu0 0.0
      %4323 = vmatpush1.msra.mxu0 0.0
      %4324 = vmatprep.subr.mxu0 0.0
      %4325 = vmatpush1.msra.mxu0 0.0
      %4326 = vmatprep.subr.mxu0 0.0
      %4327 = vmatpush1.msra.mxu0 0.0
      %4328 = vmatprep.subr.mxu0 0.0
      %v4329 = vand.u32 %v3989, 4294901760
      %v4330 = vsub.f32 %v3989, %v4329
      %v4331 = vand.u32 %v4330, 4294901760
      %4332 = vmatpush1.msra.mxu0 %v4331
      %4333 = vmatprep.subr.mxu0 0.0
      %v4334 = vand.u32 %v3984, 4294901760
      %v4335 = vsub.f32 %v3984, %v4334
      %v4336 = vand.u32 %v4335, 4294901760
      %4337 = vmatpush1.msra.mxu0 %v4336
      %4338 = vmatprep.subr.mxu0 0.0
      %4339 = vmatpush2.msra.mxu0 0.0
      %4340 = vmatprep.subr.mxu0 0.0
      %4341 = vmatpush2.msra.mxu0 0.0
      %4342 = vmatprep.subr.mxu0 0.0
      %4343 = vmatpush2.msra.mxu0 0.0
      %4344 = vmatprep.subr.mxu0 0.0
      %4345 = vmatpush2.msra.mxu0 0.0
      %4346 = vmatprep.subr.mxu0 0.0
      %4347 = vmatpush2.msra.mxu0 0.0
      %4348 = vmatprep.subr.mxu0 0.0
      %4349 = vmatpush2.msra.mxu0 0.0
      %4350 = vmatprep.subr.mxu0 0.0
      %4351 = vmatpush2.msra.mxu0 0.0
      %4352 = vmatprep.subr.mxu0 0.0
      %4353 = vmatpush2.msra.mxu0 0.0
      %4354 = vmatprep.subr.mxu0 0.0
      %4355 = vmatpush2.msra.mxu0 0.0
      %4356 = vmatprep.subr.mxu0 0.0
      %4357 = vmatpush2.msra.mxu0 0.0
      %4358 = vmatprep.subr.mxu0 0.0
      %4359 = vmatpush2.msra.mxu0 0.0
      %4360 = vmatprep.subr.mxu0 0.0
      %4361 = vmatpush2.msra.mxu0 0.0
      %4362 = vmatprep.subr.mxu0 0.0
      %4363 = vmatpush2.msra.mxu0 0.0
      %4364 = vmatprep.subr.mxu0 0.0
      %4365 = vmatpush2.msra.mxu0 0.0
      %4366 = vmatprep.subr.mxu0 0.0
      %4367 = vmatpush2.msra.mxu0 0.0
      %4368 = vmatprep.subr.mxu0 0.0
      %4369 = vmatpush2.msra.mxu0 0.0
      %4370 = vmatprep.mubr.f32.mxu0 0.0
      %v4371 = vand.u32 %v3987, 4294901760
      %4372 = vmatmul.mubr.f32.gmra.mxu0 %v4371
      %v4373 = vpop.f32.mrf.mxu0
      %v4374 = vadd.f32 %v4297, %v4373
      %v4375 = vpop.f32.mrf.mxu0
      %4376 = vdwg.mxu0
      %4377 = vmatprep.subr.mxu0 0.0
      %4378 = vmatpush1.msra.mxu0 0.0
      %4379 = vmatprep.subr.mxu0 0.0
      %4380 = vmatpush1.msra.mxu0 0.0
      %4381 = vmatprep.subr.mxu0 0.0
      %4382 = vmatpush1.msra.mxu0 0.0
      %4383 = vmatprep.subr.mxu0 0.0
      %4384 = vmatpush1.msra.mxu0 0.0
      %4385 = vmatprep.subr.mxu0 0.0
      %4386 = vmatpush1.msra.mxu0 0.0
      %4387 = vmatprep.subr.mxu0 0.0
      %4388 = vmatpush1.msra.mxu0 0.0
      %4389 = vmatprep.subr.mxu0 0.0
      %4390 = vmatpush1.msra.mxu0 0.0
      %4391 = vmatprep.subr.mxu0 0.0
      %4392 = vmatpush1.msra.mxu0 0.0
      %4393 = vmatprep.subr.mxu0 0.0
      %4394 = vmatpush1.msra.mxu0 0.0
      %4395 = vmatprep.subr.mxu0 0.0
      %4396 = vmatpush1.msra.mxu0 0.0
      %4397 = vmatprep.subr.mxu0 0.0
      %4398 = vmatpush1.msra.mxu0 0.0
      %4399 = vmatprep.subr.mxu0 0.0
      %4400 = vmatpush1.msra.mxu0 0.0
      %4401 = vmatprep.subr.mxu0 0.0
      %4402 = vmatpush1.msra.mxu0 0.0
      %4403 = vmatprep.subr.mxu0 0.0
      %4404 = vmatpush1.msra.mxu0 0.0
      %4405 = vmatprep.subr.mxu0 0.0
      %v4406 = vand.u32 %v3989, 4294901760
      %4407 = vmatpush1.msra.mxu0 %v4406
      %4408 = vmatprep.subr.mxu0 0.0
      %v4409 = vand.u32 %v3984, 4294901760
      %4410 = vmatpush1.msra.mxu0 %v4409
      %4411 = vmatprep.subr.mxu0 0.0
      %4412 = vmatpush2.msra.mxu0 0.0
      %4413 = vmatprep.subr.mxu0 0.0
      %4414 = vmatpush2.msra.mxu0 0.0
      %4415 = vmatprep.subr.mxu0 0.0
      %4416 = vmatpush2.msra.mxu0 0.0
      %4417 = vmatprep.subr.mxu0 0.0
      %4418 = vmatpush2.msra.mxu0 0.0
      %4419 = vmatprep.subr.mxu0 0.0
      %4420 = vmatpush2.msra.mxu0 0.0
      %4421 = vmatprep.subr.mxu0 0.0
      %4422 = vmatpush2.msra.mxu0 0.0
      %4423 = vmatprep.subr.mxu0 0.0
      %4424 = vmatpush2.msra.mxu0 0.0
      %4425 = vmatprep.subr.mxu0 0.0
      %4426 = vmatpush2.msra.mxu0 0.0
      %4427 = vmatprep.subr.mxu0 0.0
      %4428 = vmatpush2.msra.mxu0 0.0
      %4429 = vmatprep.subr.mxu0 0.0
      %4430 = vmatpush2.msra.mxu0 0.0
      %4431 = vmatprep.subr.mxu0 0.0
      %4432 = vmatpush2.msra.mxu0 0.0
      %4433 = vmatprep.subr.mxu0 0.0
      %4434 = vmatpush2.msra.mxu0 0.0
      %4435 = vmatprep.subr.mxu0 0.0
      %4436 = vmatpush2.msra.mxu0 0.0
      %4437 = vmatprep.subr.mxu0 0.0
      %4438 = vmatpush2.msra.mxu0 0.0
      %4439 = vmatprep.subr.mxu0 0.0
      %4440 = vmatpush2.msra.mxu0 0.0
      %4441 = vmatprep.subr.mxu0 0.0
      %4442 = vmatpush2.msra.mxu0 0.0
      %4443 = vmatprep.mubr.f32.mxu0 0.0
      %v4444 = vand.u32 %v3987, 4294901760
      %4445 = vmatmul.mubr.f32.gmra.mxu0 %v4444
      %v4446 = vpop.f32.mrf.mxu0
      %v4447 = vadd.f32 %v4374, %v4446
      %v4448 = vpop.f32.mrf.mxu0
      %4449 = vdwg.mxu0
      %4450 = vst.msk [vmem:[%s294 + $0x1e] sm:$0x3f] %vm2028, %v4447
      %p4451 = scmp.lt.s32.totalorder %s22, 1
      %s4452 = scalar_select %p4451, %s22, 1
      %p4453 = scmp.lt.s32.totalorder %s24, 1
      %s4454 = scalar_select %p4453, %s24, 1
      %s4455 = smul.addr %s4454, 5
      %s4456 = smul.addr %s4452, 10
      %s4457 = sadd.s32 %s4455, %s4456
      %s4458 = smul.addr %s4457, 8
      %s4459 = scalar_lea.vmem %s6, %s4458
      // Predicated region
      $region45: #{tpu_custom_call.1} parent=43 // pred_check
        %p4460 = pneg %p189
      $region46: #{tpu_custom_call.1} parent=43 // pred_check_branch
        %4462 = sbr.rel (%p4460) target = $region48
      $region47: #{tpu_custom_call.1} parent=43 // pred_region
        _
      $region48: #{tpu_custom_call.1} parent=43 // pred_fallthru
        _
    $region44: #{tpu_custom_call.1} parent=5 // pred_fallthru
      _
    %p4463 = scmp.le.s32.totalorder 2, %s12
    // Predicated region
    $region49: #{tpu_custom_call.1} parent=5 // pred_check
      %p4464 = pneg %p4463
    $region50: #{tpu_custom_call.1} parent=5 // pred_check_branch
      %4466 = sbr.rel (%p4464) target = $region52
    $region51: #{tpu_custom_call.1} parent=5 // pred_region
      %s4467 = ssub.s32 %s12, 2
      // Predicated region
      $region53: #{tpu_custom_call.1} parent=51 // pred_check
        %p4468 = pneg %p195
      $region54: #{tpu_custom_call.1} parent=51 // pred_check_branch
        %4470 = sbr.rel (%p4468) target = $region56
      $region55: #{tpu_custom_call.1} parent=51 // pred_region
        %p4471 = scmp.lt.s32.totalorder %s25, 1
        %s4472 = scalar_select %p4471, %s25, 1
        %p4473 = scmp.lt.s32.totalorder %s27, 1
        %s4474 = scalar_select %p4473, %s27, 1
        %s4475 = smul.addr %s4474, 5
        %s4476 = smul.addr %s4472, 10
        %s4477 = sadd.s32 %s4475, %s4476
        %s4478 = smul.addr %s4477, 8
        %s4479 = scalar_lea.vmem %s6, %s4478
      $region56: #{tpu_custom_call.1} parent=51 // pred_fallthru
        _
    $region52: #{tpu_custom_call.1} parent=5 // pred_fallthru
      _
  $region6: #{tpu_custom_call.1} parent=0 // loop_footer
    %s16 = sadd.s32 1, %s12
  $region7: #{tpu_custom_call.1} parent=0 // loop_footer_branch
    %11 = sbr.rel target = $region3
  $region8: #{tpu_custom_call.1} parent=0 // loop_exit
    _

</llo_original>
